<compile_context>
chip_gen: v5e
topology: v5e:2x2
jax: 0.10.0
libtpu: 0.0.40
codegen_flags: <defaults>
</compile_context>

<pallas_src>
import jax
import jax.numpy as jnp
import numpy as np
from jax.experimental import pallas as pl
from jax.experimental.pallas import tpu as pltpu

N = 128            # number of nodes
F_IN = 32          # nfeature
HEADS = 8          # conv1 heads
C1 = 8             # conv1 out channels per head
HID = HEADS * C1   # 64 = conv2 input width
NCLASS = 8         # nclass (conv2: heads=1, concat=False)
E = 512            # number of (random) edges
NEG_SLOPE = 0.2    # GATConv LeakyReLU negative slope (PyG default)
NEG_INF = -1e30


def gat_fused_kernel(x_ref, w1e_ref, b1_ref, hmask_ref, w2e_ref, b2_ref,
                     bias_ref, out_ref):
    """Fused 2-layer GATConv forward (+ELU, +log_softmax), everything VMEM-resident."""
    bias = bias_ref[...]                                                 # [N, N] additive mask
    x = x_ref[...]                                                       # [N, F_IN]

    # ---------- layer 1: projection + folded attention logits (ONE matmul) ----------
    he = jnp.dot(x, w1e_ref[...], preferred_element_type=jnp.float32)    # [N, HID + 2*HEADS]
    h1 = he[:, :HID]                                                     # [N, HID]
    e_t = jnp.transpose(he[:, HID:])                                     # [2*HEADS, N]
    e_src = e_t[:HEADS]                                                  # [HEADS, N]  (source j)
    e_dst = e_t[HEADS:]                                                  # [HEADS, N]  (dest   i)

    # Batched per-head logits [HEADS, N_dst, N_src], LeakyReLU, additive -1e30 mask.
    logits = e_dst[:, :, None] + e_src[:, None, :]
    logits = jnp.maximum(logits, NEG_SLOPE * logits)                     # LeakyReLU (0<slope<1)
    masked = logits + bias[None, :, :]

    # Masked softmax pieces (normalization deferred until after the matmul).
    m = jnp.max(masked, axis=-1, keepdims=True)                          # [HEADS, N, 1]
    p = jnp.exp(masked - m)                                              # [HEADS, N, N]
    s = jnp.sum(p, axis=-1, keepdims=True)                               # [HEADS, N, 1]
    inv = pl.reciprocal(s, approx=True)                                  # EUP
    inv = inv * (2.0 - s * inv)                                          # Newton step -> ~f32 exact

    # Aggregation: ONE [H*N, N] x [N, HID] matmul, then block-diagonal head
    # extraction with the normalization folded in (alpha never materialized).
    r = jnp.dot(p.reshape(HEADS * N, N), h1,
                preferred_element_type=jnp.float32)                      # [H*N, HID]
    r3 = r.reshape(HEADS, N, HID)
    out1 = jnp.sum(r3 * (inv * hmask_ref[...][:, None, :]), axis=0)      # [N, HID]
    z = out1 + b1_ref[...]
    act = jnp.where(z > 0, z, jnp.exp(jnp.minimum(z, 0.0)) - 1.0)        # ELU (clamped exp arg)

    # ---------- layer 2 (heads=1, concat=False): folded att columns ----------
    he2 = jnp.dot(act, w2e_ref[...], preferred_element_type=jnp.float32)  # [N, NCLASS + 2]
    h2 = he2[:, :NCLASS]                                                  # [N, NCLASS]
    e_dst2 = he2[:, NCLASS:NCLASS + 1]                                    # [N, 1]
    e2_t = jnp.transpose(he2[:, NCLASS:])                                 # [2, N]
    e_src2 = e2_t[1:2, :]                                                 # [1, N]

    logits2 = e_dst2 + e_src2                                             # [N, N]
    logits2 = jnp.maximum(logits2, NEG_SLOPE * logits2)
    masked2 = logits2 + bias
    m2 = jnp.max(masked2, axis=-1, keepdims=True)
    p2 = jnp.exp(masked2 - m2)
    s2 = jnp.sum(p2, axis=-1, keepdims=True)
    inv2 = pl.reciprocal(s2, approx=True)
    inv2 = inv2 * (2.0 - s2 * inv2)
    out2 = jnp.dot(p2, h2, preferred_element_type=jnp.float32) * inv2 + b2_ref[...]

    # log_softmax over classes (dim=1)
    mx = jnp.max(out2, axis=-1, keepdims=True)
    lse = jnp.log(jnp.sum(jnp.exp(out2 - mx), axis=-1, keepdims=True)) + mx
    out_ref[...] = out2 - lse


@jax.jit
def gat_forward(x, adj, params):
    w1, asrc1, adst1, b1, w2, asrc2, adst2, b2 = params

    # Additive attention mask: 0 on edges (incl. self-loops), -1e30 elsewhere.
    # NOTE: every row must have at least one unmasked entry (self-loops added below).
    bias = jnp.where(adj > 0, 0.0, NEG_INF).astype(jnp.float32)           # [N, N]

    # ---- fold att_src/att_dst of layer 1 into the projection weight ----
    # head_blocks[c, h] = 1 iff channel c belongs to head h (block diagonal).
    head_blocks = jnp.repeat(jnp.eye(HEADS, dtype=jnp.float32), C1, axis=0)   # [HID, HEADS]
    sel_src = asrc1.reshape(HID, 1) * head_blocks                             # [HID, HEADS]
    sel_dst = adst1.reshape(HID, 1) * head_blocks                             # [HID, HEADS]
    w1e = jnp.concatenate([w1, w1 @ sel_src, w1 @ sel_dst], axis=1)           # [F_IN, HID+2H]

    # ---- fold att vectors of layer 2 into its weight (two extra columns) ----
    w2e = jnp.concatenate([w2,
                           w2 @ adst2.reshape(NCLASS, 1),
                           w2 @ asrc2.reshape(NCLASS, 1)], axis=1)            # [HID, NCLASS+2]

    # Head-selection mask for the block-diagonal extraction after aggregation.
    hmask = jnp.repeat(jnp.eye(HEADS, dtype=jnp.float32), C1, axis=1)         # [HEADS, HID]

    vmem = pl.BlockSpec(memory_space=pltpu.MemorySpace.VMEM)
    return pl.pallas_call(
        gat_fused_kernel,
        out_shape=jax.ShapeDtypeStruct((N, NCLASS), jnp.float32),
        in_specs=[vmem] * 7,
        out_specs=vmem,
    )(x, w1e, b1, hmask, w2e, b2, bias)


def gat_reference(x, adj, params):
    """Pure-JAX dense reference with identical semantics (for validation)."""
    w1, asrc1, adst1, b1, w2, asrc2, adst2, b2 = params
    h1 = x @ w1
    h1h = h1.reshape(N, HEADS, C1)
    es = jnp.sum(h1h * asrc1.reshape(1, HEADS, C1), -1)                  # [N, H]
    ed = jnp.sum(h1h * adst1.reshape(1, HEADS, C1), -1)
    logits = ed[:, None, :] + es[None, :, :]                             # [dst, src, H]
    logits = jnp.where(logits > 0, logits, NEG_SLOPE * logits)
    masked = jnp.where(adj[:, :, None] > 0, logits, -1e30)
    p = jnp.exp(masked - masked.max(1, keepdims=True)) * adj[:, :, None]
    alpha = p / p.sum(1, keepdims=True)
    out1 = jnp.einsum('dsh,shc->dhc', alpha, h1h).reshape(N, HID) + b1
    act = jnp.where(out1 > 0, out1, jnp.exp(out1) - 1.0)
    h2 = act @ w2
    es2 = jnp.sum(h2 * asrc2, -1)
    ed2 = jnp.sum(h2 * adst2, -1)
    l2 = ed2[:, None] + es2[None, :]
    l2 = jnp.where(l2 > 0, l2, NEG_SLOPE * l2)
    m2 = jnp.where(adj > 0, l2, -1e30)
    p2 = jnp.exp(m2 - m2.max(1, keepdims=True)) * adj
    a2 = p2 / p2.sum(1, keepdims=True)
    out2 = a2 @ h2 + b2
    return jax.nn.log_softmax(out2, axis=1)


if __name__ == "__main__":
    key = jax.random.PRNGKey(0)
    ks = jax.random.split(key, 12)

    # node features
    x = jax.random.normal(ks[0], (N, F_IN), dtype=jnp.float32)

    # random sparse graph: edge_index [2, E], messages src -> dst
    src = jax.random.randint(ks[1], (E,), 0, N)
    dst = jax.random.randint(ks[2], (E,), 0, N)
    edge_index = jnp.stack([src, dst], axis=0)
    adj = jnp.zeros((N, N), dtype=jnp.float32).at[dst, src].set(1.0)
    adj = jnp.maximum(adj, jnp.eye(N, dtype=jnp.float32))   # add self-loops (PyG default)

    # deterministic parameter init (GATConv: lin has no bias; separate bias param)
    scale = 0.1
    w1 = scale * jax.random.normal(ks[3], (F_IN, HID), dtype=jnp.float32)    # conv1.lin
    asrc1 = scale * jax.random.normal(ks[4], (1, HID), dtype=jnp.float32)    # conv1.att_src
    adst1 = scale * jax.random.normal(ks[5], (1, HID), dtype=jnp.float32)    # conv1.att_dst
    b1 = scale * jax.random.normal(ks[6], (1, HID), dtype=jnp.float32)       # conv1.bias
    w2 = scale * jax.random.normal(ks[7], (HID, NCLASS), dtype=jnp.float32)  # conv2.lin
    asrc2 = scale * jax.random.normal(ks[8], (1, NCLASS), dtype=jnp.float32)
    adst2 = scale * jax.random.normal(ks[9], (1, NCLASS), dtype=jnp.float32)
    b2 = scale * jax.random.normal(ks[10], (1, NCLASS), dtype=jnp.float32)
    params = (w1, asrc1, adst1, b1, w2, asrc2, adst2, b2)

    out = gat_forward(x, adj, params)
    out = jax.block_until_ready(out)

    ref = jax.block_until_ready(gat_reference(x, adj, params))
    np.testing.assert_allclose(np.asarray(out), np.asarray(ref), rtol=2e-3, atol=2e-3)
    assert np.all(np.isfinite(np.asarray(out)))
    print("KERNEL_OK")
</pallas_src>

<mosaic_0001>
module attributes {stable_mosaic.version = 11 : i64} {
  func.func @gat_fused_kernel(%arg0: memref<128x32xf32, #tpu.memory_space<vmem>>, %arg1: memref<32x80xf32, #tpu.memory_space<vmem>>, %arg2: memref<1x64xf32, #tpu.memory_space<vmem>>, %arg3: memref<8x64xf32, #tpu.memory_space<vmem>>, %arg4: memref<64x10xf32, #tpu.memory_space<vmem>>, %arg5: memref<1x8xf32, #tpu.memory_space<vmem>>, %arg6: memref<128x128xf32, #tpu.memory_space<vmem>>, %arg7: memref<128x8xf32, #tpu.memory_space<vmem>>) attributes {dimension_semantics = [], scalar_prefetch = 0 : i64, scratch_operands = 0 : i64, tpu.core_type = #tpu.core_type<tc>} {
    %c0 = arith.constant 0 : index
    %c0_0 = arith.constant 0 : index
    %0 = vector.load %arg6[%c0, %c0_0] : memref<128x128xf32, #tpu.memory_space<vmem>>, vector<128x128xf32>
    %c0_1 = arith.constant 0 : index
    %c0_2 = arith.constant 0 : index
    %1 = vector.load %arg0[%c0_1, %c0_2] : memref<128x32xf32, #tpu.memory_space<vmem>>, vector<128x32xf32>
    %c0_3 = arith.constant 0 : index
    %c0_4 = arith.constant 0 : index
    %2 = vector.load %arg1[%c0_3, %c0_4] : memref<32x80xf32, #tpu.memory_space<vmem>>, vector<32x80xf32>
    %cst = arith.constant dense<0.000000e+00> : vector<128x80xf32>
    %3 = tpu.matmul %1, %2, %cst {dimension_numbers = #tpu.dot_dimension_numbers<[1], [0], [0], [1], [0, 0, 1, 1], [], []>} : vector<128x32xf32>, vector<32x80xf32>, vector<128x80xf32> -> vector<128x80xf32>
    %4 = vector.extract_strided_slice %3 {offsets = [0, 0], sizes = [128, 64], strides = [1, 1]} : vector<128x80xf32> to vector<128x64xf32>
    %5 = vector.extract_strided_slice %3 {offsets = [0, 64], sizes = [128, 16], strides = [1, 1]} : vector<128x80xf32> to vector<128x16xf32>
    %6 = tpu.transpose %5, [1, 0] : vector<128x16xf32> -> vector<16x128xf32>
    %7 = vector.extract_strided_slice %6 {offsets = [0, 0], sizes = [8, 128], strides = [1, 1]} : vector<16x128xf32> to vector<8x128xf32>
    %8 = vector.extract_strided_slice %6 {offsets = [8, 0], sizes = [8, 128], strides = [1, 1]} : vector<16x128xf32> to vector<8x128xf32>
    %9 = vector.shape_cast %8 : vector<8x128xf32> to vector<8x128x1xf32>
    %10 = vector.shape_cast %7 : vector<8x128xf32> to vector<8x1x128xf32>
    %11 = vector.broadcast %9 : vector<8x128x1xf32> to vector<8x128x128xf32>
    %12 = vector.broadcast %10 : vector<8x1x128xf32> to vector<8x128x128xf32>
    %13 = arith.addf %11, %12 : vector<8x128x128xf32>
    %cst_5 = arith.constant 2.000000e-01 : f32
    %14 = vector.broadcast %cst_5 : f32 to vector<8x128x128xf32>
    %15 = arith.mulf %14, %13 : vector<8x128x128xf32>
    %16 = arith.maximumf %13, %15 : vector<8x128x128xf32>
    %17 = vector.shape_cast %0 : vector<128x128xf32> to vector<1x128x128xf32>
    %18 = vector.broadcast %17 : vector<1x128x128xf32> to vector<8x128x128xf32>
    %19 = arith.addf %16, %18 : vector<8x128x128xf32>
    %cst_6 = arith.constant dense<0xFF800000> : vector<8x128xf32>
    %20 = vector.multi_reduction <maximumf>, %19, %cst_6 [2] : vector<8x128x128xf32> to vector<8x128xf32>
    %21 = vector.shape_cast %20 : vector<8x128xf32> to vector<8x128x1xf32>
    %22 = vector.broadcast %21 : vector<8x128x1xf32> to vector<8x128x128xf32>
    %23 = arith.subf %19, %22 : vector<8x128x128xf32>
    %24 = math.exp %23 : vector<8x128x128xf32>
    %cst_7 = arith.constant dense<0.000000e+00> : vector<8x128xf32>
    %25 = vector.multi_reduction <add>, %24, %cst_7 [2] : vector<8x128x128xf32> to vector<8x128xf32>
    %26 = vector.shape_cast %25 : vector<8x128xf32> to vector<8x128x1xf32>
    %27 = tpu.reciprocal %26 {approx = true} : vector<8x128x1xf32> -> vector<8x128x1xf32>
    %28 = arith.mulf %26, %27 : vector<8x128x1xf32>
    %cst_8 = arith.constant 2.000000e+00 : f32
    %29 = vector.broadcast %cst_8 : f32 to vector<8x128x1xf32>
    %30 = arith.subf %29, %28 : vector<8x128x1xf32>
    %31 = arith.mulf %27, %30 : vector<8x128x1xf32>
    %32 = vector.shape_cast %24 : vector<8x128x128xf32> to vector<1024x128xf32>
    %cst_9 = arith.constant dense<0.000000e+00> : vector<1024x64xf32>
    %33 = tpu.matmul %32, %4, %cst_9 {dimension_numbers = #tpu.dot_dimension_numbers<[1], [0], [0], [1], [0, 0, 1, 1], [], []>} : vector<1024x128xf32>, vector<128x64xf32>, vector<1024x64xf32> -> vector<1024x64xf32>
    %34 = vector.shape_cast %33 : vector<1024x64xf32> to vector<8x128x64xf32>
    %c0_10 = arith.constant 0 : index
    %c0_11 = arith.constant 0 : index
    %35 = vector.load %arg3[%c0_10, %c0_11] : memref<8x64xf32, #tpu.memory_space<vmem>>, vector<8x64xf32>
    %36 = vector.shape_cast %35 : vector<8x64xf32> to vector<8x1x64xf32>
    %37 = vector.broadcast %31 : vector<8x128x1xf32> to vector<8x128x64xf32>
    %38 = vector.broadcast %36 : vector<8x1x64xf32> to vector<8x128x64xf32>
    %39 = arith.mulf %37, %38 : vector<8x128x64xf32>
    %40 = arith.mulf %34, %39 : vector<8x128x64xf32>
    %cst_12 = arith.constant dense<0.000000e+00> : vector<128x64xf32>
    %41 = vector.multi_reduction <add>, %40, %cst_12 [0] : vector<8x128x64xf32> to vector<128x64xf32>
    %c0_13 = arith.constant 0 : index
    %c0_14 = arith.constant 0 : index
    %42 = vector.load %arg2[%c0_13, %c0_14] : memref<1x64xf32, #tpu.memory_space<vmem>>, vector<1x64xf32>
    %43 = vector.broadcast %42 : vector<1x64xf32> to vector<128x64xf32>
    %44 = arith.addf %41, %43 : vector<128x64xf32>
    %cst_15 = arith.constant 0.000000e+00 : f32
    %45 = vector.broadcast %cst_15 : f32 to vector<128x64xf32>
    %46 = arith.cmpf ogt, %44, %45 : vector<128x64xf32>
    %cst_16 = arith.constant 0.000000e+00 : f32
    %47 = vector.broadcast %cst_16 : f32 to vector<128x64xf32>
    %48 = arith.minimumf %44, %47 : vector<128x64xf32>
    %49 = math.exp %48 : vector<128x64xf32>
    %cst_17 = arith.constant 1.000000e+00 : f32
    %50 = vector.broadcast %cst_17 : f32 to vector<128x64xf32>
    %51 = arith.subf %49, %50 : vector<128x64xf32>
    %52 = arith.select %46, %44, %51 : vector<128x64xi1>, vector<128x64xf32>
    %c0_18 = arith.constant 0 : index
    %c0_19 = arith.constant 0 : index
    %53 = vector.load %arg4[%c0_18, %c0_19] : memref<64x10xf32, #tpu.memory_space<vmem>>, vector<64x10xf32>
    %cst_20 = arith.constant dense<0.000000e+00> : vector<128x10xf32>
    %54 = tpu.matmul %52, %53, %cst_20 {dimension_numbers = #tpu.dot_dimension_numbers<[1], [0], [0], [1], [0, 0, 1, 1], [], []>} : vector<128x64xf32>, vector<64x10xf32>, vector<128x10xf32> -> vector<128x10xf32>
    %55 = vector.extract_strided_slice %54 {offsets = [0, 0], sizes = [128, 8], strides = [1, 1]} : vector<128x10xf32> to vector<128x8xf32>
    %56 = vector.extract_strided_slice %54 {offsets = [0, 8], sizes = [128, 1], strides = [1, 1]} : vector<128x10xf32> to vector<128x1xf32>
    %57 = vector.extract_strided_slice %54 {offsets = [0, 8], sizes = [128, 2], strides = [1, 1]} : vector<128x10xf32> to vector<128x2xf32>
    %58 = tpu.transpose %57, [1, 0] : vector<128x2xf32> -> vector<2x128xf32>
    %59 = vector.extract_strided_slice %58 {offsets = [1, 0], sizes = [1, 128], strides = [1, 1]} : vector<2x128xf32> to vector<1x128xf32>
    %60 = vector.broadcast %56 : vector<128x1xf32> to vector<128x128xf32>
    %61 = vector.broadcast %59 : vector<1x128xf32> to vector<128x128xf32>
    %62 = arith.addf %60, %61 : vector<128x128xf32>
    %cst_21 = arith.constant 2.000000e-01 : f32
    %63 = vector.broadcast %cst_21 : f32 to vector<128x128xf32>
    %64 = arith.mulf %63, %62 : vector<128x128xf32>
    %65 = arith.maximumf %62, %64 : vector<128x128xf32>
    %66 = arith.addf %65, %0 : vector<128x128xf32>
    %cst_22 = arith.constant dense<0xFF800000> : vector<128xf32>
    %67 = vector.multi_reduction <maximumf>, %66, %cst_22 [1] : vector<128x128xf32> to vector<128xf32>
    %68 = vector.shape_cast %67 : vector<128xf32> to vector<128x1xf32>
    %69 = vector.broadcast %68 : vector<128x1xf32> to vector<128x128xf32>
    %70 = arith.subf %66, %69 : vector<128x128xf32>
    %71 = math.exp %70 : vector<128x128xf32>
    %cst_23 = arith.constant dense<0.000000e+00> : vector<128xf32>
    %72 = vector.multi_reduction <add>, %71, %cst_23 [1] : vector<128x128xf32> to vector<128xf32>
    %73 = vector.shape_cast %72 : vector<128xf32> to vector<128x1xf32>
    %74 = tpu.reciprocal %73 {approx = true} : vector<128x1xf32> -> vector<128x1xf32>
    %75 = arith.mulf %73, %74 : vector<128x1xf32>
    %cst_24 = arith.constant 2.000000e+00 : f32
    %76 = vector.broadcast %cst_24 : f32 to vector<128x1xf32>
    %77 = arith.subf %76, %75 : vector<128x1xf32>
    %78 = arith.mulf %74, %77 : vector<128x1xf32>
    %cst_25 = arith.constant dense<0.000000e+00> : vector<128x8xf32>
    %79 = tpu.matmul %71, %55, %cst_25 {dimension_numbers = #tpu.dot_dimension_numbers<[1], [0], [0], [1], [0, 0, 1, 1], [], []>} : vector<128x128xf32>, vector<128x8xf32>, vector<128x8xf32> -> vector<128x8xf32>
    %80 = vector.broadcast %78 : vector<128x1xf32> to vector<128x8xf32>
    %81 = arith.mulf %79, %80 : vector<128x8xf32>
    %c0_26 = arith.constant 0 : index
    %c0_27 = arith.constant 0 : index
    %82 = vector.load %arg5[%c0_26, %c0_27] : memref<1x8xf32, #tpu.memory_space<vmem>>, vector<1x8xf32>
    %83 = vector.broadcast %82 : vector<1x8xf32> to vector<128x8xf32>
    %84 = arith.addf %81, %83 : vector<128x8xf32>
    %cst_28 = arith.constant dense<0xFF800000> : vector<128xf32>
    %85 = vector.multi_reduction <maximumf>, %84, %cst_28 [1] : vector<128x8xf32> to vector<128xf32>
    %86 = vector.shape_cast %85 : vector<128xf32> to vector<128x1xf32>
    %87 = vector.broadcast %86 : vector<128x1xf32> to vector<128x8xf32>
    %88 = arith.subf %84, %87 : vector<128x8xf32>
    %89 = math.exp %88 : vector<128x8xf32>
    %cst_29 = arith.constant dense<0.000000e+00> : vector<128xf32>
    %90 = vector.multi_reduction <add>, %89, %cst_29 [1] : vector<128x8xf32> to vector<128xf32>
    %91 = vector.shape_cast %90 : vector<128xf32> to vector<128x1xf32>
    %92 = math.log %91 : vector<128x1xf32>
    %93 = arith.addf %92, %86 : vector<128x1xf32>
    %94 = vector.broadcast %93 : vector<128x1xf32> to vector<128x8xf32>
    %95 = arith.subf %84, %94 : vector<128x8xf32>
    %c0_30 = arith.constant 0 : index
    %c0_31 = arith.constant 0 : index
    %96 = vector.load %arg7[%c0_30, %c0_31] : memref<128x8xf32, #tpu.memory_space<vmem>>, vector<128x8xf32>
    tpu.vector_store %arg7[%c0_30, %c0_31], %95 {strides = array<i32>} : memref<128x8xf32, #tpu.memory_space<vmem>>, vector<128x8xf32>,
    return
  }
}

</mosaic_0001>

<llo_original>
// kernel: gat_forward.1
$region0: #{gat_forward.1}
  #allocation0 [shape = 'u32[]', space=smem, size = 0x4, offset = 0x4, fixed_abs, tag = 'smem constant byte address 0x4 - core index']
  #allocation1 [shape = 'u32[72,128]{1,0:T(1,128)}', space=vmem, size = 0x9000, scoped, tag = 'internal scratch']
  %s0 = inlined_call_operand.vmem [shape: f32[128,32], index: 0, kind: input, shape index: {}]
  %s1 = inlined_call_operand.vmem [shape: f32[32,80], index: 1, kind: input, shape index: {}]
  %s2 = inlined_call_operand.vmem [shape: f32[1,64], index: 2, kind: input, shape index: {}]
  %s3 = inlined_call_operand.vmem [shape: f32[8,64], index: 3, kind: input, shape index: {}]
  %s4 = inlined_call_operand.vmem [shape: f32[64,10], index: 4, kind: input, shape index: {}]
  %s5 = inlined_call_operand.vmem [shape: f32[1,8], index: 5, kind: input, shape index: {}]
  %s6 = inlined_call_operand.vmem [shape: f32[128,128], index: 6, kind: input, shape index: {}]
  %s7 = inlined_call_operand.vmem [shape: f32[128,8], index: 7, kind: output, shape index: {}]
  %s8 = sld [smem:[#allocation0]]
  $region38: #{gat_forward.1} parent=0
    _
  %s10 = ssub.s32 1, %s8
  %s11 = scalar_select 0, %s10, %s8
  // Predicated region
  $region2: #{gat_forward.1} parent=0 // pred_check
    _
  $region3: #{gat_forward.1} parent=0 // pred_check_branch
    %13 = sbr.rel (0) target = $region5
  $region4: #{gat_forward.1} parent=0 // pred_region
    _
  $region5: #{gat_forward.1} parent=0 // pred_fallthru
    _
  // Predicated region
  $region6: #{gat_forward.1} parent=0 // pred_check
    _
  $region7: #{gat_forward.1} parent=0 // pred_check_branch
    %15 = sbr.rel (0) target = $region9
  $region8: #{gat_forward.1} parent=0 // pred_region
    _
  $region9: #{gat_forward.1} parent=0 // pred_fallthru
    _
  // Predicated region
  $region10: #{gat_forward.1} parent=0 // pred_check
    _
  $region11: #{gat_forward.1} parent=0 // pred_check_branch
    %17 = sbr.rel (0) target = $region13
  $region12: #{gat_forward.1} parent=0 // pred_region
    _
  $region13: #{gat_forward.1} parent=0 // pred_fallthru
    _
  // Predicated region
  $region14: #{gat_forward.1} parent=0 // pred_check
    _
  $region15: #{gat_forward.1} parent=0 // pred_check_branch
    %19 = sbr.rel (0) target = $region17
  $region16: #{gat_forward.1} parent=0 // pred_region
    _
  $region17: #{gat_forward.1} parent=0 // pred_fallthru
    _
  // Predicated region
  $region18: #{gat_forward.1} parent=0 // pred_check
    _
  $region19: #{gat_forward.1} parent=0 // pred_check_branch
    %21 = sbr.rel (0) target = $region21
  $region20: #{gat_forward.1} parent=0 // pred_region
    _
  $region21: #{gat_forward.1} parent=0 // pred_fallthru
    _
  // Predicated region
  $region22: #{gat_forward.1} parent=0 // pred_check
    _
  $region23: #{gat_forward.1} parent=0 // pred_check_branch
    %23 = sbr.rel (0) target = $region25
  $region24: #{gat_forward.1} parent=0 // pred_region
    _
  $region25: #{gat_forward.1} parent=0 // pred_fallthru
    _
  // Predicated region
  $region26: #{gat_forward.1} parent=0 // pred_check
    _
  $region27: #{gat_forward.1} parent=0 // pred_check_branch
    %25 = sbr.rel (0) target = $region29
  $region28: #{gat_forward.1} parent=0 // pred_region
    _
  $region29: #{gat_forward.1} parent=0 // pred_fallthru
    _
  %v26 = vld [vmem:[%s6] sm:$0xff]
  %v27 = vld [vmem:[%s6 + $0x8] sm:$0xff]
  %v28 = vld [vmem:[%s6 + $0x10] sm:$0xff]
  %v29 = vld [vmem:[%s6 + $0x18] sm:$0xff]
  %v30 = vld [vmem:[%s6 + $0x20] sm:$0xff]
  %v31 = vld [vmem:[%s6 + $0x28] sm:$0xff]
  %v32 = vld [vmem:[%s6 + $0x30] sm:$0xff]
  %v33 = vld [vmem:[%s6 + $0x38] sm:$0xff]
  %v34 = vld [vmem:[%s6 + $0x40] sm:$0xff]
  %v35 = vld [vmem:[%s6 + $0x48] sm:$0xff]
  %v36 = vld [vmem:[%s6 + $0x50] sm:$0xff]
  %v37 = vld [vmem:[%s6 + $0x58] sm:$0xff]
  %v38 = vld [vmem:[%s6 + $0x60] sm:$0xff]
  %v39 = vld [vmem:[%s6 + $0x68] sm:$0xff]
  %v40 = vld [vmem:[%s6 + $0x70] sm:$0xff]
  %v41 = vld [vmem:[%s6 + $0x78] sm:$0xff]
  %v42 = vld [vmem:[%s0] sm:$0xff]
  %v43 = vld [vmem:[%s0 + $0x8] sm:$0xff]
  %v44 = vld [vmem:[%s0 + $0x10] sm:$0xff]
  %v45 = vld [vmem:[%s0 + $0x18] sm:$0xff]
  %v46 = vld [vmem:[%s0 + $0x20] sm:$0xff]
  %v47 = vld [vmem:[%s0 + $0x28] sm:$0xff]
  %v48 = vld [vmem:[%s0 + $0x30] sm:$0xff]
  %v49 = vld [vmem:[%s0 + $0x38] sm:$0xff]
  %v50 = vld [vmem:[%s0 + $0x40] sm:$0xff]
  %v51 = vld [vmem:[%s0 + $0x48] sm:$0xff]
  %v52 = vld [vmem:[%s0 + $0x50] sm:$0xff]
  %v53 = vld [vmem:[%s0 + $0x58] sm:$0xff]
  %v54 = vld [vmem:[%s0 + $0x60] sm:$0xff]
  %v55 = vld [vmem:[%s0 + $0x68] sm:$0xff]
  %v56 = vld [vmem:[%s0 + $0x70] sm:$0xff]
  %v57 = vld [vmem:[%s0 + $0x78] sm:$0xff]
  %v58 = vld [vmem:[%s1] sm:$0xff]
  %v59 = vld [vmem:[%s1 + $0x8] sm:$0xff]
  %v60 = vld [vmem:[%s1 + $0x10] sm:$0xff]
  %v61 = vld [vmem:[%s1 + $0x18] sm:$0xff]
  %vm62 = vcmask 261120
  %v64 = vsel %vm62, %v42, 0
  %v67 = vsel %vm62, %v43, 0
  %v70 = vsel %vm62, %v44, 0
  %v73 = vsel %vm62, %v45, 0
  %v76 = vsel %vm62, %v46, 0
  %v79 = vsel %vm62, %v47, 0
  %v82 = vsel %vm62, %v48, 0
  %v85 = vsel %vm62, %v49, 0
  %v88 = vsel %vm62, %v50, 0
  %v91 = vsel %vm62, %v51, 0
  %v94 = vsel %vm62, %v52, 0
  %v97 = vsel %vm62, %v53, 0
  %v100 = vsel %vm62, %v54, 0
  %v103 = vsel %vm62, %v55, 0
  %v106 = vsel %vm62, %v56, 0
  %v109 = vsel %vm62, %v57, 0
  %111 = vmatpush.msra.mxu0 0.0
  %112 = vmatpush.msra.mxu0 0.0
  %113 = vmatpush.msra.mxu0 0.0
  %114 = vmatpush.msra.mxu0 0.0
  %115 = vmatpush.msra.mxu0 0.0
  %116 = vmatpush.msra.mxu0 0.0
  %117 = vmatpush.msra.mxu0 0.0
  %118 = vmatpush.msra.mxu0 0.0
  %119 = vmatpush.msra.mxu0 0.0
  %120 = vmatpush.msra.mxu0 0.0
  %121 = vmatpush.msra.mxu0 0.0
  %122 = vmatpush.msra.mxu0 0.0
  %123 = vmatpush.msra.mxu0 %v61
  %124 = vmatpush.msra.mxu0 %v60
  %125 = vmatpush.msra.mxu0 %v59
  %126 = vmatpush.msra.mxu0 %v58
  %127 = vmatmul.f32.gmra.mxu0 %v64
  %v128 = vpop.f32.mrf.mxu0
  %v129 = vadd.f32 0.0, %v128
  %130 = vmatmul.f32.gmra.mxu0 %v67
  %v131 = vpop.f32.mrf.mxu0
  %v132 = vadd.f32 0.0, %v131
  %133 = vmatmul.f32.gmra.mxu0 %v70
  %v134 = vpop.f32.mrf.mxu0
  %v135 = vadd.f32 0.0, %v134
  %136 = vmatmul.f32.gmra.mxu0 %v73
  %v137 = vpop.f32.mrf.mxu0
  %v138 = vadd.f32 0.0, %v137
  %139 = vmatmul.f32.gmra.mxu0 %v76
  %v140 = vpop.f32.mrf.mxu0
  %v141 = vadd.f32 0.0, %v140
  %142 = vmatmul.f32.gmra.mxu0 %v79
  %v143 = vpop.f32.mrf.mxu0
  %v144 = vadd.f32 0.0, %v143
  %145 = vmatmul.f32.gmra.mxu0 %v82
  %v146 = vpop.f32.mrf.mxu0
  %v147 = vadd.f32 0.0, %v146
  %148 = vmatmul.f32.gmra.mxu0 %v85
  %v149 = vpop.f32.mrf.mxu0
  %v150 = vadd.f32 0.0, %v149
  %151 = vmatmul.f32.gmra.mxu0 %v88
  %v152 = vpop.f32.mrf.mxu0
  %v153 = vadd.f32 0.0, %v152
  %154 = vmatmul.f32.gmra.mxu0 %v91
  %v155 = vpop.f32.mrf.mxu0
  %v156 = vadd.f32 0.0, %v155
  %157 = vmatmul.f32.gmra.mxu0 %v94
  %v158 = vpop.f32.mrf.mxu0
  %v159 = vadd.f32 0.0, %v158
  %160 = vmatmul.f32.gmra.mxu0 %v97
  %v161 = vpop.f32.mrf.mxu0
  %v162 = vadd.f32 0.0, %v161
  %163 = vmatmul.f32.gmra.mxu0 %v100
  %v164 = vpop.f32.mrf.mxu0
  %v165 = vadd.f32 0.0, %v164
  %166 = vmatmul.f32.gmra.mxu0 %v103
  %v167 = vpop.f32.mrf.mxu0
  %v168 = vadd.f32 0.0, %v167
  %169 = vmatmul.f32.gmra.mxu0 %v106
  %v170 = vpop.f32.mrf.mxu0
  %v171 = vadd.f32 0.0, %v170
  %172 = vmatmul.f32.gmra.mxu0 %v109
  %v173 = vpop.f32.mrf.mxu0
  %v174 = vadd.f32 0.0, %v173
  %175 = vdwg.mxu0
  %192 = vrot.lane.b32.xlu0 %v129, 64
  %v193 = vpop.permute.xlu0 %192
  %194 = vrot.lane.b32.xlu0 %v132, 64
  %v195 = vpop.permute.xlu0 %194
  %196 = vrot.lane.b32.xlu0 %v135, 64
  %v197 = vpop.permute.xlu0 %196
  %198 = vrot.lane.b32.xlu0 %v138, 64
  %v199 = vpop.permute.xlu0 %198
  %200 = vrot.lane.b32.xlu0 %v141, 64
  %v201 = vpop.permute.xlu0 %200
  %202 = vrot.lane.b32.xlu0 %v144, 64
  %v203 = vpop.permute.xlu0 %202
  %204 = vrot.lane.b32.xlu0 %v147, 64
  %v205 = vpop.permute.xlu0 %204
  %206 = vrot.lane.b32.xlu0 %v150, 64
  %v207 = vpop.permute.xlu0 %206
  %208 = vrot.lane.b32.xlu0 %v153, 64
  %v209 = vpop.permute.xlu0 %208
  %210 = vrot.lane.b32.xlu0 %v156, 64
  %v211 = vpop.permute.xlu0 %210
  %212 = vrot.lane.b32.xlu0 %v159, 64
  %v213 = vpop.permute.xlu0 %212
  %214 = vrot.lane.b32.xlu0 %v162, 64
  %v215 = vpop.permute.xlu0 %214
  %216 = vrot.lane.b32.xlu0 %v165, 64
  %v217 = vpop.permute.xlu0 %216
  %218 = vrot.lane.b32.xlu0 %v168, 64
  %v219 = vpop.permute.xlu0 %218
  %220 = vrot.lane.b32.xlu0 %v171, 64
  %v221 = vpop.permute.xlu0 %220
  %222 = vrot.lane.b32.xlu0 %v174, 64
  %v223 = vpop.permute.xlu0 %222
  %240 = vxpose.xlu0.b32.start [1/16] %v193, 128
  %241 = vxpose.xlu0.b32.cont [2/16] %v195, 128
  %242 = vxpose.xlu0.b32.cont [3/16] %v197, 128
  %243 = vxpose.xlu0.b32.cont [4/16] %v199, 128
  %244 = vxpose.xlu0.b32.cont [5/16] %v201, 128
  %245 = vxpose.xlu0.b32.cont [6/16] %v203, 128
  %246 = vxpose.xlu0.b32.cont [7/16] %v205, 128
  %247 = vxpose.xlu0.b32.cont [8/16] %v207, 128
  %248 = vxpose.xlu0.b32.cont [9/16] %v209, 128
  %249 = vxpose.xlu0.b32.cont [10/16] %v211, 128
  %250 = vxpose.xlu0.b32.cont [11/16] %v213, 128
  %251 = vxpose.xlu0.b32.cont [12/16] %v215, 128
  %252 = vxpose.xlu0.b32.cont [13/16] %v217, 128
  %253 = vxpose.xlu0.b32.cont [14/16] %v219, 128
  %254 = vxpose.xlu0.b32.cont [15/16] %v221, 128
  %255 = vxpose.xlu0.b32.end [16/16] %v223, 128
  %v256 = vpop.trf.xlu0
  %v257 = vpop.trf.xlu0
  %v258 = vpop.trf.xlu0
  %v259 = vpop.trf.xlu0
  %v260 = vpop.trf.xlu0
  %v261 = vpop.trf.xlu0
  %v262 = vpop.trf.xlu0
  %v263 = vpop.trf.xlu0
  %v264 = vpop.trf.xlu0
  %v265 = vpop.trf.xlu0
  %v266 = vpop.trf.xlu0
  %v267 = vpop.trf.xlu0
  %v268 = vpop.trf.xlu0
  %v269 = vpop.trf.xlu0
  %v270 = vpop.trf.xlu0
  %v271 = vpop.trf.xlu0
  %v272 = vperm.slane %v257, 0
  %v273 = vlaneseq
  %v274 = vshrl.u32 %v273, 7
  %276 = vset.pattern.permute.xlu0 %v274
  %277 = vperm.xlu0 %276, %v272
  %v278 = vpop.permute.xlu0 %277
  %v279 = vlaneseq
  %v280 = vshrl.u32 %v279, 7
  %v281 = vadd.s32 %v280, 8
  %282 = vset.pattern.permute.xlu0 %v281
  %283 = vperm.xlu0 %282, %v272
  %v284 = vpop.permute.xlu0 %283
  %v285 = vlaneseq
  %v286 = vshrl.u32 %v285, 7
  %v287 = vadd.s32 %v286, 16
  %288 = vset.pattern.permute.xlu0 %v287
  %289 = vperm.xlu0 %288, %v272
  %v290 = vpop.permute.xlu0 %289
  %v291 = vlaneseq
  %v292 = vshrl.u32 %v291, 7
  %v293 = vadd.s32 %v292, 24
  %294 = vset.pattern.permute.xlu0 %v293
  %295 = vperm.xlu0 %294, %v272
  %v296 = vpop.permute.xlu0 %295
  %v297 = vlaneseq
  %v298 = vshrl.u32 %v297, 7
  %v299 = vadd.s32 %v298, 32
  %300 = vset.pattern.permute.xlu0 %v299
  %301 = vperm.xlu0 %300, %v272
  %v302 = vpop.permute.xlu0 %301
  %v303 = vlaneseq
  %v304 = vshrl.u32 %v303, 7
  %v305 = vadd.s32 %v304, 40
  %306 = vset.pattern.permute.xlu0 %v305
  %307 = vperm.xlu0 %306, %v272
  %v308 = vpop.permute.xlu0 %307
  %v309 = vlaneseq
  %v310 = vshrl.u32 %v309, 7
  %v311 = vadd.s32 %v310, 48
  %312 = vset.pattern.permute.xlu0 %v311
  %313 = vperm.xlu0 %312, %v272
  %v314 = vpop.permute.xlu0 %313
  %v315 = vlaneseq
  %v316 = vshrl.u32 %v315, 7
  %v317 = vadd.s32 %v316, 56
  %318 = vset.pattern.permute.xlu0 %v317
  %319 = vperm.xlu0 %318, %v272
  %v320 = vpop.permute.xlu0 %319
  %v321 = vlaneseq
  %v322 = vshrl.u32 %v321, 7
  %v323 = vadd.s32 %v322, 64
  %324 = vset.pattern.permute.xlu0 %v323
  %325 = vperm.xlu0 %324, %v272
  %v326 = vpop.permute.xlu0 %325
  %v327 = vlaneseq
  %v328 = vshrl.u32 %v327, 7
  %v329 = vadd.s32 %v328, 72
  %330 = vset.pattern.permute.xlu0 %v329
  %331 = vperm.xlu0 %330, %v272
  %v332 = vpop.permute.xlu0 %331
  %v333 = vlaneseq
  %v334 = vshrl.u32 %v333, 7
  %v335 = vadd.s32 %v334, 80
  %336 = vset.pattern.permute.xlu0 %v335
  %337 = vperm.xlu0 %336, %v272
  %v338 = vpop.permute.xlu0 %337
  %v339 = vlaneseq
  %v340 = vshrl.u32 %v339, 7
  %v341 = vadd.s32 %v340, 88
  %342 = vset.pattern.permute.xlu0 %v341
  %343 = vperm.xlu0 %342, %v272
  %v344 = vpop.permute.xlu0 %343
  %v345 = vlaneseq
  %v346 = vshrl.u32 %v345, 7
  %v347 = vadd.s32 %v346, 96
  %348 = vset.pattern.permute.xlu0 %v347
  %349 = vperm.xlu0 %348, %v272
  %v350 = vpop.permute.xlu0 %349
  %v351 = vlaneseq
  %v352 = vshrl.u32 %v351, 7
  %v353 = vadd.s32 %v352, 104
  %354 = vset.pattern.permute.xlu0 %v353
  %355 = vperm.xlu0 %354, %v272
  %v356 = vpop.permute.xlu0 %355
  %v357 = vlaneseq
  %v358 = vshrl.u32 %v357, 7
  %v359 = vadd.s32 %v358, 112
  %360 = vset.pattern.permute.xlu0 %v359
  %361 = vperm.xlu0 %360, %v272
  %v362 = vpop.permute.xlu0 %361
  %v363 = vlaneseq
  %v364 = vshrl.u32 %v363, 7
  %v365 = vadd.s32 %v364, 120
  %366 = vset.pattern.permute.xlu0 %v365
  %367 = vperm.xlu0 %366, %v272
  %v368 = vpop.permute.xlu0 %367
  %v369 = vperm.slane %v257, 1
  %v370 = vlaneseq
  %v371 = vshrl.u32 %v370, 7
  %373 = vset.pattern.permute.xlu0 %v371
  %374 = vperm.xlu0 %373, %v369
  %v375 = vpop.permute.xlu0 %374
  %v376 = vlaneseq
  %v377 = vshrl.u32 %v376, 7
  %v378 = vadd.s32 %v377, 8
  %379 = vset.pattern.permute.xlu0 %v378
  %380 = vperm.xlu0 %379, %v369
  %v381 = vpop.permute.xlu0 %380
  %v382 = vlaneseq
  %v383 = vshrl.u32 %v382, 7
  %v384 = vadd.s32 %v383, 16
  %385 = vset.pattern.permute.xlu0 %v384
  %386 = vperm.xlu0 %385, %v369
  %v387 = vpop.permute.xlu0 %386
  %v388 = vlaneseq
  %v389 = vshrl.u32 %v388, 7
  %v390 = vadd.s32 %v389, 24
  %391 = vset.pattern.permute.xlu0 %v390
  %392 = vperm.xlu0 %391, %v369
  %v393 = vpop.permute.xlu0 %392
  %v394 = vlaneseq
  %v395 = vshrl.u32 %v394, 7
  %v396 = vadd.s32 %v395, 32
  %397 = vset.pattern.permute.xlu0 %v396
  %398 = vperm.xlu0 %397, %v369
  %v399 = vpop.permute.xlu0 %398
  %v400 = vlaneseq
  %v401 = vshrl.u32 %v400, 7
  %v402 = vadd.s32 %v401, 40
  %403 = vset.pattern.permute.xlu0 %v402
  %404 = vperm.xlu0 %403, %v369
  %v405 = vpop.permute.xlu0 %404
  %v406 = vlaneseq
  %v407 = vshrl.u32 %v406, 7
  %v408 = vadd.s32 %v407, 48
  %409 = vset.pattern.permute.xlu0 %v408
  %410 = vperm.xlu0 %409, %v369
  %v411 = vpop.permute.xlu0 %410
  %v412 = vlaneseq
  %v413 = vshrl.u32 %v412, 7
  %v414 = vadd.s32 %v413, 56
  %415 = vset.pattern.permute.xlu0 %v414
  %416 = vperm.xlu0 %415, %v369
  %v417 = vpop.permute.xlu0 %416
  %v418 = vlaneseq
  %v419 = vshrl.u32 %v418, 7
  %v420 = vadd.s32 %v419, 64
  %421 = vset.pattern.permute.xlu0 %v420
  %422 = vperm.xlu0 %421, %v369
  %v423 = vpop.permute.xlu0 %422
  %v424 = vlaneseq
  %v425 = vshrl.u32 %v424, 7
  %v426 = vadd.s32 %v425, 72
  %427 = vset.pattern.permute.xlu0 %v426
  %428 = vperm.xlu0 %427, %v369
  %v429 = vpop.permute.xlu0 %428
  %v430 = vlaneseq
  %v431 = vshrl.u32 %v430, 7
  %v432 = vadd.s32 %v431, 80
  %433 = vset.pattern.permute.xlu0 %v432
  %434 = vperm.xlu0 %433, %v369
  %v435 = vpop.permute.xlu0 %434
  %v436 = vlaneseq
  %v437 = vshrl.u32 %v436, 7
  %v438 = vadd.s32 %v437, 88
  %439 = vset.pattern.permute.xlu0 %v438
  %440 = vperm.xlu0 %439, %v369
  %v441 = vpop.permute.xlu0 %440
  %v442 = vlaneseq
  %v443 = vshrl.u32 %v442, 7
  %v444 = vadd.s32 %v443, 96
  %445 = vset.pattern.permute.xlu0 %v444
  %446 = vperm.xlu0 %445, %v369
  %v447 = vpop.permute.xlu0 %446
  %v448 = vlaneseq
  %v449 = vshrl.u32 %v448, 7
  %v450 = vadd.s32 %v449, 104
  %451 = vset.pattern.permute.xlu0 %v450
  %452 = vperm.xlu0 %451, %v369
  %v453 = vpop.permute.xlu0 %452
  %v454 = vlaneseq
  %v455 = vshrl.u32 %v454, 7
  %v456 = vadd.s32 %v455, 112
  %457 = vset.pattern.permute.xlu0 %v456
  %458 = vperm.xlu0 %457, %v369
  %v459 = vpop.permute.xlu0 %458
  %v460 = vlaneseq
  %v461 = vshrl.u32 %v460, 7
  %v462 = vadd.s32 %v461, 120
  %463 = vset.pattern.permute.xlu0 %v462
  %464 = vperm.xlu0 %463, %v369
  %v465 = vpop.permute.xlu0 %464
  %v466 = vperm.slane %v257, 2
  %v467 = vlaneseq
  %v468 = vshrl.u32 %v467, 7
  %470 = vset.pattern.permute.xlu0 %v468
  %471 = vperm.xlu0 %470, %v466
  %v472 = vpop.permute.xlu0 %471
  %v473 = vlaneseq
  %v474 = vshrl.u32 %v473, 7
  %v475 = vadd.s32 %v474, 8
  %476 = vset.pattern.permute.xlu0 %v475
  %477 = vperm.xlu0 %476, %v466
  %v478 = vpop.permute.xlu0 %477
  %v479 = vlaneseq
  %v480 = vshrl.u32 %v479, 7
  %v481 = vadd.s32 %v480, 16
  %482 = vset.pattern.permute.xlu0 %v481
  %483 = vperm.xlu0 %482, %v466
  %v484 = vpop.permute.xlu0 %483
  %v485 = vlaneseq
  %v486 = vshrl.u32 %v485, 7
  %v487 = vadd.s32 %v486, 24
  %488 = vset.pattern.permute.xlu0 %v487
  %489 = vperm.xlu0 %488, %v466
  %v490 = vpop.permute.xlu0 %489
  %v491 = vlaneseq
  %v492 = vshrl.u32 %v491, 7
  %v493 = vadd.s32 %v492, 32
  %494 = vset.pattern.permute.xlu0 %v493
  %495 = vperm.xlu0 %494, %v466
  %v496 = vpop.permute.xlu0 %495
  %v497 = vlaneseq
  %v498 = vshrl.u32 %v497, 7
  %v499 = vadd.s32 %v498, 40
  %500 = vset.pattern.permute.xlu0 %v499
  %501 = vperm.xlu0 %500, %v466
  %v502 = vpop.permute.xlu0 %501
  %v503 = vlaneseq
  %v504 = vshrl.u32 %v503, 7
  %v505 = vadd.s32 %v504, 48
  %506 = vset.pattern.permute.xlu0 %v505
  %507 = vperm.xlu0 %506, %v466
  %v508 = vpop.permute.xlu0 %507
  %v509 = vlaneseq
  %v510 = vshrl.u32 %v509, 7
  %v511 = vadd.s32 %v510, 56
  %512 = vset.pattern.permute.xlu0 %v511
  %513 = vperm.xlu0 %512, %v466
  %v514 = vpop.permute.xlu0 %513
  %v515 = vlaneseq
  %v516 = vshrl.u32 %v515, 7
  %v517 = vadd.s32 %v516, 64
  %518 = vset.pattern.permute.xlu0 %v517
  %519 = vperm.xlu0 %518, %v466
  %v520 = vpop.permute.xlu0 %519
  %v521 = vlaneseq
  %v522 = vshrl.u32 %v521, 7
  %v523 = vadd.s32 %v522, 72
  %524 = vset.pattern.permute.xlu0 %v523
  %525 = vperm.xlu0 %524, %v466
  %v526 = vpop.permute.xlu0 %525
  %v527 = vlaneseq
  %v528 = vshrl.u32 %v527, 7
  %v529 = vadd.s32 %v528, 80
  %530 = vset.pattern.permute.xlu0 %v529
  %531 = vperm.xlu0 %530, %v466
  %v532 = vpop.permute.xlu0 %531
  %v533 = vlaneseq
  %v534 = vshrl.u32 %v533, 7
  %v535 = vadd.s32 %v534, 88
  %536 = vset.pattern.permute.xlu0 %v535
  %537 = vperm.xlu0 %536, %v466
  %v538 = vpop.permute.xlu0 %537
  %v539 = vlaneseq
  %v540 = vshrl.u32 %v539, 7
  %v541 = vadd.s32 %v540, 96
  %542 = vset.pattern.permute.xlu0 %v541
  %543 = vperm.xlu0 %542, %v466
  %v544 = vpop.permute.xlu0 %543
  %v545 = vlaneseq
  %v546 = vshrl.u32 %v545, 7
  %v547 = vadd.s32 %v546, 104
  %548 = vset.pattern.permute.xlu0 %v547
  %549 = vperm.xlu0 %548, %v466
  %v550 = vpop.permute.xlu0 %549
  %v551 = vlaneseq
  %v552 = vshrl.u32 %v551, 7
  %v553 = vadd.s32 %v552, 112
  %554 = vset.pattern.permute.xlu0 %v553
  %555 = vperm.xlu0 %554, %v466
  %v556 = vpop.permute.xlu0 %555
  %v557 = vlaneseq
  %v558 = vshrl.u32 %v557, 7
  %v559 = vadd.s32 %v558, 120
  %560 = vset.pattern.permute.xlu0 %v559
  %561 = vperm.xlu0 %560, %v466
  %v562 = vpop.permute.xlu0 %561
  %v563 = vperm.slane %v257, 3
  %v564 = vlaneseq
  %v565 = vshrl.u32 %v564, 7
  %567 = vset.pattern.permute.xlu0 %v565
  %568 = vperm.xlu0 %567, %v563
  %v569 = vpop.permute.xlu0 %568
  %v570 = vlaneseq
  %v571 = vshrl.u32 %v570, 7
  %v572 = vadd.s32 %v571, 8
  %573 = vset.pattern.permute.xlu0 %v572
  %574 = vperm.xlu0 %573, %v563
  %v575 = vpop.permute.xlu0 %574
  %v576 = vlaneseq
  %v577 = vshrl.u32 %v576, 7
  %v578 = vadd.s32 %v577, 16
  %579 = vset.pattern.permute.xlu0 %v578
  %580 = vperm.xlu0 %579, %v563
  %v581 = vpop.permute.xlu0 %580
  %v582 = vlaneseq
  %v583 = vshrl.u32 %v582, 7
  %v584 = vadd.s32 %v583, 24
  %585 = vset.pattern.permute.xlu0 %v584
  %586 = vperm.xlu0 %585, %v563
  %v587 = vpop.permute.xlu0 %586
  %v588 = vlaneseq
  %v589 = vshrl.u32 %v588, 7
  %v590 = vadd.s32 %v589, 32
  %591 = vset.pattern.permute.xlu0 %v590
  %592 = vperm.xlu0 %591, %v563
  %v593 = vpop.permute.xlu0 %592
  %v594 = vlaneseq
  %v595 = vshrl.u32 %v594, 7
  %v596 = vadd.s32 %v595, 40
  %597 = vset.pattern.permute.xlu0 %v596
  %598 = vperm.xlu0 %597, %v563
  %v599 = vpop.permute.xlu0 %598
  %v600 = vlaneseq
  %v601 = vshrl.u32 %v600, 7
  %v602 = vadd.s32 %v601, 48
  %603 = vset.pattern.permute.xlu0 %v602
  %604 = vperm.xlu0 %603, %v563
  %v605 = vpop.permute.xlu0 %604
  %v606 = vlaneseq
  %v607 = vshrl.u32 %v606, 7
  %v608 = vadd.s32 %v607, 56
  %609 = vset.pattern.permute.xlu0 %v608
  %610 = vperm.xlu0 %609, %v563
  %v611 = vpop.permute.xlu0 %610
  %v612 = vlaneseq
  %v613 = vshrl.u32 %v612, 7
  %v614 = vadd.s32 %v613, 64
  %615 = vset.pattern.permute.xlu0 %v614
  %616 = vperm.xlu0 %615, %v563
  %v617 = vpop.permute.xlu0 %616
  %v618 = vlaneseq
  %v619 = vshrl.u32 %v618, 7
  %v620 = vadd.s32 %v619, 72
  %621 = vset.pattern.permute.xlu0 %v620
  %622 = vperm.xlu0 %621, %v563
  %v623 = vpop.permute.xlu0 %622
  %v624 = vlaneseq
  %v625 = vshrl.u32 %v624, 7
  %v626 = vadd.s32 %v625, 80
  %627 = vset.pattern.permute.xlu0 %v626
  %628 = vperm.xlu0 %627, %v563
  %v629 = vpop.permute.xlu0 %628
  %v630 = vlaneseq
  %v631 = vshrl.u32 %v630, 7
  %v632 = vadd.s32 %v631, 88
  %633 = vset.pattern.permute.xlu0 %v632
  %634 = vperm.xlu0 %633, %v563
  %v635 = vpop.permute.xlu0 %634
  %v636 = vlaneseq
  %v637 = vshrl.u32 %v636, 7
  %v638 = vadd.s32 %v637, 96
  %639 = vset.pattern.permute.xlu0 %v638
  %640 = vperm.xlu0 %639, %v563
  %v641 = vpop.permute.xlu0 %640
  %v642 = vlaneseq
  %v643 = vshrl.u32 %v642, 7
  %v644 = vadd.s32 %v643, 104
  %645 = vset.pattern.permute.xlu0 %v644
  %646 = vperm.xlu0 %645, %v563
  %v647 = vpop.permute.xlu0 %646
  %v648 = vlaneseq
  %v649 = vshrl.u32 %v648, 7
  %v650 = vadd.s32 %v649, 112
  %651 = vset.pattern.permute.xlu0 %v650
  %652 = vperm.xlu0 %651, %v563
  %v653 = vpop.permute.xlu0 %652
  %v654 = vlaneseq
  %v655 = vshrl.u32 %v654, 7
  %v656 = vadd.s32 %v655, 120
  %657 = vset.pattern.permute.xlu0 %v656
  %658 = vperm.xlu0 %657, %v563
  %v659 = vpop.permute.xlu0 %658
  %v660 = vperm.slane %v257, 4
  %v661 = vlaneseq
  %v662 = vshrl.u32 %v661, 7
  %664 = vset.pattern.permute.xlu0 %v662
  %665 = vperm.xlu0 %664, %v660
  %v666 = vpop.permute.xlu0 %665
  %v667 = vlaneseq
  %v668 = vshrl.u32 %v667, 7
  %v669 = vadd.s32 %v668, 8
  %670 = vset.pattern.permute.xlu0 %v669
  %671 = vperm.xlu0 %670, %v660
  %v672 = vpop.permute.xlu0 %671
  %v673 = vlaneseq
  %v674 = vshrl.u32 %v673, 7
  %v675 = vadd.s32 %v674, 16
  %676 = vset.pattern.permute.xlu0 %v675
  %677 = vperm.xlu0 %676, %v660
  %v678 = vpop.permute.xlu0 %677
  %v679 = vlaneseq
  %v680 = vshrl.u32 %v679, 7
  %v681 = vadd.s32 %v680, 24
  %682 = vset.pattern.permute.xlu0 %v681
  %683 = vperm.xlu0 %682, %v660
  %v684 = vpop.permute.xlu0 %683
  %v685 = vlaneseq
  %v686 = vshrl.u32 %v685, 7
  %v687 = vadd.s32 %v686, 32
  %688 = vset.pattern.permute.xlu0 %v687
  %689 = vperm.xlu0 %688, %v660
  %v690 = vpop.permute.xlu0 %689
  %v691 = vlaneseq
  %v692 = vshrl.u32 %v691, 7
  %v693 = vadd.s32 %v692, 40
  %694 = vset.pattern.permute.xlu0 %v693
  %695 = vperm.xlu0 %694, %v660
  %v696 = vpop.permute.xlu0 %695
  %v697 = vlaneseq
  %v698 = vshrl.u32 %v697, 7
  %v699 = vadd.s32 %v698, 48
  %700 = vset.pattern.permute.xlu0 %v699
  %701 = vperm.xlu0 %700, %v660
  %v702 = vpop.permute.xlu0 %701
  %v703 = vlaneseq
  %v704 = vshrl.u32 %v703, 7
  %v705 = vadd.s32 %v704, 56
  %706 = vset.pattern.permute.xlu0 %v705
  %707 = vperm.xlu0 %706, %v660
  %v708 = vpop.permute.xlu0 %707
  %v709 = vlaneseq
  %v710 = vshrl.u32 %v709, 7
  %v711 = vadd.s32 %v710, 64
  %712 = vset.pattern.permute.xlu0 %v711
  %713 = vperm.xlu0 %712, %v660
  %v714 = vpop.permute.xlu0 %713
  %v715 = vlaneseq
  %v716 = vshrl.u32 %v715, 7
  %v717 = vadd.s32 %v716, 72
  %718 = vset.pattern.permute.xlu0 %v717
  %719 = vperm.xlu0 %718, %v660
  %v720 = vpop.permute.xlu0 %719
  %v721 = vlaneseq
  %v722 = vshrl.u32 %v721, 7
  %v723 = vadd.s32 %v722, 80
  %724 = vset.pattern.permute.xlu0 %v723
  %725 = vperm.xlu0 %724, %v660
  %v726 = vpop.permute.xlu0 %725
  %v727 = vlaneseq
  %v728 = vshrl.u32 %v727, 7
  %v729 = vadd.s32 %v728, 88
  %730 = vset.pattern.permute.xlu0 %v729
  %731 = vperm.xlu0 %730, %v660
  %v732 = vpop.permute.xlu0 %731
  %v733 = vlaneseq
  %v734 = vshrl.u32 %v733, 7
  %v735 = vadd.s32 %v734, 96
  %736 = vset.pattern.permute.xlu0 %v735
  %737 = vperm.xlu0 %736, %v660
  %v738 = vpop.permute.xlu0 %737
  %v739 = vlaneseq
  %v740 = vshrl.u32 %v739, 7
  %v741 = vadd.s32 %v740, 104
  %742 = vset.pattern.permute.xlu0 %v741
  %743 = vperm.xlu0 %742, %v660
  %v744 = vpop.permute.xlu0 %743
  %v745 = vlaneseq
  %v746 = vshrl.u32 %v745, 7
  %v747 = vadd.s32 %v746, 112
  %748 = vset.pattern.permute.xlu0 %v747
  %749 = vperm.xlu0 %748, %v660
  %v750 = vpop.permute.xlu0 %749
  %v751 = vlaneseq
  %v752 = vshrl.u32 %v751, 7
  %v753 = vadd.s32 %v752, 120
  %754 = vset.pattern.permute.xlu0 %v753
  %755 = vperm.xlu0 %754, %v660
  %v756 = vpop.permute.xlu0 %755
  %v757 = vperm.slane %v257, 5
  %v758 = vlaneseq
  %v759 = vshrl.u32 %v758, 7
  %761 = vset.pattern.permute.xlu0 %v759
  %762 = vperm.xlu0 %761, %v757
  %v763 = vpop.permute.xlu0 %762
  %v764 = vlaneseq
  %v765 = vshrl.u32 %v764, 7
  %v766 = vadd.s32 %v765, 8
  %767 = vset.pattern.permute.xlu0 %v766
  %768 = vperm.xlu0 %767, %v757
  %v769 = vpop.permute.xlu0 %768
  %v770 = vlaneseq
  %v771 = vshrl.u32 %v770, 7
  %v772 = vadd.s32 %v771, 16
  %773 = vset.pattern.permute.xlu0 %v772
  %774 = vperm.xlu0 %773, %v757
  %v775 = vpop.permute.xlu0 %774
  %v776 = vlaneseq
  %v777 = vshrl.u32 %v776, 7
  %v778 = vadd.s32 %v777, 24
  %779 = vset.pattern.permute.xlu0 %v778
  %780 = vperm.xlu0 %779, %v757
  %v781 = vpop.permute.xlu0 %780
  %v782 = vlaneseq
  %v783 = vshrl.u32 %v782, 7
  %v784 = vadd.s32 %v783, 32
  %785 = vset.pattern.permute.xlu0 %v784
  %786 = vperm.xlu0 %785, %v757
  %v787 = vpop.permute.xlu0 %786
  %v788 = vlaneseq
  %v789 = vshrl.u32 %v788, 7
  %v790 = vadd.s32 %v789, 40
  %791 = vset.pattern.permute.xlu0 %v790
  %792 = vperm.xlu0 %791, %v757
  %v793 = vpop.permute.xlu0 %792
  %v794 = vlaneseq
  %v795 = vshrl.u32 %v794, 7
  %v796 = vadd.s32 %v795, 48
  %797 = vset.pattern.permute.xlu0 %v796
  %798 = vperm.xlu0 %797, %v757
  %v799 = vpop.permute.xlu0 %798
  %v800 = vlaneseq
  %v801 = vshrl.u32 %v800, 7
  %v802 = vadd.s32 %v801, 56
  %803 = vset.pattern.permute.xlu0 %v802
  %804 = vperm.xlu0 %803, %v757
  %v805 = vpop.permute.xlu0 %804
  %v806 = vlaneseq
  %v807 = vshrl.u32 %v806, 7
  %v808 = vadd.s32 %v807, 64
  %809 = vset.pattern.permute.xlu0 %v808
  %810 = vperm.xlu0 %809, %v757
  %v811 = vpop.permute.xlu0 %810
  %v812 = vlaneseq
  %v813 = vshrl.u32 %v812, 7
  %v814 = vadd.s32 %v813, 72
  %815 = vset.pattern.permute.xlu0 %v814
  %816 = vperm.xlu0 %815, %v757
  %v817 = vpop.permute.xlu0 %816
  %v818 = vlaneseq
  %v819 = vshrl.u32 %v818, 7
  %v820 = vadd.s32 %v819, 80
  %821 = vset.pattern.permute.xlu0 %v820
  %822 = vperm.xlu0 %821, %v757
  %v823 = vpop.permute.xlu0 %822
  %v824 = vlaneseq
  %v825 = vshrl.u32 %v824, 7
  %v826 = vadd.s32 %v825, 88
  %827 = vset.pattern.permute.xlu0 %v826
  %828 = vperm.xlu0 %827, %v757
  %v829 = vpop.permute.xlu0 %828
  %v830 = vlaneseq
  %v831 = vshrl.u32 %v830, 7
  %v832 = vadd.s32 %v831, 96
  %833 = vset.pattern.permute.xlu0 %v832
  %834 = vperm.xlu0 %833, %v757
  %v835 = vpop.permute.xlu0 %834
  %v836 = vlaneseq
  %v837 = vshrl.u32 %v836, 7
  %v838 = vadd.s32 %v837, 104
  %839 = vset.pattern.permute.xlu0 %v838
  %840 = vperm.xlu0 %839, %v757
  %v841 = vpop.permute.xlu0 %840
  %v842 = vlaneseq
  %v843 = vshrl.u32 %v842, 7
  %v844 = vadd.s32 %v843, 112
  %845 = vset.pattern.permute.xlu0 %v844
  %846 = vperm.xlu0 %845, %v757
  %v847 = vpop.permute.xlu0 %846
  %v848 = vlaneseq
  %v849 = vshrl.u32 %v848, 7
  %v850 = vadd.s32 %v849, 120
  %851 = vset.pattern.permute.xlu0 %v850
  %852 = vperm.xlu0 %851, %v757
  %v853 = vpop.permute.xlu0 %852
  %v854 = vperm.slane %v257, 6
  %v855 = vlaneseq
  %v856 = vshrl.u32 %v855, 7
  %858 = vset.pattern.permute.xlu0 %v856
  %859 = vperm.xlu0 %858, %v854
  %v860 = vpop.permute.xlu0 %859
  %v861 = vlaneseq
  %v862 = vshrl.u32 %v861, 7
  %v863 = vadd.s32 %v862, 8
  %864 = vset.pattern.permute.xlu0 %v863
  %865 = vperm.xlu0 %864, %v854
  %v866 = vpop.permute.xlu0 %865
  %v867 = vlaneseq
  %v868 = vshrl.u32 %v867, 7
  %v869 = vadd.s32 %v868, 16
  %870 = vset.pattern.permute.xlu0 %v869
  %871 = vperm.xlu0 %870, %v854
  %v872 = vpop.permute.xlu0 %871
  %v873 = vlaneseq
  %v874 = vshrl.u32 %v873, 7
  %v875 = vadd.s32 %v874, 24
  %876 = vset.pattern.permute.xlu0 %v875
  %877 = vperm.xlu0 %876, %v854
  %v878 = vpop.permute.xlu0 %877
  %v879 = vlaneseq
  %v880 = vshrl.u32 %v879, 7
  %v881 = vadd.s32 %v880, 32
  %882 = vset.pattern.permute.xlu0 %v881
  %883 = vperm.xlu0 %882, %v854
  %v884 = vpop.permute.xlu0 %883
  %v885 = vlaneseq
  %v886 = vshrl.u32 %v885, 7
  %v887 = vadd.s32 %v886, 40
  %888 = vset.pattern.permute.xlu0 %v887
  %889 = vperm.xlu0 %888, %v854
  %v890 = vpop.permute.xlu0 %889
  %v891 = vlaneseq
  %v892 = vshrl.u32 %v891, 7
  %v893 = vadd.s32 %v892, 48
  %894 = vset.pattern.permute.xlu0 %v893
  %895 = vperm.xlu0 %894, %v854
  %v896 = vpop.permute.xlu0 %895
  %v897 = vlaneseq
  %v898 = vshrl.u32 %v897, 7
  %v899 = vadd.s32 %v898, 56
  %900 = vset.pattern.permute.xlu0 %v899
  %901 = vperm.xlu0 %900, %v854
  %v902 = vpop.permute.xlu0 %901
  %v903 = vlaneseq
  %v904 = vshrl.u32 %v903, 7
  %v905 = vadd.s32 %v904, 64
  %906 = vset.pattern.permute.xlu0 %v905
  %907 = vperm.xlu0 %906, %v854
  %v908 = vpop.permute.xlu0 %907
  %v909 = vlaneseq
  %v910 = vshrl.u32 %v909, 7
  %v911 = vadd.s32 %v910, 72
  %912 = vset.pattern.permute.xlu0 %v911
  %913 = vperm.xlu0 %912, %v854
  %v914 = vpop.permute.xlu0 %913
  %v915 = vlaneseq
  %v916 = vshrl.u32 %v915, 7
  %v917 = vadd.s32 %v916, 80
  %918 = vset.pattern.permute.xlu0 %v917
  %919 = vperm.xlu0 %918, %v854
  %v920 = vpop.permute.xlu0 %919
  %v921 = vlaneseq
  %v922 = vshrl.u32 %v921, 7
  %v923 = vadd.s32 %v922, 88
  %924 = vset.pattern.permute.xlu0 %v923
  %925 = vperm.xlu0 %924, %v854
  %v926 = vpop.permute.xlu0 %925
  %v927 = vlaneseq
  %v928 = vshrl.u32 %v927, 7
  %v929 = vadd.s32 %v928, 96
  %930 = vset.pattern.permute.xlu0 %v929
  %931 = vperm.xlu0 %930, %v854
  %v932 = vpop.permute.xlu0 %931
  %v933 = vlaneseq
  %v934 = vshrl.u32 %v933, 7
  %v935 = vadd.s32 %v934, 104
  %936 = vset.pattern.permute.xlu0 %v935
  %937 = vperm.xlu0 %936, %v854
  %v938 = vpop.permute.xlu0 %937
  %v939 = vlaneseq
  %v940 = vshrl.u32 %v939, 7
  %v941 = vadd.s32 %v940, 112
  %942 = vset.pattern.permute.xlu0 %v941
  %943 = vperm.xlu0 %942, %v854
  %v944 = vpop.permute.xlu0 %943
  %v945 = vlaneseq
  %v946 = vshrl.u32 %v945, 7
  %v947 = vadd.s32 %v946, 120
  %948 = vset.pattern.permute.xlu0 %v947
  %949 = vperm.xlu0 %948, %v854
  %v950 = vpop.permute.xlu0 %949
  %v951 = vperm.slane %v257, 7
  %v952 = vlaneseq
  %v953 = vshrl.u32 %v952, 7
  %955 = vset.pattern.permute.xlu0 %v953
  %956 = vperm.xlu0 %955, %v951
  %v957 = vpop.permute.xlu0 %956
  %v958 = vlaneseq
  %v959 = vshrl.u32 %v958, 7
  %v960 = vadd.s32 %v959, 8
  %961 = vset.pattern.permute.xlu0 %v960
  %962 = vperm.xlu0 %961, %v951
  %v963 = vpop.permute.xlu0 %962
  %v964 = vlaneseq
  %v965 = vshrl.u32 %v964, 7
  %v966 = vadd.s32 %v965, 16
  %967 = vset.pattern.permute.xlu0 %v966
  %968 = vperm.xlu0 %967, %v951
  %v969 = vpop.permute.xlu0 %968
  %v970 = vlaneseq
  %v971 = vshrl.u32 %v970, 7
  %v972 = vadd.s32 %v971, 24
  %973 = vset.pattern.permute.xlu0 %v972
  %974 = vperm.xlu0 %973, %v951
  %v975 = vpop.permute.xlu0 %974
  %v976 = vlaneseq
  %v977 = vshrl.u32 %v976, 7
  %v978 = vadd.s32 %v977, 32
  %979 = vset.pattern.permute.xlu0 %v978
  %980 = vperm.xlu0 %979, %v951
  %v981 = vpop.permute.xlu0 %980
  %v982 = vlaneseq
  %v983 = vshrl.u32 %v982, 7
  %v984 = vadd.s32 %v983, 40
  %985 = vset.pattern.permute.xlu0 %v984
  %986 = vperm.xlu0 %985, %v951
  %v987 = vpop.permute.xlu0 %986
  %v988 = vlaneseq
  %v989 = vshrl.u32 %v988, 7
  %v990 = vadd.s32 %v989, 48
  %991 = vset.pattern.permute.xlu0 %v990
  %992 = vperm.xlu0 %991, %v951
  %v993 = vpop.permute.xlu0 %992
  %v994 = vlaneseq
  %v995 = vshrl.u32 %v994, 7
  %v996 = vadd.s32 %v995, 56
  %997 = vset.pattern.permute.xlu0 %v996
  %998 = vperm.xlu0 %997, %v951
  %v999 = vpop.permute.xlu0 %998
  %v1000 = vlaneseq
  %v1001 = vshrl.u32 %v1000, 7
  %v1002 = vadd.s32 %v1001, 64
  %1003 = vset.pattern.permute.xlu0 %v1002
  %1004 = vperm.xlu0 %1003, %v951
  %v1005 = vpop.permute.xlu0 %1004
  %v1006 = vlaneseq
  %v1007 = vshrl.u32 %v1006, 7
  %v1008 = vadd.s32 %v1007, 72
  %1009 = vset.pattern.permute.xlu0 %v1008
  %1010 = vperm.xlu0 %1009, %v951
  %v1011 = vpop.permute.xlu0 %1010
  %v1012 = vlaneseq
  %v1013 = vshrl.u32 %v1012, 7
  %v1014 = vadd.s32 %v1013, 80
  %1015 = vset.pattern.permute.xlu0 %v1014
  %1016 = vperm.xlu0 %1015, %v951
  %v1017 = vpop.permute.xlu0 %1016
  %v1018 = vlaneseq
  %v1019 = vshrl.u32 %v1018, 7
  %v1020 = vadd.s32 %v1019, 88
  %1021 = vset.pattern.permute.xlu0 %v1020
  %1022 = vperm.xlu0 %1021, %v951
  %v1023 = vpop.permute.xlu0 %1022
  %v1024 = vlaneseq
  %v1025 = vshrl.u32 %v1024, 7
  %v1026 = vadd.s32 %v1025, 96
  %1027 = vset.pattern.permute.xlu0 %v1026
  %1028 = vperm.xlu0 %1027, %v951
  %v1029 = vpop.permute.xlu0 %1028
  %v1030 = vlaneseq
  %v1031 = vshrl.u32 %v1030, 7
  %v1032 = vadd.s32 %v1031, 104
  %1033 = vset.pattern.permute.xlu0 %v1032
  %1034 = vperm.xlu0 %1033, %v951
  %v1035 = vpop.permute.xlu0 %1034
  %v1036 = vlaneseq
  %v1037 = vshrl.u32 %v1036, 7
  %v1038 = vadd.s32 %v1037, 112
  %1039 = vset.pattern.permute.xlu0 %v1038
  %1040 = vperm.xlu0 %1039, %v951
  %v1041 = vpop.permute.xlu0 %1040
  %v1042 = vlaneseq
  %v1043 = vshrl.u32 %v1042, 7
  %v1044 = vadd.s32 %v1043, 120
  %1045 = vset.pattern.permute.xlu0 %v1044
  %1046 = vperm.xlu0 %1045, %v951
  %v1047 = vpop.permute.xlu0 %1046
  %v1049 = vrot.slane %v256, 1
  %v1050 = vrot.slane %v256, 2
  %v1051 = vrot.slane %v256, 3
  %v1052 = vrot.slane %v256, 4
  %v1053 = vrot.slane %v256, 5
  %v1054 = vrot.slane %v256, 6
  %v1055 = vrot.slane %v256, 7
  %v1056 = vperm.slane %v256, 0
  %v1057 = vperm.slane %v1049, 0
  %v1058 = vperm.slane %v1050, 0
  %v1059 = vperm.slane %v1051, 0
  %v1060 = vperm.slane %v1052, 0
  %v1061 = vperm.slane %v1053, 0
  %v1062 = vperm.slane %v1054, 0
  %v1063 = vperm.slane %v1055, 0
  %v1072 = vadd.f32 %v278, %v1056
  %v1073 = vadd.f32 %v284, %v1056
  %v1074 = vadd.f32 %v290, %v1056
  %v1075 = vadd.f32 %v296, %v1056
  %v1076 = vadd.f32 %v302, %v1056
  %v1077 = vadd.f32 %v308, %v1056
  %v1078 = vadd.f32 %v314, %v1056
  %v1079 = vadd.f32 %v320, %v1056
  %v1080 = vadd.f32 %v326, %v1056
  %v1081 = vadd.f32 %v332, %v1056
  %v1082 = vadd.f32 %v338, %v1056
  %v1083 = vadd.f32 %v344, %v1056
  %v1084 = vadd.f32 %v350, %v1056
  %v1085 = vadd.f32 %v356, %v1056
  %v1086 = vadd.f32 %v362, %v1056
  %v1087 = vadd.f32 %v368, %v1056
  %v1088 = vadd.f32 %v375, %v1057
  %v1089 = vadd.f32 %v381, %v1057
  %v1090 = vadd.f32 %v387, %v1057
  %v1091 = vadd.f32 %v393, %v1057
  %v1092 = vadd.f32 %v399, %v1057
  %v1093 = vadd.f32 %v405, %v1057
  %v1094 = vadd.f32 %v411, %v1057
  %v1095 = vadd.f32 %v417, %v1057
  %v1096 = vadd.f32 %v423, %v1057
  %v1097 = vadd.f32 %v429, %v1057
  %v1098 = vadd.f32 %v435, %v1057
  %v1099 = vadd.f32 %v441, %v1057
  %v1100 = vadd.f32 %v447, %v1057
  %v1101 = vadd.f32 %v453, %v1057
  %v1102 = vadd.f32 %v459, %v1057
  %v1103 = vadd.f32 %v465, %v1057
  %v1104 = vadd.f32 %v472, %v1058
  %v1105 = vadd.f32 %v478, %v1058
  %v1106 = vadd.f32 %v484, %v1058
  %v1107 = vadd.f32 %v490, %v1058
  %v1108 = vadd.f32 %v496, %v1058
  %v1109 = vadd.f32 %v502, %v1058
  %v1110 = vadd.f32 %v508, %v1058
  %v1111 = vadd.f32 %v514, %v1058
  %v1112 = vadd.f32 %v520, %v1058
  %v1113 = vadd.f32 %v526, %v1058
  %v1114 = vadd.f32 %v532, %v1058
  %v1115 = vadd.f32 %v538, %v1058
  %v1116 = vadd.f32 %v544, %v1058
  %v1117 = vadd.f32 %v550, %v1058
  %v1118 = vadd.f32 %v556, %v1058
  %v1119 = vadd.f32 %v562, %v1058
  %v1120 = vadd.f32 %v569, %v1059
  %v1121 = vadd.f32 %v575, %v1059
  %v1122 = vadd.f32 %v581, %v1059
  %v1123 = vadd.f32 %v587, %v1059
  %v1124 = vadd.f32 %v593, %v1059
  %v1125 = vadd.f32 %v599, %v1059
  %v1126 = vadd.f32 %v605, %v1059
  %v1127 = vadd.f32 %v611, %v1059
  %v1128 = vadd.f32 %v617, %v1059
  %v1129 = vadd.f32 %v623, %v1059
  %v1130 = vadd.f32 %v629, %v1059
  %v1131 = vadd.f32 %v635, %v1059
  %v1132 = vadd.f32 %v641, %v1059
  %v1133 = vadd.f32 %v647, %v1059
  %v1134 = vadd.f32 %v653, %v1059
  %v1135 = vadd.f32 %v659, %v1059
  %v1136 = vadd.f32 %v666, %v1060
  %v1137 = vadd.f32 %v672, %v1060
  %v1138 = vadd.f32 %v678, %v1060
  %v1139 = vadd.f32 %v684, %v1060
  %v1140 = vadd.f32 %v690, %v1060
  %v1141 = vadd.f32 %v696, %v1060
  %v1142 = vadd.f32 %v702, %v1060
  %v1143 = vadd.f32 %v708, %v1060
  %v1144 = vadd.f32 %v714, %v1060
  %v1145 = vadd.f32 %v720, %v1060
  %v1146 = vadd.f32 %v726, %v1060
  %v1147 = vadd.f32 %v732, %v1060
  %v1148 = vadd.f32 %v738, %v1060
  %v1149 = vadd.f32 %v744, %v1060
  %v1150 = vadd.f32 %v750, %v1060
  %v1151 = vadd.f32 %v756, %v1060
  %v1152 = vadd.f32 %v763, %v1061
  %v1153 = vadd.f32 %v769, %v1061
  %v1154 = vadd.f32 %v775, %v1061
  %v1155 = vadd.f32 %v781, %v1061
  %v1156 = vadd.f32 %v787, %v1061
  %v1157 = vadd.f32 %v793, %v1061
  %v1158 = vadd.f32 %v799, %v1061
  %v1159 = vadd.f32 %v805, %v1061
  %v1160 = vadd.f32 %v811, %v1061
  %v1161 = vadd.f32 %v817, %v1061
  %v1162 = vadd.f32 %v823, %v1061
  %v1163 = vadd.f32 %v829, %v1061
  %v1164 = vadd.f32 %v835, %v1061
  %v1165 = vadd.f32 %v841, %v1061
  %v1166 = vadd.f32 %v847, %v1061
  %v1167 = vadd.f32 %v853, %v1061
  %v1168 = vadd.f32 %v860, %v1062
  %v1169 = vadd.f32 %v866, %v1062
  %v1170 = vadd.f32 %v872, %v1062
  %v1171 = vadd.f32 %v878, %v1062
  %v1172 = vadd.f32 %v884, %v1062
  %v1173 = vadd.f32 %v890, %v1062
  %v1174 = vadd.f32 %v896, %v1062
  %v1175 = vadd.f32 %v902, %v1062
  %v1176 = vadd.f32 %v908, %v1062
  %v1177 = vadd.f32 %v914, %v1062
  %v1178 = vadd.f32 %v920, %v1062
  %v1179 = vadd.f32 %v926, %v1062
  %v1180 = vadd.f32 %v932, %v1062
  %v1181 = vadd.f32 %v938, %v1062
  %v1182 = vadd.f32 %v944, %v1062
  %v1183 = vadd.f32 %v950, %v1062
  %v1184 = vadd.f32 %v957, %v1063
  %v1185 = vadd.f32 %v963, %v1063
  %v1186 = vadd.f32 %v969, %v1063
  %v1187 = vadd.f32 %v975, %v1063
  %v1188 = vadd.f32 %v981, %v1063
  %v1189 = vadd.f32 %v987, %v1063
  %v1190 = vadd.f32 %v993, %v1063
  %v1191 = vadd.f32 %v999, %v1063
  %v1192 = vadd.f32 %v1005, %v1063
  %v1193 = vadd.f32 %v1011, %v1063
  %v1194 = vadd.f32 %v1017, %v1063
  %v1195 = vadd.f32 %v1023, %v1063
  %v1196 = vadd.f32 %v1029, %v1063
  %v1197 = vadd.f32 %v1035, %v1063
  %v1198 = vadd.f32 %v1041, %v1063
  %v1199 = vadd.f32 %v1047, %v1063
  %v1200 = vmul.f32 %v1072, 0.2
  %v1201 = vmul.f32 %v1073, 0.2
  %v1202 = vmul.f32 %v1074, 0.2
  %v1203 = vmul.f32 %v1075, 0.2
  %v1204 = vmul.f32 %v1076, 0.2
  %v1205 = vmul.f32 %v1077, 0.2
  %v1206 = vmul.f32 %v1078, 0.2
  %v1207 = vmul.f32 %v1079, 0.2
  %v1208 = vmul.f32 %v1080, 0.2
  %v1209 = vmul.f32 %v1081, 0.2
  %v1210 = vmul.f32 %v1082, 0.2
  %v1211 = vmul.f32 %v1083, 0.2
  %v1212 = vmul.f32 %v1084, 0.2
  %v1213 = vmul.f32 %v1085, 0.2
  %v1214 = vmul.f32 %v1086, 0.2
  %v1215 = vmul.f32 %v1087, 0.2
  %v1216 = vmul.f32 %v1088, 0.2
  %v1217 = vmul.f32 %v1089, 0.2
  %v1218 = vmul.f32 %v1090, 0.2
  %v1219 = vmul.f32 %v1091, 0.2
  %v1220 = vmul.f32 %v1092, 0.2
  %v1221 = vmul.f32 %v1093, 0.2
  %v1222 = vmul.f32 %v1094, 0.2
  %v1223 = vmul.f32 %v1095, 0.2
  %v1224 = vmul.f32 %v1096, 0.2
  %v1225 = vmul.f32 %v1097, 0.2
  %v1226 = vmul.f32 %v1098, 0.2
  %v1227 = vmul.f32 %v1099, 0.2
  %v1228 = vmul.f32 %v1100, 0.2
  %v1229 = vmul.f32 %v1101, 0.2
  %v1230 = vmul.f32 %v1102, 0.2
  %v1231 = vmul.f32 %v1103, 0.2
  %v1232 = vmul.f32 %v1104, 0.2
  %v1233 = vmul.f32 %v1105, 0.2
  %v1234 = vmul.f32 %v1106, 0.2
  %v1235 = vmul.f32 %v1107, 0.2
  %v1236 = vmul.f32 %v1108, 0.2
  %v1237 = vmul.f32 %v1109, 0.2
  %v1238 = vmul.f32 %v1110, 0.2
  %v1239 = vmul.f32 %v1111, 0.2
  %v1240 = vmul.f32 %v1112, 0.2
  %v1241 = vmul.f32 %v1113, 0.2
  %v1242 = vmul.f32 %v1114, 0.2
  %v1243 = vmul.f32 %v1115, 0.2
  %v1244 = vmul.f32 %v1116, 0.2
  %v1245 = vmul.f32 %v1117, 0.2
  %v1246 = vmul.f32 %v1118, 0.2
  %v1247 = vmul.f32 %v1119, 0.2
  %v1248 = vmul.f32 %v1120, 0.2
  %v1249 = vmul.f32 %v1121, 0.2
  %v1250 = vmul.f32 %v1122, 0.2
  %v1251 = vmul.f32 %v1123, 0.2
  %v1252 = vmul.f32 %v1124, 0.2
  %v1253 = vmul.f32 %v1125, 0.2
  %v1254 = vmul.f32 %v1126, 0.2
  %v1255 = vmul.f32 %v1127, 0.2
  %v1256 = vmul.f32 %v1128, 0.2
  %v1257 = vmul.f32 %v1129, 0.2
  %v1258 = vmul.f32 %v1130, 0.2
  %v1259 = vmul.f32 %v1131, 0.2
  %v1260 = vmul.f32 %v1132, 0.2
  %v1261 = vmul.f32 %v1133, 0.2
  %v1262 = vmul.f32 %v1134, 0.2
  %v1263 = vmul.f32 %v1135, 0.2
  %v1264 = vmul.f32 %v1136, 0.2
  %v1265 = vmul.f32 %v1137, 0.2
  %v1266 = vmul.f32 %v1138, 0.2
  %v1267 = vmul.f32 %v1139, 0.2
  %v1268 = vmul.f32 %v1140, 0.2
  %v1269 = vmul.f32 %v1141, 0.2
  %v1270 = vmul.f32 %v1142, 0.2
  %v1271 = vmul.f32 %v1143, 0.2
  %v1272 = vmul.f32 %v1144, 0.2
  %v1273 = vmul.f32 %v1145, 0.2
  %v1274 = vmul.f32 %v1146, 0.2
  %v1275 = vmul.f32 %v1147, 0.2
  %v1276 = vmul.f32 %v1148, 0.2
  %v1277 = vmul.f32 %v1149, 0.2
  %v1278 = vmul.f32 %v1150, 0.2
  %v1279 = vmul.f32 %v1151, 0.2
  %v1280 = vmul.f32 %v1152, 0.2
  %v1281 = vmul.f32 %v1153, 0.2
  %v1282 = vmul.f32 %v1154, 0.2
  %v1283 = vmul.f32 %v1155, 0.2
  %v1284 = vmul.f32 %v1156, 0.2
  %v1285 = vmul.f32 %v1157, 0.2
  %v1286 = vmul.f32 %v1158, 0.2
  %v1287 = vmul.f32 %v1159, 0.2
  %v1288 = vmul.f32 %v1160, 0.2
  %v1289 = vmul.f32 %v1161, 0.2
  %v1290 = vmul.f32 %v1162, 0.2
  %v1291 = vmul.f32 %v1163, 0.2
  %v1292 = vmul.f32 %v1164, 0.2
  %v1293 = vmul.f32 %v1165, 0.2
  %v1294 = vmul.f32 %v1166, 0.2
  %v1295 = vmul.f32 %v1167, 0.2
  %v1296 = vmul.f32 %v1168, 0.2
  %v1297 = vmul.f32 %v1169, 0.2
  %v1298 = vmul.f32 %v1170, 0.2
  %v1299 = vmul.f32 %v1171, 0.2
  %v1300 = vmul.f32 %v1172, 0.2
  %v1301 = vmul.f32 %v1173, 0.2
  %v1302 = vmul.f32 %v1174, 0.2
  %v1303 = vmul.f32 %v1175, 0.2
  %v1304 = vmul.f32 %v1176, 0.2
  %v1305 = vmul.f32 %v1177, 0.2
  %v1306 = vmul.f32 %v1178, 0.2
  %v1307 = vmul.f32 %v1179, 0.2
  %v1308 = vmul.f32 %v1180, 0.2
  %v1309 = vmul.f32 %v1181, 0.2
  %v1310 = vmul.f32 %v1182, 0.2
  %v1311 = vmul.f32 %v1183, 0.2
  %v1312 = vmul.f32 %v1184, 0.2
  %v1313 = vmul.f32 %v1185, 0.2
  %v1314 = vmul.f32 %v1186, 0.2
  %v1315 = vmul.f32 %v1187, 0.2
  %v1316 = vmul.f32 %v1188, 0.2
  %v1317 = vmul.f32 %v1189, 0.2
  %v1318 = vmul.f32 %v1190, 0.2
  %v1319 = vmul.f32 %v1191, 0.2
  %v1320 = vmul.f32 %v1192, 0.2
  %v1321 = vmul.f32 %v1193, 0.2
  %v1322 = vmul.f32 %v1194, 0.2
  %v1323 = vmul.f32 %v1195, 0.2
  %v1324 = vmul.f32 %v1196, 0.2
  %v1325 = vmul.f32 %v1197, 0.2
  %v1326 = vmul.f32 %v1198, 0.2
  %v1327 = vmul.f32 %v1199, 0.2
  %v1328 = vmax.f32 %v1072, %v1200
  %v1329 = vmax.f32 %v1073, %v1201
  %v1330 = vmax.f32 %v1074, %v1202
  %v1331 = vmax.f32 %v1075, %v1203
  %v1332 = vmax.f32 %v1076, %v1204
  %v1333 = vmax.f32 %v1077, %v1205
  %v1334 = vmax.f32 %v1078, %v1206
  %v1335 = vmax.f32 %v1079, %v1207
  %v1336 = vmax.f32 %v1080, %v1208
  %v1337 = vmax.f32 %v1081, %v1209
  %v1338 = vmax.f32 %v1082, %v1210
  %v1339 = vmax.f32 %v1083, %v1211
  %v1340 = vmax.f32 %v1084, %v1212
  %v1341 = vmax.f32 %v1085, %v1213
  %v1342 = vmax.f32 %v1086, %v1214
  %v1343 = vmax.f32 %v1087, %v1215
  %v1344 = vmax.f32 %v1088, %v1216
  %v1345 = vmax.f32 %v1089, %v1217
  %v1346 = vmax.f32 %v1090, %v1218
  %v1347 = vmax.f32 %v1091, %v1219
  %v1348 = vmax.f32 %v1092, %v1220
  %v1349 = vmax.f32 %v1093, %v1221
  %v1350 = vmax.f32 %v1094, %v1222
  %v1351 = vmax.f32 %v1095, %v1223
  %v1352 = vmax.f32 %v1096, %v1224
  %v1353 = vmax.f32 %v1097, %v1225
  %v1354 = vmax.f32 %v1098, %v1226
  %v1355 = vmax.f32 %v1099, %v1227
  %v1356 = vmax.f32 %v1100, %v1228
  %v1357 = vmax.f32 %v1101, %v1229
  %v1358 = vmax.f32 %v1102, %v1230
  %v1359 = vmax.f32 %v1103, %v1231
  %v1360 = vmax.f32 %v1104, %v1232
  %v1361 = vmax.f32 %v1105, %v1233
  %v1362 = vmax.f32 %v1106, %v1234
  %v1363 = vmax.f32 %v1107, %v1235
  %v1364 = vmax.f32 %v1108, %v1236
  %v1365 = vmax.f32 %v1109, %v1237
  %v1366 = vmax.f32 %v1110, %v1238
  %v1367 = vmax.f32 %v1111, %v1239
  %v1368 = vmax.f32 %v1112, %v1240
  %v1369 = vmax.f32 %v1113, %v1241
  %v1370 = vmax.f32 %v1114, %v1242
  %v1371 = vmax.f32 %v1115, %v1243
  %v1372 = vmax.f32 %v1116, %v1244
  %v1373 = vmax.f32 %v1117, %v1245
  %v1374 = vmax.f32 %v1118, %v1246
  %v1375 = vmax.f32 %v1119, %v1247
  %v1376 = vmax.f32 %v1120, %v1248
  %v1377 = vmax.f32 %v1121, %v1249
  %v1378 = vmax.f32 %v1122, %v1250
  %v1379 = vmax.f32 %v1123, %v1251
  %v1380 = vmax.f32 %v1124, %v1252
  %v1381 = vmax.f32 %v1125, %v1253
  %v1382 = vmax.f32 %v1126, %v1254
  %v1383 = vmax.f32 %v1127, %v1255
  %v1384 = vmax.f32 %v1128, %v1256
  %v1385 = vmax.f32 %v1129, %v1257
  %v1386 = vmax.f32 %v1130, %v1258
  %v1387 = vmax.f32 %v1131, %v1259
  %v1388 = vmax.f32 %v1132, %v1260
  %v1389 = vmax.f32 %v1133, %v1261
  %v1390 = vmax.f32 %v1134, %v1262
  %v1391 = vmax.f32 %v1135, %v1263
  %v1392 = vmax.f32 %v1136, %v1264
  %v1393 = vmax.f32 %v1137, %v1265
  %v1394 = vmax.f32 %v1138, %v1266
  %v1395 = vmax.f32 %v1139, %v1267
  %v1396 = vmax.f32 %v1140, %v1268
  %v1397 = vmax.f32 %v1141, %v1269
  %v1398 = vmax.f32 %v1142, %v1270
  %v1399 = vmax.f32 %v1143, %v1271
  %v1400 = vmax.f32 %v1144, %v1272
  %v1401 = vmax.f32 %v1145, %v1273
  %v1402 = vmax.f32 %v1146, %v1274
  %v1403 = vmax.f32 %v1147, %v1275
  %v1404 = vmax.f32 %v1148, %v1276
  %v1405 = vmax.f32 %v1149, %v1277
  %v1406 = vmax.f32 %v1150, %v1278
  %v1407 = vmax.f32 %v1151, %v1279
  %v1408 = vmax.f32 %v1152, %v1280
  %v1409 = vmax.f32 %v1153, %v1281
  %v1410 = vmax.f32 %v1154, %v1282
  %v1411 = vmax.f32 %v1155, %v1283
  %v1412 = vmax.f32 %v1156, %v1284
  %v1413 = vmax.f32 %v1157, %v1285
  %v1414 = vmax.f32 %v1158, %v1286
  %v1415 = vmax.f32 %v1159, %v1287
  %v1416 = vmax.f32 %v1160, %v1288
  %v1417 = vmax.f32 %v1161, %v1289
  %v1418 = vmax.f32 %v1162, %v1290
  %v1419 = vmax.f32 %v1163, %v1291
  %v1420 = vmax.f32 %v1164, %v1292
  %v1421 = vmax.f32 %v1165, %v1293
  %v1422 = vmax.f32 %v1166, %v1294
  %v1423 = vmax.f32 %v1167, %v1295
  %v1424 = vmax.f32 %v1168, %v1296
  %v1425 = vmax.f32 %v1169, %v1297
  %v1426 = vmax.f32 %v1170, %v1298
  %v1427 = vmax.f32 %v1171, %v1299
  %v1428 = vmax.f32 %v1172, %v1300
  %v1429 = vmax.f32 %v1173, %v1301
  %v1430 = vmax.f32 %v1174, %v1302
  %v1431 = vmax.f32 %v1175, %v1303
  %v1432 = vmax.f32 %v1176, %v1304
  %v1433 = vmax.f32 %v1177, %v1305
  %v1434 = vmax.f32 %v1178, %v1306
  %v1435 = vmax.f32 %v1179, %v1307
  %v1436 = vmax.f32 %v1180, %v1308
  %v1437 = vmax.f32 %v1181, %v1309
  %v1438 = vmax.f32 %v1182, %v1310
  %v1439 = vmax.f32 %v1183, %v1311
  %v1440 = vmax.f32 %v1184, %v1312
  %v1441 = vmax.f32 %v1185, %v1313
  %v1442 = vmax.f32 %v1186, %v1314
  %v1443 = vmax.f32 %v1187, %v1315
  %v1444 = vmax.f32 %v1188, %v1316
  %v1445 = vmax.f32 %v1189, %v1317
  %v1446 = vmax.f32 %v1190, %v1318
  %v1447 = vmax.f32 %v1191, %v1319
  %v1448 = vmax.f32 %v1192, %v1320
  %v1449 = vmax.f32 %v1193, %v1321
  %v1450 = vmax.f32 %v1194, %v1322
  %v1451 = vmax.f32 %v1195, %v1323
  %v1452 = vmax.f32 %v1196, %v1324
  %v1453 = vmax.f32 %v1197, %v1325
  %v1454 = vmax.f32 %v1198, %v1326
  %v1455 = vmax.f32 %v1199, %v1327
  %v1456 = vadd.f32 %v1328, %v26
  %v1457 = vadd.f32 %v1329, %v27
  %v1458 = vadd.f32 %v1330, %v28
  %v1459 = vadd.f32 %v1331, %v29
  %v1460 = vadd.f32 %v1332, %v30
  %v1461 = vadd.f32 %v1333, %v31
  %v1462 = vadd.f32 %v1334, %v32
  %v1463 = vadd.f32 %v1335, %v33
  %v1464 = vadd.f32 %v1336, %v34
  %v1465 = vadd.f32 %v1337, %v35
  %v1466 = vadd.f32 %v1338, %v36
  %v1467 = vadd.f32 %v1339, %v37
  %v1468 = vadd.f32 %v1340, %v38
  %v1469 = vadd.f32 %v1341, %v39
  %v1470 = vadd.f32 %v1342, %v40
  %v1471 = vadd.f32 %v1343, %v41
  %v1472 = vadd.f32 %v1344, %v26
  %v1473 = vadd.f32 %v1345, %v27
  %v1474 = vadd.f32 %v1346, %v28
  %v1475 = vadd.f32 %v1347, %v29
  %v1476 = vadd.f32 %v1348, %v30
  %v1477 = vadd.f32 %v1349, %v31
  %v1478 = vadd.f32 %v1350, %v32
  %v1479 = vadd.f32 %v1351, %v33
  %v1480 = vadd.f32 %v1352, %v34
  %v1481 = vadd.f32 %v1353, %v35
  %v1482 = vadd.f32 %v1354, %v36
  %v1483 = vadd.f32 %v1355, %v37
  %v1484 = vadd.f32 %v1356, %v38
  %v1485 = vadd.f32 %v1357, %v39
  %v1486 = vadd.f32 %v1358, %v40
  %v1487 = vadd.f32 %v1359, %v41
  %v1488 = vadd.f32 %v1360, %v26
  %v1489 = vadd.f32 %v1361, %v27
  %v1490 = vadd.f32 %v1362, %v28
  %v1491 = vadd.f32 %v1363, %v29
  %v1492 = vadd.f32 %v1364, %v30
  %v1493 = vadd.f32 %v1365, %v31
  %v1494 = vadd.f32 %v1366, %v32
  %v1495 = vadd.f32 %v1367, %v33
  %v1496 = vadd.f32 %v1368, %v34
  %v1497 = vadd.f32 %v1369, %v35
  %v1498 = vadd.f32 %v1370, %v36
  %v1499 = vadd.f32 %v1371, %v37
  %v1500 = vadd.f32 %v1372, %v38
  %v1501 = vadd.f32 %v1373, %v39
  %v1502 = vadd.f32 %v1374, %v40
  %v1503 = vadd.f32 %v1375, %v41
  %v1504 = vadd.f32 %v1376, %v26
  %v1505 = vadd.f32 %v1377, %v27
  %v1506 = vadd.f32 %v1378, %v28
  %v1507 = vadd.f32 %v1379, %v29
  %v1508 = vadd.f32 %v1380, %v30
  %v1509 = vadd.f32 %v1381, %v31
  %v1510 = vadd.f32 %v1382, %v32
  %v1511 = vadd.f32 %v1383, %v33
  %v1512 = vadd.f32 %v1384, %v34
  %v1513 = vadd.f32 %v1385, %v35
  %v1514 = vadd.f32 %v1386, %v36
  %v1515 = vadd.f32 %v1387, %v37
  %v1516 = vadd.f32 %v1388, %v38
  %v1517 = vadd.f32 %v1389, %v39
  %v1518 = vadd.f32 %v1390, %v40
  %v1519 = vadd.f32 %v1391, %v41
  %v1520 = vadd.f32 %v1392, %v26
  %v1521 = vadd.f32 %v1393, %v27
  %v1522 = vadd.f32 %v1394, %v28
  %v1523 = vadd.f32 %v1395, %v29
  %v1524 = vadd.f32 %v1396, %v30
  %v1525 = vadd.f32 %v1397, %v31
  %v1526 = vadd.f32 %v1398, %v32
  %v1527 = vadd.f32 %v1399, %v33
  %v1528 = vadd.f32 %v1400, %v34
  %v1529 = vadd.f32 %v1401, %v35
  %v1530 = vadd.f32 %v1402, %v36
  %v1531 = vadd.f32 %v1403, %v37
  %v1532 = vadd.f32 %v1404, %v38
  %v1533 = vadd.f32 %v1405, %v39
  %v1534 = vadd.f32 %v1406, %v40
  %v1535 = vadd.f32 %v1407, %v41
  %v1536 = vadd.f32 %v1408, %v26
  %v1537 = vadd.f32 %v1409, %v27
  %v1538 = vadd.f32 %v1410, %v28
  %v1539 = vadd.f32 %v1411, %v29
  %v1540 = vadd.f32 %v1412, %v30
  %v1541 = vadd.f32 %v1413, %v31
  %v1542 = vadd.f32 %v1414, %v32
  %v1543 = vadd.f32 %v1415, %v33
  %v1544 = vadd.f32 %v1416, %v34
  %v1545 = vadd.f32 %v1417, %v35
  %v1546 = vadd.f32 %v1418, %v36
  %v1547 = vadd.f32 %v1419, %v37
  %v1548 = vadd.f32 %v1420, %v38
  %v1549 = vadd.f32 %v1421, %v39
  %v1550 = vadd.f32 %v1422, %v40
  %v1551 = vadd.f32 %v1423, %v41
  %v1552 = vadd.f32 %v1424, %v26
  %v1553 = vadd.f32 %v1425, %v27
  %v1554 = vadd.f32 %v1426, %v28
  %v1555 = vadd.f32 %v1427, %v29
  %v1556 = vadd.f32 %v1428, %v30
  %v1557 = vadd.f32 %v1429, %v31
  %v1558 = vadd.f32 %v1430, %v32
  %v1559 = vadd.f32 %v1431, %v33
  %v1560 = vadd.f32 %v1432, %v34
  %v1561 = vadd.f32 %v1433, %v35
  %v1562 = vadd.f32 %v1434, %v36
  %v1563 = vadd.f32 %v1435, %v37
  %v1564 = vadd.f32 %v1436, %v38
  %v1565 = vadd.f32 %v1437, %v39
  %v1566 = vadd.f32 %v1438, %v40
  %v1567 = vadd.f32 %v1439, %v41
  %v1568 = vadd.f32 %v1440, %v26
  %v1569 = vadd.f32 %v1441, %v27
  %v1570 = vadd.f32 %v1442, %v28
  %v1571 = vadd.f32 %v1443, %v29
  %v1572 = vadd.f32 %v1444, %v30
  %v1573 = vadd.f32 %v1445, %v31
  %v1574 = vadd.f32 %v1446, %v32
  %v1575 = vadd.f32 %v1447, %v33
  %v1576 = vadd.f32 %v1448, %v34
  %v1577 = vadd.f32 %v1449, %v35
  %v1578 = vadd.f32 %v1450, %v36
  %v1579 = vadd.f32 %v1451, %v37
  %v1580 = vadd.f32 %v1452, %v38
  %v1581 = vadd.f32 %v1453, %v39
  %v1582 = vadd.f32 %v1454, %v40
  %v1583 = vadd.f32 %v1455, %v41
  %1584 = vmax.xlane.f32.xlu0 %v1456
  %v1585 = vpop.xlane.xlu0 %1584
  %1586 = vmax.xlane.f32.xlu0 %v1457
  %v1587 = vpop.xlane.xlu0 %1586
  %1588 = vmax.xlane.f32.xlu0 %v1458
  %v1589 = vpop.xlane.xlu0 %1588
  %1590 = vmax.xlane.f32.xlu0 %v1459
  %v1591 = vpop.xlane.xlu0 %1590
  %1592 = vmax.xlane.f32.xlu0 %v1460
  %v1593 = vpop.xlane.xlu0 %1592
  %1594 = vmax.xlane.f32.xlu0 %v1461
  %v1595 = vpop.xlane.xlu0 %1594
  %1596 = vmax.xlane.f32.xlu0 %v1462
  %v1597 = vpop.xlane.xlu0 %1596
  %1598 = vmax.xlane.f32.xlu0 %v1463
  %v1599 = vpop.xlane.xlu0 %1598
  %1600 = vmax.xlane.f32.xlu0 %v1464
  %v1601 = vpop.xlane.xlu0 %1600
  %1602 = vmax.xlane.f32.xlu0 %v1465
  %v1603 = vpop.xlane.xlu0 %1602
  %1604 = vmax.xlane.f32.xlu0 %v1466
  %v1605 = vpop.xlane.xlu0 %1604
  %1606 = vmax.xlane.f32.xlu0 %v1467
  %v1607 = vpop.xlane.xlu0 %1606
  %1608 = vmax.xlane.f32.xlu0 %v1468
  %v1609 = vpop.xlane.xlu0 %1608
  %1610 = vmax.xlane.f32.xlu0 %v1469
  %v1611 = vpop.xlane.xlu0 %1610
  %1612 = vmax.xlane.f32.xlu0 %v1470
  %v1613 = vpop.xlane.xlu0 %1612
  %1614 = vmax.xlane.f32.xlu0 %v1471
  %v1615 = vpop.xlane.xlu0 %1614
  %1616 = vmax.xlane.f32.xlu0 %v1472
  %v1617 = vpop.xlane.xlu0 %1616
  %1618 = vmax.xlane.f32.xlu0 %v1473
  %v1619 = vpop.xlane.xlu0 %1618
  %1620 = vmax.xlane.f32.xlu0 %v1474
  %v1621 = vpop.xlane.xlu0 %1620
  %1622 = vmax.xlane.f32.xlu0 %v1475
  %v1623 = vpop.xlane.xlu0 %1622
  %1624 = vmax.xlane.f32.xlu0 %v1476
  %v1625 = vpop.xlane.xlu0 %1624
  %1626 = vmax.xlane.f32.xlu0 %v1477
  %v1627 = vpop.xlane.xlu0 %1626
  %1628 = vmax.xlane.f32.xlu0 %v1478
  %v1629 = vpop.xlane.xlu0 %1628
  %1630 = vmax.xlane.f32.xlu0 %v1479
  %v1631 = vpop.xlane.xlu0 %1630
  %1632 = vmax.xlane.f32.xlu0 %v1480
  %v1633 = vpop.xlane.xlu0 %1632
  %1634 = vmax.xlane.f32.xlu0 %v1481
  %v1635 = vpop.xlane.xlu0 %1634
  %1636 = vmax.xlane.f32.xlu0 %v1482
  %v1637 = vpop.xlane.xlu0 %1636
  %1638 = vmax.xlane.f32.xlu0 %v1483
  %v1639 = vpop.xlane.xlu0 %1638
  %1640 = vmax.xlane.f32.xlu0 %v1484
  %v1641 = vpop.xlane.xlu0 %1640
  %1642 = vmax.xlane.f32.xlu0 %v1485
  %v1643 = vpop.xlane.xlu0 %1642
  %1644 = vmax.xlane.f32.xlu0 %v1486
  %v1645 = vpop.xlane.xlu0 %1644
  %1646 = vmax.xlane.f32.xlu0 %v1487
  %v1647 = vpop.xlane.xlu0 %1646
  %1648 = vmax.xlane.f32.xlu0 %v1488
  %v1649 = vpop.xlane.xlu0 %1648
  %1650 = vmax.xlane.f32.xlu0 %v1489
  %v1651 = vpop.xlane.xlu0 %1650
  %1652 = vmax.xlane.f32.xlu0 %v1490
  %v1653 = vpop.xlane.xlu0 %1652
  %1654 = vmax.xlane.f32.xlu0 %v1491
  %v1655 = vpop.xlane.xlu0 %1654
  %1656 = vmax.xlane.f32.xlu0 %v1492
  %v1657 = vpop.xlane.xlu0 %1656
  %1658 = vmax.xlane.f32.xlu0 %v1493
  %v1659 = vpop.xlane.xlu0 %1658
  %1660 = vmax.xlane.f32.xlu0 %v1494
  %v1661 = vpop.xlane.xlu0 %1660
  %1662 = vmax.xlane.f32.xlu0 %v1495
  %v1663 = vpop.xlane.xlu0 %1662
  %1664 = vmax.xlane.f32.xlu0 %v1496
  %v1665 = vpop.xlane.xlu0 %1664
  %1666 = vmax.xlane.f32.xlu0 %v1497
  %v1667 = vpop.xlane.xlu0 %1666
  %1668 = vmax.xlane.f32.xlu0 %v1498
  %v1669 = vpop.xlane.xlu0 %1668
  %1670 = vmax.xlane.f32.xlu0 %v1499
  %v1671 = vpop.xlane.xlu0 %1670
  %1672 = vmax.xlane.f32.xlu0 %v1500
  %v1673 = vpop.xlane.xlu0 %1672
  %1674 = vmax.xlane.f32.xlu0 %v1501
  %v1675 = vpop.xlane.xlu0 %1674
  %1676 = vmax.xlane.f32.xlu0 %v1502
  %v1677 = vpop.xlane.xlu0 %1676
  %1678 = vmax.xlane.f32.xlu0 %v1503
  %v1679 = vpop.xlane.xlu0 %1678
  %1680 = vmax.xlane.f32.xlu0 %v1504
  %v1681 = vpop.xlane.xlu0 %1680
  %1682 = vmax.xlane.f32.xlu0 %v1505
  %v1683 = vpop.xlane.xlu0 %1682
  %1684 = vmax.xlane.f32.xlu0 %v1506
  %v1685 = vpop.xlane.xlu0 %1684
  %1686 = vmax.xlane.f32.xlu0 %v1507
  %v1687 = vpop.xlane.xlu0 %1686
  %1688 = vmax.xlane.f32.xlu0 %v1508
  %v1689 = vpop.xlane.xlu0 %1688
  %1690 = vmax.xlane.f32.xlu0 %v1509
  %v1691 = vpop.xlane.xlu0 %1690
  %1692 = vmax.xlane.f32.xlu0 %v1510
  %v1693 = vpop.xlane.xlu0 %1692
  %1694 = vmax.xlane.f32.xlu0 %v1511
  %v1695 = vpop.xlane.xlu0 %1694
  %1696 = vmax.xlane.f32.xlu0 %v1512
  %v1697 = vpop.xlane.xlu0 %1696
  %1698 = vmax.xlane.f32.xlu0 %v1513
  %v1699 = vpop.xlane.xlu0 %1698
  %1700 = vmax.xlane.f32.xlu0 %v1514
  %v1701 = vpop.xlane.xlu0 %1700
  %1702 = vmax.xlane.f32.xlu0 %v1515
  %v1703 = vpop.xlane.xlu0 %1702
  %1704 = vmax.xlane.f32.xlu0 %v1516
  %v1705 = vpop.xlane.xlu0 %1704
  %1706 = vmax.xlane.f32.xlu0 %v1517
  %v1707 = vpop.xlane.xlu0 %1706
  %1708 = vmax.xlane.f32.xlu0 %v1518
  %v1709 = vpop.xlane.xlu0 %1708
  %1710 = vmax.xlane.f32.xlu0 %v1519
  %v1711 = vpop.xlane.xlu0 %1710
  %1712 = vmax.xlane.f32.xlu0 %v1520
  %v1713 = vpop.xlane.xlu0 %1712
  %1714 = vmax.xlane.f32.xlu0 %v1521
  %v1715 = vpop.xlane.xlu0 %1714
  %1716 = vmax.xlane.f32.xlu0 %v1522
  %v1717 = vpop.xlane.xlu0 %1716
  %1718 = vmax.xlane.f32.xlu0 %v1523
  %v1719 = vpop.xlane.xlu0 %1718
  %1720 = vmax.xlane.f32.xlu0 %v1524
  %v1721 = vpop.xlane.xlu0 %1720
  %1722 = vmax.xlane.f32.xlu0 %v1525
  %v1723 = vpop.xlane.xlu0 %1722
  %1724 = vmax.xlane.f32.xlu0 %v1526
  %v1725 = vpop.xlane.xlu0 %1724
  %1726 = vmax.xlane.f32.xlu0 %v1527
  %v1727 = vpop.xlane.xlu0 %1726
  %1728 = vmax.xlane.f32.xlu0 %v1528
  %v1729 = vpop.xlane.xlu0 %1728
  %1730 = vmax.xlane.f32.xlu0 %v1529
  %v1731 = vpop.xlane.xlu0 %1730
  %1732 = vmax.xlane.f32.xlu0 %v1530
  %v1733 = vpop.xlane.xlu0 %1732
  %1734 = vmax.xlane.f32.xlu0 %v1531
  %v1735 = vpop.xlane.xlu0 %1734
  %1736 = vmax.xlane.f32.xlu0 %v1532
  %v1737 = vpop.xlane.xlu0 %1736
  %1738 = vmax.xlane.f32.xlu0 %v1533
  %v1739 = vpop.xlane.xlu0 %1738
  %1740 = vmax.xlane.f32.xlu0 %v1534
  %v1741 = vpop.xlane.xlu0 %1740
  %1742 = vmax.xlane.f32.xlu0 %v1535
  %v1743 = vpop.xlane.xlu0 %1742
  %1744 = vmax.xlane.f32.xlu0 %v1536
  %v1745 = vpop.xlane.xlu0 %1744
  %1746 = vmax.xlane.f32.xlu0 %v1537
  %v1747 = vpop.xlane.xlu0 %1746
  %1748 = vmax.xlane.f32.xlu0 %v1538
  %v1749 = vpop.xlane.xlu0 %1748
  %1750 = vmax.xlane.f32.xlu0 %v1539
  %v1751 = vpop.xlane.xlu0 %1750
  %1752 = vmax.xlane.f32.xlu0 %v1540
  %v1753 = vpop.xlane.xlu0 %1752
  %1754 = vmax.xlane.f32.xlu0 %v1541
  %v1755 = vpop.xlane.xlu0 %1754
  %1756 = vmax.xlane.f32.xlu0 %v1542
  %v1757 = vpop.xlane.xlu0 %1756
  %1758 = vmax.xlane.f32.xlu0 %v1543
  %v1759 = vpop.xlane.xlu0 %1758
  %1760 = vmax.xlane.f32.xlu0 %v1544
  %v1761 = vpop.xlane.xlu0 %1760
  %1762 = vmax.xlane.f32.xlu0 %v1545
  %v1763 = vpop.xlane.xlu0 %1762
  %1764 = vmax.xlane.f32.xlu0 %v1546
  %v1765 = vpop.xlane.xlu0 %1764
  %1766 = vmax.xlane.f32.xlu0 %v1547
  %v1767 = vpop.xlane.xlu0 %1766
  %1768 = vmax.xlane.f32.xlu0 %v1548
  %v1769 = vpop.xlane.xlu0 %1768
  %1770 = vmax.xlane.f32.xlu0 %v1549
  %v1771 = vpop.xlane.xlu0 %1770
  %1772 = vmax.xlane.f32.xlu0 %v1550
  %v1773 = vpop.xlane.xlu0 %1772
  %1774 = vmax.xlane.f32.xlu0 %v1551
  %v1775 = vpop.xlane.xlu0 %1774
  %1776 = vmax.xlane.f32.xlu0 %v1552
  %v1777 = vpop.xlane.xlu0 %1776
  %1778 = vmax.xlane.f32.xlu0 %v1553
  %v1779 = vpop.xlane.xlu0 %1778
  %1780 = vmax.xlane.f32.xlu0 %v1554
  %v1781 = vpop.xlane.xlu0 %1780
  %1782 = vmax.xlane.f32.xlu0 %v1555
  %v1783 = vpop.xlane.xlu0 %1782
  %1784 = vmax.xlane.f32.xlu0 %v1556
  %v1785 = vpop.xlane.xlu0 %1784
  %1786 = vmax.xlane.f32.xlu0 %v1557
  %v1787 = vpop.xlane.xlu0 %1786
  %1788 = vmax.xlane.f32.xlu0 %v1558
  %v1789 = vpop.xlane.xlu0 %1788
  %1790 = vmax.xlane.f32.xlu0 %v1559
  %v1791 = vpop.xlane.xlu0 %1790
  %1792 = vmax.xlane.f32.xlu0 %v1560
  %v1793 = vpop.xlane.xlu0 %1792
  %1794 = vmax.xlane.f32.xlu0 %v1561
  %v1795 = vpop.xlane.xlu0 %1794
  %1796 = vmax.xlane.f32.xlu0 %v1562
  %v1797 = vpop.xlane.xlu0 %1796
  %1798 = vmax.xlane.f32.xlu0 %v1563
  %v1799 = vpop.xlane.xlu0 %1798
  %1800 = vmax.xlane.f32.xlu0 %v1564
  %v1801 = vpop.xlane.xlu0 %1800
  %1802 = vmax.xlane.f32.xlu0 %v1565
  %v1803 = vpop.xlane.xlu0 %1802
  %1804 = vmax.xlane.f32.xlu0 %v1566
  %v1805 = vpop.xlane.xlu0 %1804
  %1806 = vmax.xlane.f32.xlu0 %v1567
  %v1807 = vpop.xlane.xlu0 %1806
  %1808 = vmax.xlane.f32.xlu0 %v1568
  %v1809 = vpop.xlane.xlu0 %1808
  %1810 = vmax.xlane.f32.xlu0 %v1569
  %v1811 = vpop.xlane.xlu0 %1810
  %1812 = vmax.xlane.f32.xlu0 %v1570
  %v1813 = vpop.xlane.xlu0 %1812
  %1814 = vmax.xlane.f32.xlu0 %v1571
  %v1815 = vpop.xlane.xlu0 %1814
  %1816 = vmax.xlane.f32.xlu0 %v1572
  %v1817 = vpop.xlane.xlu0 %1816
  %1818 = vmax.xlane.f32.xlu0 %v1573
  %v1819 = vpop.xlane.xlu0 %1818
  %1820 = vmax.xlane.f32.xlu0 %v1574
  %v1821 = vpop.xlane.xlu0 %1820
  %1822 = vmax.xlane.f32.xlu0 %v1575
  %v1823 = vpop.xlane.xlu0 %1822
  %1824 = vmax.xlane.f32.xlu0 %v1576
  %v1825 = vpop.xlane.xlu0 %1824
  %1826 = vmax.xlane.f32.xlu0 %v1577
  %v1827 = vpop.xlane.xlu0 %1826
  %1828 = vmax.xlane.f32.xlu0 %v1578
  %v1829 = vpop.xlane.xlu0 %1828
  %1830 = vmax.xlane.f32.xlu0 %v1579
  %v1831 = vpop.xlane.xlu0 %1830
  %1832 = vmax.xlane.f32.xlu0 %v1580
  %v1833 = vpop.xlane.xlu0 %1832
  %1834 = vmax.xlane.f32.xlu0 %v1581
  %v1835 = vpop.xlane.xlu0 %1834
  %1836 = vmax.xlane.f32.xlu0 %v1582
  %v1837 = vpop.xlane.xlu0 %1836
  %1838 = vmax.xlane.f32.xlu0 %v1583
  %v1839 = vpop.xlane.xlu0 %1838
  %v1840 = vsub.f32 %v1456, %v1585
  %v1841 = vsub.f32 %v1457, %v1587
  %v1842 = vsub.f32 %v1458, %v1589
  %v1843 = vsub.f32 %v1459, %v1591
  %v1844 = vsub.f32 %v1460, %v1593
  %v1845 = vsub.f32 %v1461, %v1595
  %v1846 = vsub.f32 %v1462, %v1597
  %v1847 = vsub.f32 %v1463, %v1599
  %v1848 = vsub.f32 %v1464, %v1601
  %v1849 = vsub.f32 %v1465, %v1603
  %v1850 = vsub.f32 %v1466, %v1605
  %v1851 = vsub.f32 %v1467, %v1607
  %v1852 = vsub.f32 %v1468, %v1609
  %v1853 = vsub.f32 %v1469, %v1611
  %v1854 = vsub.f32 %v1470, %v1613
  %v1855 = vsub.f32 %v1471, %v1615
  %v1856 = vsub.f32 %v1472, %v1617
  %v1857 = vsub.f32 %v1473, %v1619
  %v1858 = vsub.f32 %v1474, %v1621
  %v1859 = vsub.f32 %v1475, %v1623
  %v1860 = vsub.f32 %v1476, %v1625
  %v1861 = vsub.f32 %v1477, %v1627
  %v1862 = vsub.f32 %v1478, %v1629
  %v1863 = vsub.f32 %v1479, %v1631
  %v1864 = vsub.f32 %v1480, %v1633
  %v1865 = vsub.f32 %v1481, %v1635
  %v1866 = vsub.f32 %v1482, %v1637
  %v1867 = vsub.f32 %v1483, %v1639
  %v1868 = vsub.f32 %v1484, %v1641
  %v1869 = vsub.f32 %v1485, %v1643
  %v1870 = vsub.f32 %v1486, %v1645
  %v1871 = vsub.f32 %v1487, %v1647
  %v1872 = vsub.f32 %v1488, %v1649
  %v1873 = vsub.f32 %v1489, %v1651
  %v1874 = vsub.f32 %v1490, %v1653
  %v1875 = vsub.f32 %v1491, %v1655
  %v1876 = vsub.f32 %v1492, %v1657
  %v1877 = vsub.f32 %v1493, %v1659
  %v1878 = vsub.f32 %v1494, %v1661
  %v1879 = vsub.f32 %v1495, %v1663
  %v1880 = vsub.f32 %v1496, %v1665
  %v1881 = vsub.f32 %v1497, %v1667
  %v1882 = vsub.f32 %v1498, %v1669
  %v1883 = vsub.f32 %v1499, %v1671
  %v1884 = vsub.f32 %v1500, %v1673
  %v1885 = vsub.f32 %v1501, %v1675
  %v1886 = vsub.f32 %v1502, %v1677
  %v1887 = vsub.f32 %v1503, %v1679
  %v1888 = vsub.f32 %v1504, %v1681
  %v1889 = vsub.f32 %v1505, %v1683
  %v1890 = vsub.f32 %v1506, %v1685
  %v1891 = vsub.f32 %v1507, %v1687
  %v1892 = vsub.f32 %v1508, %v1689
  %v1893 = vsub.f32 %v1509, %v1691
  %v1894 = vsub.f32 %v1510, %v1693
  %v1895 = vsub.f32 %v1511, %v1695
  %v1896 = vsub.f32 %v1512, %v1697
  %v1897 = vsub.f32 %v1513, %v1699
  %v1898 = vsub.f32 %v1514, %v1701
  %v1899 = vsub.f32 %v1515, %v1703
  %v1900 = vsub.f32 %v1516, %v1705
  %v1901 = vsub.f32 %v1517, %v1707
  %v1902 = vsub.f32 %v1518, %v1709
  %v1903 = vsub.f32 %v1519, %v1711
  %v1904 = vsub.f32 %v1520, %v1713
  %v1905 = vsub.f32 %v1521, %v1715
  %v1906 = vsub.f32 %v1522, %v1717
  %v1907 = vsub.f32 %v1523, %v1719
  %v1908 = vsub.f32 %v1524, %v1721
  %v1909 = vsub.f32 %v1525, %v1723
  %v1910 = vsub.f32 %v1526, %v1725
  %v1911 = vsub.f32 %v1527, %v1727
  %v1912 = vsub.f32 %v1528, %v1729
  %v1913 = vsub.f32 %v1529, %v1731
  %v1914 = vsub.f32 %v1530, %v1733
  %v1915 = vsub.f32 %v1531, %v1735
  %v1916 = vsub.f32 %v1532, %v1737
  %v1917 = vsub.f32 %v1533, %v1739
  %v1918 = vsub.f32 %v1534, %v1741
  %v1919 = vsub.f32 %v1535, %v1743
  %v1920 = vsub.f32 %v1536, %v1745
  %v1921 = vsub.f32 %v1537, %v1747
  %v1922 = vsub.f32 %v1538, %v1749
  %v1923 = vsub.f32 %v1539, %v1751
  %v1924 = vsub.f32 %v1540, %v1753
  %v1925 = vsub.f32 %v1541, %v1755
  %v1926 = vsub.f32 %v1542, %v1757
  %v1927 = vsub.f32 %v1543, %v1759
  %v1928 = vsub.f32 %v1544, %v1761
  %v1929 = vsub.f32 %v1545, %v1763
  %v1930 = vsub.f32 %v1546, %v1765
  %v1931 = vsub.f32 %v1547, %v1767
  %v1932 = vsub.f32 %v1548, %v1769
  %v1933 = vsub.f32 %v1549, %v1771
  %v1934 = vsub.f32 %v1550, %v1773
  %v1935 = vsub.f32 %v1551, %v1775
  %v1936 = vsub.f32 %v1552, %v1777
  %v1937 = vsub.f32 %v1553, %v1779
  %v1938 = vsub.f32 %v1554, %v1781
  %v1939 = vsub.f32 %v1555, %v1783
  %v1940 = vsub.f32 %v1556, %v1785
  %v1941 = vsub.f32 %v1557, %v1787
  %v1942 = vsub.f32 %v1558, %v1789
  %v1943 = vsub.f32 %v1559, %v1791
  %v1944 = vsub.f32 %v1560, %v1793
  %v1945 = vsub.f32 %v1561, %v1795
  %v1946 = vsub.f32 %v1562, %v1797
  %v1947 = vsub.f32 %v1563, %v1799
  %v1948 = vsub.f32 %v1564, %v1801
  %v1949 = vsub.f32 %v1565, %v1803
  %v1950 = vsub.f32 %v1566, %v1805
  %v1951 = vsub.f32 %v1567, %v1807
  %v1952 = vsub.f32 %v1568, %v1809
  %v1953 = vsub.f32 %v1569, %v1811
  %v1954 = vsub.f32 %v1570, %v1813
  %v1955 = vsub.f32 %v1571, %v1815
  %v1956 = vsub.f32 %v1572, %v1817
  %v1957 = vsub.f32 %v1573, %v1819
  %v1958 = vsub.f32 %v1574, %v1821
  %v1959 = vsub.f32 %v1575, %v1823
  %v1960 = vsub.f32 %v1576, %v1825
  %v1961 = vsub.f32 %v1577, %v1827
  %v1962 = vsub.f32 %v1578, %v1829
  %v1963 = vsub.f32 %v1579, %v1831
  %v1964 = vsub.f32 %v1580, %v1833
  %v1965 = vsub.f32 %v1581, %v1835
  %v1966 = vsub.f32 %v1582, %v1837
  %v1967 = vsub.f32 %v1583, %v1839
  %v1968 = vmul.f32 %v1840, 1.442695
  %v1969 = vpow.pop %v1968
  %v1970 = vmul.f32 %v1841, 1.442695
  %v1971 = vpow.pop %v1970
  %v1972 = vmul.f32 %v1842, 1.442695
  %v1973 = vpow.pop %v1972
  %v1974 = vmul.f32 %v1843, 1.442695
  %v1975 = vpow.pop %v1974
  %v1976 = vmul.f32 %v1844, 1.442695
  %v1977 = vpow.pop %v1976
  %v1978 = vmul.f32 %v1845, 1.442695
  %v1979 = vpow.pop %v1978
  %v1980 = vmul.f32 %v1846, 1.442695
  %v1981 = vpow.pop %v1980
  %v1982 = vmul.f32 %v1847, 1.442695
  %v1983 = vpow.pop %v1982
  %v1984 = vmul.f32 %v1848, 1.442695
  %v1985 = vpow.pop %v1984
  %v1986 = vmul.f32 %v1849, 1.442695
  %v1987 = vpow.pop %v1986
  %v1988 = vmul.f32 %v1850, 1.442695
  %v1989 = vpow.pop %v1988
  %v1990 = vmul.f32 %v1851, 1.442695
  %v1991 = vpow.pop %v1990
  %v1992 = vmul.f32 %v1852, 1.442695
  %v1993 = vpow.pop %v1992
  %v1994 = vmul.f32 %v1853, 1.442695
  %v1995 = vpow.pop %v1994
  %v1996 = vmul.f32 %v1854, 1.442695
  %v1997 = vpow.pop %v1996
  %v1998 = vmul.f32 %v1855, 1.442695
  %v1999 = vpow.pop %v1998
  %v2000 = vmul.f32 %v1856, 1.442695
  %v2001 = vpow.pop %v2000
  %v2002 = vmul.f32 %v1857, 1.442695
  %v2003 = vpow.pop %v2002
  %v2004 = vmul.f32 %v1858, 1.442695
  %v2005 = vpow.pop %v2004
  %v2006 = vmul.f32 %v1859, 1.442695
  %v2007 = vpow.pop %v2006
  %v2008 = vmul.f32 %v1860, 1.442695
  %v2009 = vpow.pop %v2008
  %v2010 = vmul.f32 %v1861, 1.442695
  %v2011 = vpow.pop %v2010
  %v2012 = vmul.f32 %v1862, 1.442695
  %v2013 = vpow.pop %v2012
  %v2014 = vmul.f32 %v1863, 1.442695
  %v2015 = vpow.pop %v2014
  %v2016 = vmul.f32 %v1864, 1.442695
  %v2017 = vpow.pop %v2016
  %v2018 = vmul.f32 %v1865, 1.442695
  %v2019 = vpow.pop %v2018
  %v2020 = vmul.f32 %v1866, 1.442695
  %v2021 = vpow.pop %v2020
  %v2022 = vmul.f32 %v1867, 1.442695
  %v2023 = vpow.pop %v2022
  %v2024 = vmul.f32 %v1868, 1.442695
  %v2025 = vpow.pop %v2024
  %v2026 = vmul.f32 %v1869, 1.442695
  %v2027 = vpow.pop %v2026
  %v2028 = vmul.f32 %v1870, 1.442695
  %v2029 = vpow.pop %v2028
  %v2030 = vmul.f32 %v1871, 1.442695
  %v2031 = vpow.pop %v2030
  %v2032 = vmul.f32 %v1872, 1.442695
  %v2033 = vpow.pop %v2032
  %v2034 = vmul.f32 %v1873, 1.442695
  %v2035 = vpow.pop %v2034
  %v2036 = vmul.f32 %v1874, 1.442695
  %v2037 = vpow.pop %v2036
  %v2038 = vmul.f32 %v1875, 1.442695
  %v2039 = vpow.pop %v2038
  %v2040 = vmul.f32 %v1876, 1.442695
  %v2041 = vpow.pop %v2040
  %v2042 = vmul.f32 %v1877, 1.442695
  %v2043 = vpow.pop %v2042
  %v2044 = vmul.f32 %v1878, 1.442695
  %v2045 = vpow.pop %v2044
  %v2046 = vmul.f32 %v1879, 1.442695
  %v2047 = vpow.pop %v2046
  %v2048 = vmul.f32 %v1880, 1.442695
  %v2049 = vpow.pop %v2048
  %v2050 = vmul.f32 %v1881, 1.442695
  %v2051 = vpow.pop %v2050
  %v2052 = vmul.f32 %v1882, 1.442695
  %v2053 = vpow.pop %v2052
  %v2054 = vmul.f32 %v1883, 1.442695
  %v2055 = vpow.pop %v2054
  %v2056 = vmul.f32 %v1884, 1.442695
  %v2057 = vpow.pop %v2056
  %v2058 = vmul.f32 %v1885, 1.442695
  %v2059 = vpow.pop %v2058
  %v2060 = vmul.f32 %v1886, 1.442695
  %v2061 = vpow.pop %v2060
  %v2062 = vmul.f32 %v1887, 1.442695
  %v2063 = vpow.pop %v2062
  %v2064 = vmul.f32 %v1888, 1.442695
  %v2065 = vpow.pop %v2064
  %v2066 = vmul.f32 %v1889, 1.442695
  %v2067 = vpow.pop %v2066
  %v2068 = vmul.f32 %v1890, 1.442695
  %v2069 = vpow.pop %v2068
  %v2070 = vmul.f32 %v1891, 1.442695
  %v2071 = vpow.pop %v2070
  %v2072 = vmul.f32 %v1892, 1.442695
  %v2073 = vpow.pop %v2072
  %v2074 = vmul.f32 %v1893, 1.442695
  %v2075 = vpow.pop %v2074
  %v2076 = vmul.f32 %v1894, 1.442695
  %v2077 = vpow.pop %v2076
  %v2078 = vmul.f32 %v1895, 1.442695
  %v2079 = vpow.pop %v2078
  %v2080 = vmul.f32 %v1896, 1.442695
  %v2081 = vpow.pop %v2080
  %v2082 = vmul.f32 %v1897, 1.442695
  %v2083 = vpow.pop %v2082
  %v2084 = vmul.f32 %v1898, 1.442695
  %v2085 = vpow.pop %v2084
  %v2086 = vmul.f32 %v1899, 1.442695
  %v2087 = vpow.pop %v2086
  %v2088 = vmul.f32 %v1900, 1.442695
  %v2089 = vpow.pop %v2088
  %v2090 = vmul.f32 %v1901, 1.442695
  %v2091 = vpow.pop %v2090
  %v2092 = vmul.f32 %v1902, 1.442695
  %v2093 = vpow.pop %v2092
  %v2094 = vmul.f32 %v1903, 1.442695
  %v2095 = vpow.pop %v2094
  %v2096 = vmul.f32 %v1904, 1.442695
  %v2097 = vpow.pop %v2096
  %v2098 = vmul.f32 %v1905, 1.442695
  %v2099 = vpow.pop %v2098
  %v2100 = vmul.f32 %v1906, 1.442695
  %v2101 = vpow.pop %v2100
  %v2102 = vmul.f32 %v1907, 1.442695
  %v2103 = vpow.pop %v2102
  %v2104 = vmul.f32 %v1908, 1.442695
  %v2105 = vpow.pop %v2104
  %v2106 = vmul.f32 %v1909, 1.442695
  %v2107 = vpow.pop %v2106
  %v2108 = vmul.f32 %v1910, 1.442695
  %v2109 = vpow.pop %v2108
  %v2110 = vmul.f32 %v1911, 1.442695
  %v2111 = vpow.pop %v2110
  %v2112 = vmul.f32 %v1912, 1.442695
  %v2113 = vpow.pop %v2112
  %v2114 = vmul.f32 %v1913, 1.442695
  %v2115 = vpow.pop %v2114
  %v2116 = vmul.f32 %v1914, 1.442695
  %v2117 = vpow.pop %v2116
  %v2118 = vmul.f32 %v1915, 1.442695
  %v2119 = vpow.pop %v2118
  %v2120 = vmul.f32 %v1916, 1.442695
  %v2121 = vpow.pop %v2120
  %v2122 = vmul.f32 %v1917, 1.442695
  %v2123 = vpow.pop %v2122
  %v2124 = vmul.f32 %v1918, 1.442695
  %v2125 = vpow.pop %v2124
  %v2126 = vmul.f32 %v1919, 1.442695
  %v2127 = vpow.pop %v2126
  %v2128 = vmul.f32 %v1920, 1.442695
  %v2129 = vpow.pop %v2128
  %v2130 = vmul.f32 %v1921, 1.442695
  %v2131 = vpow.pop %v2130
  %v2132 = vmul.f32 %v1922, 1.442695
  %v2133 = vpow.pop %v2132
  %v2134 = vmul.f32 %v1923, 1.442695
  %v2135 = vpow.pop %v2134
  %v2136 = vmul.f32 %v1924, 1.442695
  %v2137 = vpow.pop %v2136
  %v2138 = vmul.f32 %v1925, 1.442695
  %v2139 = vpow.pop %v2138
  %v2140 = vmul.f32 %v1926, 1.442695
  %v2141 = vpow.pop %v2140
  %v2142 = vmul.f32 %v1927, 1.442695
  %v2143 = vpow.pop %v2142
  %v2144 = vmul.f32 %v1928, 1.442695
  %v2145 = vpow.pop %v2144
  %v2146 = vmul.f32 %v1929, 1.442695
  %v2147 = vpow.pop %v2146
  %v2148 = vmul.f32 %v1930, 1.442695
  %v2149 = vpow.pop %v2148
  %v2150 = vmul.f32 %v1931, 1.442695
  %v2151 = vpow.pop %v2150
  %v2152 = vmul.f32 %v1932, 1.442695
  %v2153 = vpow.pop %v2152
  %v2154 = vmul.f32 %v1933, 1.442695
  %v2155 = vpow.pop %v2154
  %v2156 = vmul.f32 %v1934, 1.442695
  %v2157 = vpow.pop %v2156
  %v2158 = vmul.f32 %v1935, 1.442695
  %v2159 = vpow.pop %v2158
  %v2160 = vmul.f32 %v1936, 1.442695
  %v2161 = vpow.pop %v2160
  %v2162 = vmul.f32 %v1937, 1.442695
  %v2163 = vpow.pop %v2162
  %v2164 = vmul.f32 %v1938, 1.442695
  %v2165 = vpow.pop %v2164
  %v2166 = vmul.f32 %v1939, 1.442695
  %v2167 = vpow.pop %v2166
  %v2168 = vmul.f32 %v1940, 1.442695
  %v2169 = vpow.pop %v2168
  %v2170 = vmul.f32 %v1941, 1.442695
  %v2171 = vpow.pop %v2170
  %v2172 = vmul.f32 %v1942, 1.442695
  %v2173 = vpow.pop %v2172
  %v2174 = vmul.f32 %v1943, 1.442695
  %v2175 = vpow.pop %v2174
  %v2176 = vmul.f32 %v1944, 1.442695
  %v2177 = vpow.pop %v2176
  %v2178 = vmul.f32 %v1945, 1.442695
  %v2179 = vpow.pop %v2178
  %v2180 = vmul.f32 %v1946, 1.442695
  %v2181 = vpow.pop %v2180
  %v2182 = vmul.f32 %v1947, 1.442695
  %v2183 = vpow.pop %v2182
  %v2184 = vmul.f32 %v1948, 1.442695
  %v2185 = vpow.pop %v2184
  %v2186 = vmul.f32 %v1949, 1.442695
  %v2187 = vpow.pop %v2186
  %v2188 = vmul.f32 %v1950, 1.442695
  %v2189 = vpow.pop %v2188
  %v2190 = vmul.f32 %v1951, 1.442695
  %v2191 = vpow.pop %v2190
  %v2192 = vmul.f32 %v1952, 1.442695
  %v2193 = vpow.pop %v2192
  %v2194 = vmul.f32 %v1953, 1.442695
  %v2195 = vpow.pop %v2194
  %v2196 = vmul.f32 %v1954, 1.442695
  %v2197 = vpow.pop %v2196
  %v2198 = vmul.f32 %v1955, 1.442695
  %v2199 = vpow.pop %v2198
  %v2200 = vmul.f32 %v1956, 1.442695
  %v2201 = vpow.pop %v2200
  %v2202 = vmul.f32 %v1957, 1.442695
  %v2203 = vpow.pop %v2202
  %v2204 = vmul.f32 %v1958, 1.442695
  %v2205 = vpow.pop %v2204
  %v2206 = vmul.f32 %v1959, 1.442695
  %v2207 = vpow.pop %v2206
  %v2208 = vmul.f32 %v1960, 1.442695
  %v2209 = vpow.pop %v2208
  %v2210 = vmul.f32 %v1961, 1.442695
  %v2211 = vpow.pop %v2210
  %v2212 = vmul.f32 %v1962, 1.442695
  %v2213 = vpow.pop %v2212
  %v2214 = vmul.f32 %v1963, 1.442695
  %v2215 = vpow.pop %v2214
  %v2216 = vmul.f32 %v1964, 1.442695
  %v2217 = vpow.pop %v2216
  %v2218 = vmul.f32 %v1965, 1.442695
  %v2219 = vpow.pop %v2218
  %v2220 = vmul.f32 %v1966, 1.442695
  %v2221 = vpow.pop %v2220
  %v2222 = vmul.f32 %v1967, 1.442695
  %v2223 = vpow.pop %v2222
  %2224 = vadd.xlane.f32.xlu0 %v1969
  %v2225 = vpop.xlane.xlu0 %2224
  %2226 = vadd.xlane.f32.xlu0 %v1971
  %v2227 = vpop.xlane.xlu0 %2226
  %2228 = vadd.xlane.f32.xlu0 %v1973
  %v2229 = vpop.xlane.xlu0 %2228
  %2230 = vadd.xlane.f32.xlu0 %v1975
  %v2231 = vpop.xlane.xlu0 %2230
  %2232 = vadd.xlane.f32.xlu0 %v1977
  %v2233 = vpop.xlane.xlu0 %2232
  %2234 = vadd.xlane.f32.xlu0 %v1979
  %v2235 = vpop.xlane.xlu0 %2234
  %2236 = vadd.xlane.f32.xlu0 %v1981
  %v2237 = vpop.xlane.xlu0 %2236
  %2238 = vadd.xlane.f32.xlu0 %v1983
  %v2239 = vpop.xlane.xlu0 %2238
  %2240 = vadd.xlane.f32.xlu0 %v1985
  %v2241 = vpop.xlane.xlu0 %2240
  %2242 = vadd.xlane.f32.xlu0 %v1987
  %v2243 = vpop.xlane.xlu0 %2242
  %2244 = vadd.xlane.f32.xlu0 %v1989
  %v2245 = vpop.xlane.xlu0 %2244
  %2246 = vadd.xlane.f32.xlu0 %v1991
  %v2247 = vpop.xlane.xlu0 %2246
  %2248 = vadd.xlane.f32.xlu0 %v1993
  %v2249 = vpop.xlane.xlu0 %2248
  %2250 = vadd.xlane.f32.xlu0 %v1995
  %v2251 = vpop.xlane.xlu0 %2250
  %2252 = vadd.xlane.f32.xlu0 %v1997
  %v2253 = vpop.xlane.xlu0 %2252
  %2254 = vadd.xlane.f32.xlu0 %v1999
  %v2255 = vpop.xlane.xlu0 %2254
  %2256 = vadd.xlane.f32.xlu0 %v2001
  %v2257 = vpop.xlane.xlu0 %2256
  %2258 = vadd.xlane.f32.xlu0 %v2003
  %v2259 = vpop.xlane.xlu0 %2258
  %2260 = vadd.xlane.f32.xlu0 %v2005
  %v2261 = vpop.xlane.xlu0 %2260
  %2262 = vadd.xlane.f32.xlu0 %v2007
  %v2263 = vpop.xlane.xlu0 %2262
  %2264 = vadd.xlane.f32.xlu0 %v2009
  %v2265 = vpop.xlane.xlu0 %2264
  %2266 = vadd.xlane.f32.xlu0 %v2011
  %v2267 = vpop.xlane.xlu0 %2266
  %2268 = vadd.xlane.f32.xlu0 %v2013
  %v2269 = vpop.xlane.xlu0 %2268
  %2270 = vadd.xlane.f32.xlu0 %v2015
  %v2271 = vpop.xlane.xlu0 %2270
  %2272 = vadd.xlane.f32.xlu0 %v2017
  %v2273 = vpop.xlane.xlu0 %2272
  %2274 = vadd.xlane.f32.xlu0 %v2019
  %v2275 = vpop.xlane.xlu0 %2274
  %2276 = vadd.xlane.f32.xlu0 %v2021
  %v2277 = vpop.xlane.xlu0 %2276
  %2278 = vadd.xlane.f32.xlu0 %v2023
  %v2279 = vpop.xlane.xlu0 %2278
  %2280 = vadd.xlane.f32.xlu0 %v2025
  %v2281 = vpop.xlane.xlu0 %2280
  %2282 = vadd.xlane.f32.xlu0 %v2027
  %v2283 = vpop.xlane.xlu0 %2282
  %2284 = vadd.xlane.f32.xlu0 %v2029
  %v2285 = vpop.xlane.xlu0 %2284
  %2286 = vadd.xlane.f32.xlu0 %v2031
  %v2287 = vpop.xlane.xlu0 %2286
  %2288 = vadd.xlane.f32.xlu0 %v2033
  %v2289 = vpop.xlane.xlu0 %2288
  %2290 = vadd.xlane.f32.xlu0 %v2035
  %v2291 = vpop.xlane.xlu0 %2290
  %2292 = vadd.xlane.f32.xlu0 %v2037
  %v2293 = vpop.xlane.xlu0 %2292
  %2294 = vadd.xlane.f32.xlu0 %v2039
  %v2295 = vpop.xlane.xlu0 %2294
  %2296 = vadd.xlane.f32.xlu0 %v2041
  %v2297 = vpop.xlane.xlu0 %2296
  %2298 = vadd.xlane.f32.xlu0 %v2043
  %v2299 = vpop.xlane.xlu0 %2298
  %2300 = vadd.xlane.f32.xlu0 %v2045
  %v2301 = vpop.xlane.xlu0 %2300
  %2302 = vadd.xlane.f32.xlu0 %v2047
  %v2303 = vpop.xlane.xlu0 %2302
  %2304 = vadd.xlane.f32.xlu0 %v2049
  %v2305 = vpop.xlane.xlu0 %2304
  %2306 = vadd.xlane.f32.xlu0 %v2051
  %v2307 = vpop.xlane.xlu0 %2306
  %2308 = vadd.xlane.f32.xlu0 %v2053
  %v2309 = vpop.xlane.xlu0 %2308
  %2310 = vadd.xlane.f32.xlu0 %v2055
  %v2311 = vpop.xlane.xlu0 %2310
  %2312 = vadd.xlane.f32.xlu0 %v2057
  %v2313 = vpop.xlane.xlu0 %2312
  %2314 = vadd.xlane.f32.xlu0 %v2059
  %v2315 = vpop.xlane.xlu0 %2314
  %2316 = vadd.xlane.f32.xlu0 %v2061
  %v2317 = vpop.xlane.xlu0 %2316
  %2318 = vadd.xlane.f32.xlu0 %v2063
  %v2319 = vpop.xlane.xlu0 %2318
  %2320 = vadd.xlane.f32.xlu0 %v2065
  %v2321 = vpop.xlane.xlu0 %2320
  %2322 = vadd.xlane.f32.xlu0 %v2067
  %v2323 = vpop.xlane.xlu0 %2322
  %2324 = vadd.xlane.f32.xlu0 %v2069
  %v2325 = vpop.xlane.xlu0 %2324
  %2326 = vadd.xlane.f32.xlu0 %v2071
  %v2327 = vpop.xlane.xlu0 %2326
  %2328 = vadd.xlane.f32.xlu0 %v2073
  %v2329 = vpop.xlane.xlu0 %2328
  %2330 = vadd.xlane.f32.xlu0 %v2075
  %v2331 = vpop.xlane.xlu0 %2330
  %2332 = vadd.xlane.f32.xlu0 %v2077
  %v2333 = vpop.xlane.xlu0 %2332
  %2334 = vadd.xlane.f32.xlu0 %v2079
  %v2335 = vpop.xlane.xlu0 %2334
  %2336 = vadd.xlane.f32.xlu0 %v2081
  %v2337 = vpop.xlane.xlu0 %2336
  %2338 = vadd.xlane.f32.xlu0 %v2083
  %v2339 = vpop.xlane.xlu0 %2338
  %2340 = vadd.xlane.f32.xlu0 %v2085
  %v2341 = vpop.xlane.xlu0 %2340
  %2342 = vadd.xlane.f32.xlu0 %v2087
  %v2343 = vpop.xlane.xlu0 %2342
  %2344 = vadd.xlane.f32.xlu0 %v2089
  %v2345 = vpop.xlane.xlu0 %2344
  %2346 = vadd.xlane.f32.xlu0 %v2091
  %v2347 = vpop.xlane.xlu0 %2346
  %2348 = vadd.xlane.f32.xlu0 %v2093
  %v2349 = vpop.xlane.xlu0 %2348
  %2350 = vadd.xlane.f32.xlu0 %v2095
  %v2351 = vpop.xlane.xlu0 %2350
  %2352 = vadd.xlane.f32.xlu0 %v2097
  %v2353 = vpop.xlane.xlu0 %2352
  %2354 = vadd.xlane.f32.xlu0 %v2099
  %v2355 = vpop.xlane.xlu0 %2354
  %2356 = vadd.xlane.f32.xlu0 %v2101
  %v2357 = vpop.xlane.xlu0 %2356
  %2358 = vadd.xlane.f32.xlu0 %v2103
  %v2359 = vpop.xlane.xlu0 %2358
  %2360 = vadd.xlane.f32.xlu0 %v2105
  %v2361 = vpop.xlane.xlu0 %2360
  %2362 = vadd.xlane.f32.xlu0 %v2107
  %v2363 = vpop.xlane.xlu0 %2362
  %2364 = vadd.xlane.f32.xlu0 %v2109
  %v2365 = vpop.xlane.xlu0 %2364
  %2366 = vadd.xlane.f32.xlu0 %v2111
  %v2367 = vpop.xlane.xlu0 %2366
  %2368 = vadd.xlane.f32.xlu0 %v2113
  %v2369 = vpop.xlane.xlu0 %2368
  %2370 = vadd.xlane.f32.xlu0 %v2115
  %v2371 = vpop.xlane.xlu0 %2370
  %2372 = vadd.xlane.f32.xlu0 %v2117
  %v2373 = vpop.xlane.xlu0 %2372
  %2374 = vadd.xlane.f32.xlu0 %v2119
  %v2375 = vpop.xlane.xlu0 %2374
  %2376 = vadd.xlane.f32.xlu0 %v2121
  %v2377 = vpop.xlane.xlu0 %2376
  %2378 = vadd.xlane.f32.xlu0 %v2123
  %v2379 = vpop.xlane.xlu0 %2378
  %2380 = vadd.xlane.f32.xlu0 %v2125
  %v2381 = vpop.xlane.xlu0 %2380
  %2382 = vadd.xlane.f32.xlu0 %v2127
  %v2383 = vpop.xlane.xlu0 %2382
  %2384 = vadd.xlane.f32.xlu0 %v2129
  %v2385 = vpop.xlane.xlu0 %2384
  %2386 = vadd.xlane.f32.xlu0 %v2131
  %v2387 = vpop.xlane.xlu0 %2386
  %2388 = vadd.xlane.f32.xlu0 %v2133
  %v2389 = vpop.xlane.xlu0 %2388
  %2390 = vadd.xlane.f32.xlu0 %v2135
  %v2391 = vpop.xlane.xlu0 %2390
  %2392 = vadd.xlane.f32.xlu0 %v2137
  %v2393 = vpop.xlane.xlu0 %2392
  %2394 = vadd.xlane.f32.xlu0 %v2139
  %v2395 = vpop.xlane.xlu0 %2394
  %2396 = vadd.xlane.f32.xlu0 %v2141
  %v2397 = vpop.xlane.xlu0 %2396
  %2398 = vadd.xlane.f32.xlu0 %v2143
  %v2399 = vpop.xlane.xlu0 %2398
  %2400 = vadd.xlane.f32.xlu0 %v2145
  %v2401 = vpop.xlane.xlu0 %2400
  %2402 = vadd.xlane.f32.xlu0 %v2147
  %v2403 = vpop.xlane.xlu0 %2402
  %2404 = vadd.xlane.f32.xlu0 %v2149
  %v2405 = vpop.xlane.xlu0 %2404
  %2406 = vadd.xlane.f32.xlu0 %v2151
  %v2407 = vpop.xlane.xlu0 %2406
  %2408 = vadd.xlane.f32.xlu0 %v2153
  %v2409 = vpop.xlane.xlu0 %2408
  %2410 = vadd.xlane.f32.xlu0 %v2155
  %v2411 = vpop.xlane.xlu0 %2410
  %2412 = vadd.xlane.f32.xlu0 %v2157
  %v2413 = vpop.xlane.xlu0 %2412
  %2414 = vadd.xlane.f32.xlu0 %v2159
  %v2415 = vpop.xlane.xlu0 %2414
  %2416 = vadd.xlane.f32.xlu0 %v2161
  %v2417 = vpop.xlane.xlu0 %2416
  %2418 = vadd.xlane.f32.xlu0 %v2163
  %v2419 = vpop.xlane.xlu0 %2418
  %2420 = vadd.xlane.f32.xlu0 %v2165
  %v2421 = vpop.xlane.xlu0 %2420
  %2422 = vadd.xlane.f32.xlu0 %v2167
  %v2423 = vpop.xlane.xlu0 %2422
  %2424 = vadd.xlane.f32.xlu0 %v2169
  %v2425 = vpop.xlane.xlu0 %2424
  %2426 = vadd.xlane.f32.xlu0 %v2171
  %v2427 = vpop.xlane.xlu0 %2426
  %2428 = vadd.xlane.f32.xlu0 %v2173
  %v2429 = vpop.xlane.xlu0 %2428
  %2430 = vadd.xlane.f32.xlu0 %v2175
  %v2431 = vpop.xlane.xlu0 %2430
  %2432 = vadd.xlane.f32.xlu0 %v2177
  %v2433 = vpop.xlane.xlu0 %2432
  %2434 = vadd.xlane.f32.xlu0 %v2179
  %v2435 = vpop.xlane.xlu0 %2434
  %2436 = vadd.xlane.f32.xlu0 %v2181
  %v2437 = vpop.xlane.xlu0 %2436
  %2438 = vadd.xlane.f32.xlu0 %v2183
  %v2439 = vpop.xlane.xlu0 %2438
  %2440 = vadd.xlane.f32.xlu0 %v2185
  %v2441 = vpop.xlane.xlu0 %2440
  %2442 = vadd.xlane.f32.xlu0 %v2187
  %v2443 = vpop.xlane.xlu0 %2442
  %2444 = vadd.xlane.f32.xlu0 %v2189
  %v2445 = vpop.xlane.xlu0 %2444
  %2446 = vadd.xlane.f32.xlu0 %v2191
  %v2447 = vpop.xlane.xlu0 %2446
  %2448 = vadd.xlane.f32.xlu0 %v2193
  %v2449 = vpop.xlane.xlu0 %2448
  %2450 = vadd.xlane.f32.xlu0 %v2195
  %v2451 = vpop.xlane.xlu0 %2450
  %2452 = vadd.xlane.f32.xlu0 %v2197
  %v2453 = vpop.xlane.xlu0 %2452
  %2454 = vadd.xlane.f32.xlu0 %v2199
  %v2455 = vpop.xlane.xlu0 %2454
  %2456 = vadd.xlane.f32.xlu0 %v2201
  %v2457 = vpop.xlane.xlu0 %2456
  %2458 = vadd.xlane.f32.xlu0 %v2203
  %v2459 = vpop.xlane.xlu0 %2458
  %2460 = vadd.xlane.f32.xlu0 %v2205
  %v2461 = vpop.xlane.xlu0 %2460
  %2462 = vadd.xlane.f32.xlu0 %v2207
  %v2463 = vpop.xlane.xlu0 %2462
  %2464 = vadd.xlane.f32.xlu0 %v2209
  %v2465 = vpop.xlane.xlu0 %2464
  %2466 = vadd.xlane.f32.xlu0 %v2211
  %v2467 = vpop.xlane.xlu0 %2466
  %2468 = vadd.xlane.f32.xlu0 %v2213
  %v2469 = vpop.xlane.xlu0 %2468
  %2470 = vadd.xlane.f32.xlu0 %v2215
  %v2471 = vpop.xlane.xlu0 %2470
  %2472 = vadd.xlane.f32.xlu0 %v2217
  %v2473 = vpop.xlane.xlu0 %2472
  %2474 = vadd.xlane.f32.xlu0 %v2219
  %v2475 = vpop.xlane.xlu0 %2474
  %2476 = vadd.xlane.f32.xlu0 %v2221
  %v2477 = vpop.xlane.xlu0 %2476
  %2478 = vadd.xlane.f32.xlu0 %v2223
  %v2479 = vpop.xlane.xlu0 %2478
  %v2480 = vrcp.pop %v2225
  %v2481 = vrcp.pop %v2227
  %v2482 = vrcp.pop %v2229
  %v2483 = vrcp.pop %v2231
  %v2484 = vrcp.pop %v2233
  %v2485 = vrcp.pop %v2235
  %v2486 = vrcp.pop %v2237
  %v2487 = vrcp.pop %v2239
  %v2488 = vrcp.pop %v2241
  %v2489 = vrcp.pop %v2243
  %v2490 = vrcp.pop %v2245
  %v2491 = vrcp.pop %v2247
  %v2492 = vrcp.pop %v2249
  %v2493 = vrcp.pop %v2251
  %v2494 = vrcp.pop %v2253
  %v2495 = vrcp.pop %v2255
  %v2496 = vrcp.pop %v2257
  %v2497 = vrcp.pop %v2259
  %v2498 = vrcp.pop %v2261
  %v2499 = vrcp.pop %v2263
  %v2500 = vrcp.pop %v2265
  %v2501 = vrcp.pop %v2267
  %v2502 = vrcp.pop %v2269
  %v2503 = vrcp.pop %v2271
  %v2504 = vrcp.pop %v2273
  %v2505 = vrcp.pop %v2275
  %v2506 = vrcp.pop %v2277
  %v2507 = vrcp.pop %v2279
  %v2508 = vrcp.pop %v2281
  %v2509 = vrcp.pop %v2283
  %v2510 = vrcp.pop %v2285
  %v2511 = vrcp.pop %v2287
  %v2512 = vrcp.pop %v2289
  %v2513 = vrcp.pop %v2291
  %v2514 = vrcp.pop %v2293
  %v2515 = vrcp.pop %v2295
  %v2516 = vrcp.pop %v2297
  %v2517 = vrcp.pop %v2299
  %v2518 = vrcp.pop %v2301
  %v2519 = vrcp.pop %v2303
  %v2520 = vrcp.pop %v2305
  %v2521 = vrcp.pop %v2307
  %v2522 = vrcp.pop %v2309
  %v2523 = vrcp.pop %v2311
  %v2524 = vrcp.pop %v2313
  %v2525 = vrcp.pop %v2315
  %v2526 = vrcp.pop %v2317
  %v2527 = vrcp.pop %v2319
  %v2528 = vrcp.pop %v2321
  %v2529 = vrcp.pop %v2323
  %v2530 = vrcp.pop %v2325
  %v2531 = vrcp.pop %v2327
  %v2532 = vrcp.pop %v2329
  %v2533 = vrcp.pop %v2331
  %v2534 = vrcp.pop %v2333
  %v2535 = vrcp.pop %v2335
  %v2536 = vrcp.pop %v2337
  %v2537 = vrcp.pop %v2339
  %v2538 = vrcp.pop %v2341
  %v2539 = vrcp.pop %v2343
  %v2540 = vrcp.pop %v2345
  %v2541 = vrcp.pop %v2347
  %v2542 = vrcp.pop %v2349
  %v2543 = vrcp.pop %v2351
  %v2544 = vrcp.pop %v2353
  %v2545 = vrcp.pop %v2355
  %v2546 = vrcp.pop %v2357
  %v2547 = vrcp.pop %v2359
  %v2548 = vrcp.pop %v2361
  %v2549 = vrcp.pop %v2363
  %v2550 = vrcp.pop %v2365
  %v2551 = vrcp.pop %v2367
  %v2552 = vrcp.pop %v2369
  %v2553 = vrcp.pop %v2371
  %v2554 = vrcp.pop %v2373
  %v2555 = vrcp.pop %v2375
  %v2556 = vrcp.pop %v2377
  %v2557 = vrcp.pop %v2379
  %v2558 = vrcp.pop %v2381
  %v2559 = vrcp.pop %v2383
  %v2560 = vrcp.pop %v2385
  %v2561 = vrcp.pop %v2387
  %v2562 = vrcp.pop %v2389
  %v2563 = vrcp.pop %v2391
  %v2564 = vrcp.pop %v2393
  %v2565 = vrcp.pop %v2395
  %v2566 = vrcp.pop %v2397
  %v2567 = vrcp.pop %v2399
  %v2568 = vrcp.pop %v2401
  %v2569 = vrcp.pop %v2403
  %v2570 = vrcp.pop %v2405
  %v2571 = vrcp.pop %v2407
  %v2572 = vrcp.pop %v2409
  %v2573 = vrcp.pop %v2411
  %v2574 = vrcp.pop %v2413
  %v2575 = vrcp.pop %v2415
  %v2576 = vrcp.pop %v2417
  %v2577 = vrcp.pop %v2419
  %v2578 = vrcp.pop %v2421
  %v2579 = vrcp.pop %v2423
  %v2580 = vrcp.pop %v2425
  %v2581 = vrcp.pop %v2427
  %v2582 = vrcp.pop %v2429
  %v2583 = vrcp.pop %v2431
  %v2584 = vrcp.pop %v2433
  %v2585 = vrcp.pop %v2435
  %v2586 = vrcp.pop %v2437
  %v2587 = vrcp.pop %v2439
  %v2588 = vrcp.pop %v2441
  %v2589 = vrcp.pop %v2443
  %v2590 = vrcp.pop %v2445
  %v2591 = vrcp.pop %v2447
  %v2592 = vrcp.pop %v2449
  %v2593 = vrcp.pop %v2451
  %v2594 = vrcp.pop %v2453
  %v2595 = vrcp.pop %v2455
  %v2596 = vrcp.pop %v2457
  %v2597 = vrcp.pop %v2459
  %v2598 = vrcp.pop %v2461
  %v2599 = vrcp.pop %v2463
  %v2600 = vrcp.pop %v2465
  %v2601 = vrcp.pop %v2467
  %v2602 = vrcp.pop %v2469
  %v2603 = vrcp.pop %v2471
  %v2604 = vrcp.pop %v2473
  %v2605 = vrcp.pop %v2475
  %v2606 = vrcp.pop %v2477
  %v2607 = vrcp.pop %v2479
  %v2608 = vmul.f32 %v2225, %v2480
  %v2609 = vmul.f32 %v2227, %v2481
  %v2610 = vmul.f32 %v2229, %v2482
  %v2611 = vmul.f32 %v2231, %v2483
  %v2612 = vmul.f32 %v2233, %v2484
  %v2613 = vmul.f32 %v2235, %v2485
  %v2614 = vmul.f32 %v2237, %v2486
  %v2615 = vmul.f32 %v2239, %v2487
  %v2616 = vmul.f32 %v2241, %v2488
  %v2617 = vmul.f32 %v2243, %v2489
  %v2618 = vmul.f32 %v2245, %v2490
  %v2619 = vmul.f32 %v2247, %v2491
  %v2620 = vmul.f32 %v2249, %v2492
  %v2621 = vmul.f32 %v2251, %v2493
  %v2622 = vmul.f32 %v2253, %v2494
  %v2623 = vmul.f32 %v2255, %v2495
  %v2624 = vmul.f32 %v2257, %v2496
  %v2625 = vmul.f32 %v2259, %v2497
  %v2626 = vmul.f32 %v2261, %v2498
  %v2627 = vmul.f32 %v2263, %v2499
  %v2628 = vmul.f32 %v2265, %v2500
  %v2629 = vmul.f32 %v2267, %v2501
  %v2630 = vmul.f32 %v2269, %v2502
  %v2631 = vmul.f32 %v2271, %v2503
  %v2632 = vmul.f32 %v2273, %v2504
  %v2633 = vmul.f32 %v2275, %v2505
  %v2634 = vmul.f32 %v2277, %v2506
  %v2635 = vmul.f32 %v2279, %v2507
  %v2636 = vmul.f32 %v2281, %v2508
  %v2637 = vmul.f32 %v2283, %v2509
  %v2638 = vmul.f32 %v2285, %v2510
  %v2639 = vmul.f32 %v2287, %v2511
  %v2640 = vmul.f32 %v2289, %v2512
  %v2641 = vmul.f32 %v2291, %v2513
  %v2642 = vmul.f32 %v2293, %v2514
  %v2643 = vmul.f32 %v2295, %v2515
  %v2644 = vmul.f32 %v2297, %v2516
  %v2645 = vmul.f32 %v2299, %v2517
  %v2646 = vmul.f32 %v2301, %v2518
  %v2647 = vmul.f32 %v2303, %v2519
  %v2648 = vmul.f32 %v2305, %v2520
  %v2649 = vmul.f32 %v2307, %v2521
  %v2650 = vmul.f32 %v2309, %v2522
  %v2651 = vmul.f32 %v2311, %v2523
  %v2652 = vmul.f32 %v2313, %v2524
  %v2653 = vmul.f32 %v2315, %v2525
  %v2654 = vmul.f32 %v2317, %v2526
  %v2655 = vmul.f32 %v2319, %v2527
  %v2656 = vmul.f32 %v2321, %v2528
  %v2657 = vmul.f32 %v2323, %v2529
  %v2658 = vmul.f32 %v2325, %v2530
  %v2659 = vmul.f32 %v2327, %v2531
  %v2660 = vmul.f32 %v2329, %v2532
  %v2661 = vmul.f32 %v2331, %v2533
  %v2662 = vmul.f32 %v2333, %v2534
  %v2663 = vmul.f32 %v2335, %v2535
  %v2664 = vmul.f32 %v2337, %v2536
  %v2665 = vmul.f32 %v2339, %v2537
  %v2666 = vmul.f32 %v2341, %v2538
  %v2667 = vmul.f32 %v2343, %v2539
  %v2668 = vmul.f32 %v2345, %v2540
  %v2669 = vmul.f32 %v2347, %v2541
  %v2670 = vmul.f32 %v2349, %v2542
  %v2671 = vmul.f32 %v2351, %v2543
  %v2672 = vmul.f32 %v2353, %v2544
  %v2673 = vmul.f32 %v2355, %v2545
  %v2674 = vmul.f32 %v2357, %v2546
  %v2675 = vmul.f32 %v2359, %v2547
  %v2676 = vmul.f32 %v2361, %v2548
  %v2677 = vmul.f32 %v2363, %v2549
  %v2678 = vmul.f32 %v2365, %v2550
  %v2679 = vmul.f32 %v2367, %v2551
  %v2680 = vmul.f32 %v2369, %v2552
  %v2681 = vmul.f32 %v2371, %v2553
  %v2682 = vmul.f32 %v2373, %v2554
  %v2683 = vmul.f32 %v2375, %v2555
  %v2684 = vmul.f32 %v2377, %v2556
  %v2685 = vmul.f32 %v2379, %v2557
  %v2686 = vmul.f32 %v2381, %v2558
  %v2687 = vmul.f32 %v2383, %v2559
  %v2688 = vmul.f32 %v2385, %v2560
  %v2689 = vmul.f32 %v2387, %v2561
  %v2690 = vmul.f32 %v2389, %v2562
  %v2691 = vmul.f32 %v2391, %v2563
  %v2692 = vmul.f32 %v2393, %v2564
  %v2693 = vmul.f32 %v2395, %v2565
  %v2694 = vmul.f32 %v2397, %v2566
  %v2695 = vmul.f32 %v2399, %v2567
  %v2696 = vmul.f32 %v2401, %v2568
  %v2697 = vmul.f32 %v2403, %v2569
  %v2698 = vmul.f32 %v2405, %v2570
  %v2699 = vmul.f32 %v2407, %v2571
  %v2700 = vmul.f32 %v2409, %v2572
  %v2701 = vmul.f32 %v2411, %v2573
  %v2702 = vmul.f32 %v2413, %v2574
  %v2703 = vmul.f32 %v2415, %v2575
  %v2704 = vmul.f32 %v2417, %v2576
  %v2705 = vmul.f32 %v2419, %v2577
  %v2706 = vmul.f32 %v2421, %v2578
  %v2707 = vmul.f32 %v2423, %v2579
  %v2708 = vmul.f32 %v2425, %v2580
  %v2709 = vmul.f32 %v2427, %v2581
  %v2710 = vmul.f32 %v2429, %v2582
  %v2711 = vmul.f32 %v2431, %v2583
  %v2712 = vmul.f32 %v2433, %v2584
  %v2713 = vmul.f32 %v2435, %v2585
  %v2714 = vmul.f32 %v2437, %v2586
  %v2715 = vmul.f32 %v2439, %v2587
  %v2716 = vmul.f32 %v2441, %v2588
  %v2717 = vmul.f32 %v2443, %v2589
  %v2718 = vmul.f32 %v2445, %v2590
  %v2719 = vmul.f32 %v2447, %v2591
  %v2720 = vmul.f32 %v2449, %v2592
  %v2721 = vmul.f32 %v2451, %v2593
  %v2722 = vmul.f32 %v2453, %v2594
  %v2723 = vmul.f32 %v2455, %v2595
  %v2724 = vmul.f32 %v2457, %v2596
  %v2725 = vmul.f32 %v2459, %v2597
  %v2726 = vmul.f32 %v2461, %v2598
  %v2727 = vmul.f32 %v2463, %v2599
  %v2728 = vmul.f32 %v2465, %v2600
  %v2729 = vmul.f32 %v2467, %v2601
  %v2730 = vmul.f32 %v2469, %v2602
  %v2731 = vmul.f32 %v2471, %v2603
  %v2732 = vmul.f32 %v2473, %v2604
  %v2733 = vmul.f32 %v2475, %v2605
  %v2734 = vmul.f32 %v2477, %v2606
  %v2735 = vmul.f32 %v2479, %v2607
  %v2736 = vsub.f32 2.0, %v2608
  %v2737 = vsub.f32 2.0, %v2609
  %v2738 = vsub.f32 2.0, %v2610
  %v2739 = vsub.f32 2.0, %v2611
  %v2740 = vsub.f32 2.0, %v2612
  %v2741 = vsub.f32 2.0, %v2613
  %v2742 = vsub.f32 2.0, %v2614
  %v2743 = vsub.f32 2.0, %v2615
  %v2744 = vsub.f32 2.0, %v2616
  %v2745 = vsub.f32 2.0, %v2617
  %v2746 = vsub.f32 2.0, %v2618
  %v2747 = vsub.f32 2.0, %v2619
  %v2748 = vsub.f32 2.0, %v2620
  %v2749 = vsub.f32 2.0, %v2621
  %v2750 = vsub.f32 2.0, %v2622
  %v2751 = vsub.f32 2.0, %v2623
  %v2752 = vsub.f32 2.0, %v2624
  %v2753 = vsub.f32 2.0, %v2625
  %v2754 = vsub.f32 2.0, %v2626
  %v2755 = vsub.f32 2.0, %v2627
  %v2756 = vsub.f32 2.0, %v2628
  %v2757 = vsub.f32 2.0, %v2629
  %v2758 = vsub.f32 2.0, %v2630
  %v2759 = vsub.f32 2.0, %v2631
  %v2760 = vsub.f32 2.0, %v2632
  %v2761 = vsub.f32 2.0, %v2633
  %v2762 = vsub.f32 2.0, %v2634
  %v2763 = vsub.f32 2.0, %v2635
  %v2764 = vsub.f32 2.0, %v2636
  %v2765 = vsub.f32 2.0, %v2637
  %v2766 = vsub.f32 2.0, %v2638
  %v2767 = vsub.f32 2.0, %v2639
  %v2768 = vsub.f32 2.0, %v2640
  %v2769 = vsub.f32 2.0, %v2641
  %v2770 = vsub.f32 2.0, %v2642
  %v2771 = vsub.f32 2.0, %v2643
  %v2772 = vsub.f32 2.0, %v2644
  %v2773 = vsub.f32 2.0, %v2645
  %v2774 = vsub.f32 2.0, %v2646
  %v2775 = vsub.f32 2.0, %v2647
  %v2776 = vsub.f32 2.0, %v2648
  %v2777 = vsub.f32 2.0, %v2649
  %v2778 = vsub.f32 2.0, %v2650
  %v2779 = vsub.f32 2.0, %v2651
  %v2780 = vsub.f32 2.0, %v2652
  %v2781 = vsub.f32 2.0, %v2653
  %v2782 = vsub.f32 2.0, %v2654
  %v2783 = vsub.f32 2.0, %v2655
  %v2784 = vsub.f32 2.0, %v2656
  %v2785 = vsub.f32 2.0, %v2657
  %v2786 = vsub.f32 2.0, %v2658
  %v2787 = vsub.f32 2.0, %v2659
  %v2788 = vsub.f32 2.0, %v2660
  %v2789 = vsub.f32 2.0, %v2661
  %v2790 = vsub.f32 2.0, %v2662
  %v2791 = vsub.f32 2.0, %v2663
  %v2792 = vsub.f32 2.0, %v2664
  %v2793 = vsub.f32 2.0, %v2665
  %v2794 = vsub.f32 2.0, %v2666
  %v2795 = vsub.f32 2.0, %v2667
  %v2796 = vsub.f32 2.0, %v2668
  %v2797 = vsub.f32 2.0, %v2669
  %v2798 = vsub.f32 2.0, %v2670
  %v2799 = vsub.f32 2.0, %v2671
  %v2800 = vsub.f32 2.0, %v2672
  %v2801 = vsub.f32 2.0, %v2673
  %v2802 = vsub.f32 2.0, %v2674
  %v2803 = vsub.f32 2.0, %v2675
  %v2804 = vsub.f32 2.0, %v2676
  %v2805 = vsub.f32 2.0, %v2677
  %v2806 = vsub.f32 2.0, %v2678
  %v2807 = vsub.f32 2.0, %v2679
  %v2808 = vsub.f32 2.0, %v2680
  %v2809 = vsub.f32 2.0, %v2681
  %v2810 = vsub.f32 2.0, %v2682
  %v2811 = vsub.f32 2.0, %v2683
  %v2812 = vsub.f32 2.0, %v2684
  %v2813 = vsub.f32 2.0, %v2685
  %v2814 = vsub.f32 2.0, %v2686
  %v2815 = vsub.f32 2.0, %v2687
  %v2816 = vsub.f32 2.0, %v2688
  %v2817 = vsub.f32 2.0, %v2689
  %v2818 = vsub.f32 2.0, %v2690
  %v2819 = vsub.f32 2.0, %v2691
  %v2820 = vsub.f32 2.0, %v2692
  %v2821 = vsub.f32 2.0, %v2693
  %v2822 = vsub.f32 2.0, %v2694
  %v2823 = vsub.f32 2.0, %v2695
  %v2824 = vsub.f32 2.0, %v2696
  %v2825 = vsub.f32 2.0, %v2697
  %v2826 = vsub.f32 2.0, %v2698
  %v2827 = vsub.f32 2.0, %v2699
  %v2828 = vsub.f32 2.0, %v2700
  %v2829 = vsub.f32 2.0, %v2701
  %v2830 = vsub.f32 2.0, %v2702
  %v2831 = vsub.f32 2.0, %v2703
  %v2832 = vsub.f32 2.0, %v2704
  %v2833 = vsub.f32 2.0, %v2705
  %v2834 = vsub.f32 2.0, %v2706
  %v2835 = vsub.f32 2.0, %v2707
  %v2836 = vsub.f32 2.0, %v2708
  %v2837 = vsub.f32 2.0, %v2709
  %v2838 = vsub.f32 2.0, %v2710
  %v2839 = vsub.f32 2.0, %v2711
  %v2840 = vsub.f32 2.0, %v2712
  %v2841 = vsub.f32 2.0, %v2713
  %v2842 = vsub.f32 2.0, %v2714
  %v2843 = vsub.f32 2.0, %v2715
  %v2844 = vsub.f32 2.0, %v2716
  %v2845 = vsub.f32 2.0, %v2717
  %v2846 = vsub.f32 2.0, %v2718
  %v2847 = vsub.f32 2.0, %v2719
  %v2848 = vsub.f32 2.0, %v2720
  %v2849 = vsub.f32 2.0, %v2721
  %v2850 = vsub.f32 2.0, %v2722
  %v2851 = vsub.f32 2.0, %v2723
  %v2852 = vsub.f32 2.0, %v2724
  %v2853 = vsub.f32 2.0, %v2725
  %v2854 = vsub.f32 2.0, %v2726
  %v2855 = vsub.f32 2.0, %v2727
  %v2856 = vsub.f32 2.0, %v2728
  %v2857 = vsub.f32 2.0, %v2729
  %v2858 = vsub.f32 2.0, %v2730
  %v2859 = vsub.f32 2.0, %v2731
  %v2860 = vsub.f32 2.0, %v2732
  %v2861 = vsub.f32 2.0, %v2733
  %v2862 = vsub.f32 2.0, %v2734
  %v2863 = vsub.f32 2.0, %v2735
  %v2864 = vmul.f32 %v2480, %v2736
  %v2865 = vmul.f32 %v2481, %v2737
  %v2866 = vmul.f32 %v2482, %v2738
  %v2867 = vmul.f32 %v2483, %v2739
  %v2868 = vmul.f32 %v2484, %v2740
  %v2869 = vmul.f32 %v2485, %v2741
  %v2870 = vmul.f32 %v2486, %v2742
  %v2871 = vmul.f32 %v2487, %v2743
  %v2872 = vmul.f32 %v2488, %v2744
  %v2873 = vmul.f32 %v2489, %v2745
  %v2874 = vmul.f32 %v2490, %v2746
  %v2875 = vmul.f32 %v2491, %v2747
  %v2876 = vmul.f32 %v2492, %v2748
  %v2877 = vmul.f32 %v2493, %v2749
  %v2878 = vmul.f32 %v2494, %v2750
  %v2879 = vmul.f32 %v2495, %v2751
  %v2880 = vmul.f32 %v2496, %v2752
  %v2881 = vmul.f32 %v2497, %v2753
  %v2882 = vmul.f32 %v2498, %v2754
  %v2883 = vmul.f32 %v2499, %v2755
  %v2884 = vmul.f32 %v2500, %v2756
  %v2885 = vmul.f32 %v2501, %v2757
  %v2886 = vmul.f32 %v2502, %v2758
  %v2887 = vmul.f32 %v2503, %v2759
  %v2888 = vmul.f32 %v2504, %v2760
  %v2889 = vmul.f32 %v2505, %v2761
  %v2890 = vmul.f32 %v2506, %v2762
  %v2891 = vmul.f32 %v2507, %v2763
  %v2892 = vmul.f32 %v2508, %v2764
  %v2893 = vmul.f32 %v2509, %v2765
  %v2894 = vmul.f32 %v2510, %v2766
  %v2895 = vmul.f32 %v2511, %v2767
  %v2896 = vmul.f32 %v2512, %v2768
  %v2897 = vmul.f32 %v2513, %v2769
  %v2898 = vmul.f32 %v2514, %v2770
  %v2899 = vmul.f32 %v2515, %v2771
  %v2900 = vmul.f32 %v2516, %v2772
  %v2901 = vmul.f32 %v2517, %v2773
  %v2902 = vmul.f32 %v2518, %v2774
  %v2903 = vmul.f32 %v2519, %v2775
  %v2904 = vmul.f32 %v2520, %v2776
  %v2905 = vmul.f32 %v2521, %v2777
  %v2906 = vmul.f32 %v2522, %v2778
  %v2907 = vmul.f32 %v2523, %v2779
  %v2908 = vmul.f32 %v2524, %v2780
  %v2909 = vmul.f32 %v2525, %v2781
  %v2910 = vmul.f32 %v2526, %v2782
  %v2911 = vmul.f32 %v2527, %v2783
  %v2912 = vmul.f32 %v2528, %v2784
  %v2913 = vmul.f32 %v2529, %v2785
  %v2914 = vmul.f32 %v2530, %v2786
  %v2915 = vmul.f32 %v2531, %v2787
  %v2916 = vmul.f32 %v2532, %v2788
  %v2917 = vmul.f32 %v2533, %v2789
  %v2918 = vmul.f32 %v2534, %v2790
  %v2919 = vmul.f32 %v2535, %v2791
  %v2920 = vmul.f32 %v2536, %v2792
  %v2921 = vmul.f32 %v2537, %v2793
  %v2922 = vmul.f32 %v2538, %v2794
  %v2923 = vmul.f32 %v2539, %v2795
  %v2924 = vmul.f32 %v2540, %v2796
  %v2925 = vmul.f32 %v2541, %v2797
  %v2926 = vmul.f32 %v2542, %v2798
  %v2927 = vmul.f32 %v2543, %v2799
  %v2928 = vmul.f32 %v2544, %v2800
  %v2929 = vmul.f32 %v2545, %v2801
  %v2930 = vmul.f32 %v2546, %v2802
  %v2931 = vmul.f32 %v2547, %v2803
  %v2932 = vmul.f32 %v2548, %v2804
  %v2933 = vmul.f32 %v2549, %v2805
  %v2934 = vmul.f32 %v2550, %v2806
  %v2935 = vmul.f32 %v2551, %v2807
  %v2936 = vmul.f32 %v2552, %v2808
  %v2937 = vmul.f32 %v2553, %v2809
  %v2938 = vmul.f32 %v2554, %v2810
  %v2939 = vmul.f32 %v2555, %v2811
  %v2940 = vmul.f32 %v2556, %v2812
  %v2941 = vmul.f32 %v2557, %v2813
  %v2942 = vmul.f32 %v2558, %v2814
  %v2943 = vmul.f32 %v2559, %v2815
  %v2944 = vmul.f32 %v2560, %v2816
  %v2945 = vmul.f32 %v2561, %v2817
  %v2946 = vmul.f32 %v2562, %v2818
  %v2947 = vmul.f32 %v2563, %v2819
  %v2948 = vmul.f32 %v2564, %v2820
  %v2949 = vmul.f32 %v2565, %v2821
  %v2950 = vmul.f32 %v2566, %v2822
  %v2951 = vmul.f32 %v2567, %v2823
  %v2952 = vmul.f32 %v2568, %v2824
  %v2953 = vmul.f32 %v2569, %v2825
  %v2954 = vmul.f32 %v2570, %v2826
  %v2955 = vmul.f32 %v2571, %v2827
  %v2956 = vmul.f32 %v2572, %v2828
  %v2957 = vmul.f32 %v2573, %v2829
  %v2958 = vmul.f32 %v2574, %v2830
  %v2959 = vmul.f32 %v2575, %v2831
  %v2960 = vmul.f32 %v2576, %v2832
  %v2961 = vmul.f32 %v2577, %v2833
  %v2962 = vmul.f32 %v2578, %v2834
  %v2963 = vmul.f32 %v2579, %v2835
  %v2964 = vmul.f32 %v2580, %v2836
  %v2965 = vmul.f32 %v2581, %v2837
  %v2966 = vmul.f32 %v2582, %v2838
  %v2967 = vmul.f32 %v2583, %v2839
  %v2968 = vmul.f32 %v2584, %v2840
  %v2969 = vmul.f32 %v2585, %v2841
  %v2970 = vmul.f32 %v2586, %v2842
  %v2971 = vmul.f32 %v2587, %v2843
  %v2972 = vmul.f32 %v2588, %v2844
  %v2973 = vmul.f32 %v2589, %v2845
  %v2974 = vmul.f32 %v2590, %v2846
  %v2975 = vmul.f32 %v2591, %v2847
  %v2976 = vmul.f32 %v2592, %v2848
  %v2977 = vmul.f32 %v2593, %v2849
  %v2978 = vmul.f32 %v2594, %v2850
  %v2979 = vmul.f32 %v2595, %v2851
  %v2980 = vmul.f32 %v2596, %v2852
  %v2981 = vmul.f32 %v2597, %v2853
  %v2982 = vmul.f32 %v2598, %v2854
  %v2983 = vmul.f32 %v2599, %v2855
  %v2984 = vmul.f32 %v2600, %v2856
  %v2985 = vmul.f32 %v2601, %v2857
  %v2986 = vmul.f32 %v2602, %v2858
  %v2987 = vmul.f32 %v2603, %v2859
  %v2988 = vmul.f32 %v2604, %v2860
  %v2989 = vmul.f32 %v2605, %v2861
  %v2990 = vmul.f32 %v2606, %v2862
  %v2991 = vmul.f32 %v2607, %v2863
  %2992 = vmatpush.msra.mxu0 %v174
  %2993 = vmatpush.msra.mxu0 %v171
  %2994 = vmatpush.msra.mxu0 %v168
  %2995 = vmatpush.msra.mxu0 %v165
  %2996 = vmatpush.msra.mxu0 %v162
  %2997 = vmatpush.msra.mxu0 %v159
  %2998 = vmatpush.msra.mxu0 %v156
  %2999 = vmatpush.msra.mxu0 %v153
  %3000 = vmatpush.msra.mxu0 %v150
  %3001 = vmatpush.msra.mxu0 %v147
  %3002 = vmatpush.msra.mxu0 %v144
  %3003 = vmatpush.msra.mxu0 %v141
  %3004 = vmatpush.msra.mxu0 %v138
  %3005 = vmatpush.msra.mxu0 %v135
  %3006 = vmatpush.msra.mxu0 %v132
  %3007 = vmatpush.msra.mxu0 %v129
  %3008 = vmatmul.f32.gmra.mxu0 %v1969
  %v3009 = vpop.f32.mrf.mxu0
  %v3010 = vadd.f32 0.0, %v3009
  %3011 = vmatmul.f32.gmra.mxu0 %v1971
  %v3012 = vpop.f32.mrf.mxu0
  %v3013 = vadd.f32 0.0, %v3012
  %3014 = vmatmul.f32.gmra.mxu0 %v1973
  %v3015 = vpop.f32.mrf.mxu0
  %v3016 = vadd.f32 0.0, %v3015
  %3017 = vmatmul.f32.gmra.mxu0 %v1975
  %v3018 = vpop.f32.mrf.mxu0
  %v3019 = vadd.f32 0.0, %v3018
  %3020 = vmatmul.f32.gmra.mxu0 %v1977
  %v3021 = vpop.f32.mrf.mxu0
  %v3022 = vadd.f32 0.0, %v3021
  %3023 = vmatmul.f32.gmra.mxu0 %v1979
  %v3024 = vpop.f32.mrf.mxu0
  %v3025 = vadd.f32 0.0, %v3024
  %3026 = vmatmul.f32.gmra.mxu0 %v1981
  %v3027 = vpop.f32.mrf.mxu0
  %v3028 = vadd.f32 0.0, %v3027
  %3029 = vmatmul.f32.gmra.mxu0 %v1983
  %v3030 = vpop.f32.mrf.mxu0
  %v3031 = vadd.f32 0.0, %v3030
  %3032 = vmatmul.f32.gmra.mxu0 %v1985
  %v3033 = vpop.f32.mrf.mxu0
  %v3034 = vadd.f32 0.0, %v3033
  %3035 = vmatmul.f32.gmra.mxu0 %v1987
  %v3036 = vpop.f32.mrf.mxu0
  %v3037 = vadd.f32 0.0, %v3036
  %3038 = vmatmul.f32.gmra.mxu0 %v1989
  %v3039 = vpop.f32.mrf.mxu0
  %v3040 = vadd.f32 0.0, %v3039
  %3041 = vmatmul.f32.gmra.mxu0 %v1991
  %v3042 = vpop.f32.mrf.mxu0
  %v3043 = vadd.f32 0.0, %v3042
  %3044 = vmatmul.f32.gmra.mxu0 %v1993
  %v3045 = vpop.f32.mrf.mxu0
  %v3046 = vadd.f32 0.0, %v3045
  %3047 = vmatmul.f32.gmra.mxu0 %v1995
  %v3048 = vpop.f32.mrf.mxu0
  %v3049 = vadd.f32 0.0, %v3048
  %3050 = vmatmul.f32.gmra.mxu0 %v1997
  %v3051 = vpop.f32.mrf.mxu0
  %v3052 = vadd.f32 0.0, %v3051
  %3053 = vmatmul.f32.gmra.mxu0 %v1999
  %v3054 = vpop.f32.mrf.mxu0
  %v3055 = vadd.f32 0.0, %v3054
  %3056 = vmatmul.f32.gmra.mxu0 %v2001
  %v3057 = vpop.f32.mrf.mxu0
  %v3058 = vadd.f32 0.0, %v3057
  %3059 = vmatmul.f32.gmra.mxu0 %v2003
  %v3060 = vpop.f32.mrf.mxu0
  %v3061 = vadd.f32 0.0, %v3060
  %3062 = vmatmul.f32.gmra.mxu0 %v2005
  %v3063 = vpop.f32.mrf.mxu0
  %v3064 = vadd.f32 0.0, %v3063
  %3065 = vmatmul.f32.gmra.mxu0 %v2007
  %v3066 = vpop.f32.mrf.mxu0
  %v3067 = vadd.f32 0.0, %v3066
  %3068 = vmatmul.f32.gmra.mxu0 %v2009
  %v3069 = vpop.f32.mrf.mxu0
  %v3070 = vadd.f32 0.0, %v3069
  %3071 = vmatmul.f32.gmra.mxu0 %v2011
  %v3072 = vpop.f32.mrf.mxu0
  %v3073 = vadd.f32 0.0, %v3072
  %3074 = vmatmul.f32.gmra.mxu0 %v2013
  %v3075 = vpop.f32.mrf.mxu0
  %v3076 = vadd.f32 0.0, %v3075
  %3077 = vmatmul.f32.gmra.mxu0 %v2015
  %v3078 = vpop.f32.mrf.mxu0
  %v3079 = vadd.f32 0.0, %v3078
  %3080 = vmatmul.f32.gmra.mxu0 %v2017
  %v3081 = vpop.f32.mrf.mxu0
  %v3082 = vadd.f32 0.0, %v3081
  %3083 = vmatmul.f32.gmra.mxu0 %v2019
  %v3084 = vpop.f32.mrf.mxu0
  %v3085 = vadd.f32 0.0, %v3084
  %3086 = vmatmul.f32.gmra.mxu0 %v2021
  %v3087 = vpop.f32.mrf.mxu0
  %v3088 = vadd.f32 0.0, %v3087
  %3089 = vmatmul.f32.gmra.mxu0 %v2023
  %v3090 = vpop.f32.mrf.mxu0
  %v3091 = vadd.f32 0.0, %v3090
  %3092 = vmatmul.f32.gmra.mxu0 %v2025
  %v3093 = vpop.f32.mrf.mxu0
  %v3094 = vadd.f32 0.0, %v3093
  %3095 = vmatmul.f32.gmra.mxu0 %v2027
  %v3096 = vpop.f32.mrf.mxu0
  %v3097 = vadd.f32 0.0, %v3096
  %3098 = vmatmul.f32.gmra.mxu0 %v2029
  %v3099 = vpop.f32.mrf.mxu0
  %v3100 = vadd.f32 0.0, %v3099
  %3101 = vmatmul.f32.gmra.mxu0 %v2031
  %v3102 = vpop.f32.mrf.mxu0
  %v3103 = vadd.f32 0.0, %v3102
  %3104 = vmatmul.f32.gmra.mxu0 %v2033
  %v3105 = vpop.f32.mrf.mxu0
  %v3106 = vadd.f32 0.0, %v3105
  %3107 = vmatmul.f32.gmra.mxu0 %v2035
  %v3108 = vpop.f32.mrf.mxu0
  %v3109 = vadd.f32 0.0, %v3108
  %3110 = vmatmul.f32.gmra.mxu0 %v2037
  %v3111 = vpop.f32.mrf.mxu0
  %v3112 = vadd.f32 0.0, %v3111
  %3113 = vmatmul.f32.gmra.mxu0 %v2039
  %v3114 = vpop.f32.mrf.mxu0
  %v3115 = vadd.f32 0.0, %v3114
  %3116 = vmatmul.f32.gmra.mxu0 %v2041
  %v3117 = vpop.f32.mrf.mxu0
  %v3118 = vadd.f32 0.0, %v3117
  %3119 = vmatmul.f32.gmra.mxu0 %v2043
  %v3120 = vpop.f32.mrf.mxu0
  %v3121 = vadd.f32 0.0, %v3120
  %3122 = vmatmul.f32.gmra.mxu0 %v2045
  %v3123 = vpop.f32.mrf.mxu0
  %v3124 = vadd.f32 0.0, %v3123
  %3125 = vmatmul.f32.gmra.mxu0 %v2047
  %v3126 = vpop.f32.mrf.mxu0
  %v3127 = vadd.f32 0.0, %v3126
  %3128 = vmatmul.f32.gmra.mxu0 %v2049
  %v3129 = vpop.f32.mrf.mxu0
  %v3130 = vadd.f32 0.0, %v3129
  %3131 = vmatmul.f32.gmra.mxu0 %v2051
  %v3132 = vpop.f32.mrf.mxu0
  %v3133 = vadd.f32 0.0, %v3132
  %3134 = vmatmul.f32.gmra.mxu0 %v2053
  %v3135 = vpop.f32.mrf.mxu0
  %v3136 = vadd.f32 0.0, %v3135
  %3137 = vmatmul.f32.gmra.mxu0 %v2055
  %v3138 = vpop.f32.mrf.mxu0
  %v3139 = vadd.f32 0.0, %v3138
  %3140 = vmatmul.f32.gmra.mxu0 %v2057
  %v3141 = vpop.f32.mrf.mxu0
  %v3142 = vadd.f32 0.0, %v3141
  %3143 = vmatmul.f32.gmra.mxu0 %v2059
  %v3144 = vpop.f32.mrf.mxu0
  %v3145 = vadd.f32 0.0, %v3144
  %3146 = vmatmul.f32.gmra.mxu0 %v2061
  %v3147 = vpop.f32.mrf.mxu0
  %v3148 = vadd.f32 0.0, %v3147
  %3149 = vmatmul.f32.gmra.mxu0 %v2063
  %v3150 = vpop.f32.mrf.mxu0
  %v3151 = vadd.f32 0.0, %v3150
  %3152 = vmatmul.f32.gmra.mxu0 %v2065
  %v3153 = vpop.f32.mrf.mxu0
  %v3154 = vadd.f32 0.0, %v3153
  %3155 = vmatmul.f32.gmra.mxu0 %v2067
  %v3156 = vpop.f32.mrf.mxu0
  %v3157 = vadd.f32 0.0, %v3156
  %3158 = vmatmul.f32.gmra.mxu0 %v2069
  %v3159 = vpop.f32.mrf.mxu0
  %v3160 = vadd.f32 0.0, %v3159
  %3161 = vmatmul.f32.gmra.mxu0 %v2071
  %v3162 = vpop.f32.mrf.mxu0
  %v3163 = vadd.f32 0.0, %v3162
  %3164 = vmatmul.f32.gmra.mxu0 %v2073
  %v3165 = vpop.f32.mrf.mxu0
  %v3166 = vadd.f32 0.0, %v3165
  %3167 = vmatmul.f32.gmra.mxu0 %v2075
  %v3168 = vpop.f32.mrf.mxu0
  %v3169 = vadd.f32 0.0, %v3168
  %3170 = vmatmul.f32.gmra.mxu0 %v2077
  %v3171 = vpop.f32.mrf.mxu0
  %v3172 = vadd.f32 0.0, %v3171
  %3173 = vmatmul.f32.gmra.mxu0 %v2079
  %v3174 = vpop.f32.mrf.mxu0
  %v3175 = vadd.f32 0.0, %v3174
  %3176 = vmatmul.f32.gmra.mxu0 %v2081
  %v3177 = vpop.f32.mrf.mxu0
  %v3178 = vadd.f32 0.0, %v3177
  %3179 = vmatmul.f32.gmra.mxu0 %v2083
  %v3180 = vpop.f32.mrf.mxu0
  %v3181 = vadd.f32 0.0, %v3180
  %3182 = vmatmul.f32.gmra.mxu0 %v2085
  %v3183 = vpop.f32.mrf.mxu0
  %v3184 = vadd.f32 0.0, %v3183
  %3185 = vmatmul.f32.gmra.mxu0 %v2087
  %v3186 = vpop.f32.mrf.mxu0
  %v3187 = vadd.f32 0.0, %v3186
  %3188 = vmatmul.f32.gmra.mxu0 %v2089
  %v3189 = vpop.f32.mrf.mxu0
  %v3190 = vadd.f32 0.0, %v3189
  %3191 = vmatmul.f32.gmra.mxu0 %v2091
  %v3192 = vpop.f32.mrf.mxu0
  %v3193 = vadd.f32 0.0, %v3192
  %3194 = vmatmul.f32.gmra.mxu0 %v2093
  %v3195 = vpop.f32.mrf.mxu0
  %v3196 = vadd.f32 0.0, %v3195
  %3197 = vmatmul.f32.gmra.mxu0 %v2095
  %v3198 = vpop.f32.mrf.mxu0
  %v3199 = vadd.f32 0.0, %v3198
  %3200 = vmatmul.f32.gmra.mxu0 %v2097
  %v3201 = vpop.f32.mrf.mxu0
  %v3202 = vadd.f32 0.0, %v3201
  %3203 = vmatmul.f32.gmra.mxu0 %v2099
  %v3204 = vpop.f32.mrf.mxu0
  %v3205 = vadd.f32 0.0, %v3204
  %3206 = vmatmul.f32.gmra.mxu0 %v2101
  %v3207 = vpop.f32.mrf.mxu0
  %v3208 = vadd.f32 0.0, %v3207
  %3209 = vmatmul.f32.gmra.mxu0 %v2103
  %v3210 = vpop.f32.mrf.mxu0
  %v3211 = vadd.f32 0.0, %v3210
  %3212 = vmatmul.f32.gmra.mxu0 %v2105
  %v3213 = vpop.f32.mrf.mxu0
  %v3214 = vadd.f32 0.0, %v3213
  %3215 = vmatmul.f32.gmra.mxu0 %v2107
  %v3216 = vpop.f32.mrf.mxu0
  %v3217 = vadd.f32 0.0, %v3216
  %3218 = vmatmul.f32.gmra.mxu0 %v2109
  %v3219 = vpop.f32.mrf.mxu0
  %v3220 = vadd.f32 0.0, %v3219
  %3221 = vmatmul.f32.gmra.mxu0 %v2111
  %v3222 = vpop.f32.mrf.mxu0
  %v3223 = vadd.f32 0.0, %v3222
  %3224 = vmatmul.f32.gmra.mxu0 %v2113
  %v3225 = vpop.f32.mrf.mxu0
  %v3226 = vadd.f32 0.0, %v3225
  %3227 = vmatmul.f32.gmra.mxu0 %v2115
  %v3228 = vpop.f32.mrf.mxu0
  %v3229 = vadd.f32 0.0, %v3228
  %3230 = vmatmul.f32.gmra.mxu0 %v2117
  %v3231 = vpop.f32.mrf.mxu0
  %v3232 = vadd.f32 0.0, %v3231
  %3233 = vmatmul.f32.gmra.mxu0 %v2119
  %v3234 = vpop.f32.mrf.mxu0
  %v3235 = vadd.f32 0.0, %v3234
  %3236 = vmatmul.f32.gmra.mxu0 %v2121
  %v3237 = vpop.f32.mrf.mxu0
  %v3238 = vadd.f32 0.0, %v3237
  %3239 = vmatmul.f32.gmra.mxu0 %v2123
  %v3240 = vpop.f32.mrf.mxu0
  %v3241 = vadd.f32 0.0, %v3240
  %3242 = vmatmul.f32.gmra.mxu0 %v2125
  %v3243 = vpop.f32.mrf.mxu0
  %v3244 = vadd.f32 0.0, %v3243
  %3245 = vmatmul.f32.gmra.mxu0 %v2127
  %v3246 = vpop.f32.mrf.mxu0
  %v3247 = vadd.f32 0.0, %v3246
  %3248 = vmatmul.f32.gmra.mxu0 %v2129
  %v3249 = vpop.f32.mrf.mxu0
  %v3250 = vadd.f32 0.0, %v3249
  %3251 = vmatmul.f32.gmra.mxu0 %v2131
  %v3252 = vpop.f32.mrf.mxu0
  %v3253 = vadd.f32 0.0, %v3252
  %3254 = vmatmul.f32.gmra.mxu0 %v2133
  %v3255 = vpop.f32.mrf.mxu0
  %v3256 = vadd.f32 0.0, %v3255
  %3257 = vmatmul.f32.gmra.mxu0 %v2135
  %v3258 = vpop.f32.mrf.mxu0
  %v3259 = vadd.f32 0.0, %v3258
  %3260 = vmatmul.f32.gmra.mxu0 %v2137
  %v3261 = vpop.f32.mrf.mxu0
  %v3262 = vadd.f32 0.0, %v3261
  %3263 = vmatmul.f32.gmra.mxu0 %v2139
  %v3264 = vpop.f32.mrf.mxu0
  %v3265 = vadd.f32 0.0, %v3264
  %3266 = vmatmul.f32.gmra.mxu0 %v2141
  %v3267 = vpop.f32.mrf.mxu0
  %v3268 = vadd.f32 0.0, %v3267
  %3269 = vmatmul.f32.gmra.mxu0 %v2143
  %v3270 = vpop.f32.mrf.mxu0
  %v3271 = vadd.f32 0.0, %v3270
  %3272 = vmatmul.f32.gmra.mxu0 %v2145
  %v3273 = vpop.f32.mrf.mxu0
  %v3274 = vadd.f32 0.0, %v3273
  %3275 = vmatmul.f32.gmra.mxu0 %v2147
  %v3276 = vpop.f32.mrf.mxu0
  %v3277 = vadd.f32 0.0, %v3276
  %3278 = vmatmul.f32.gmra.mxu0 %v2149
  %v3279 = vpop.f32.mrf.mxu0
  %v3280 = vadd.f32 0.0, %v3279
  %3281 = vmatmul.f32.gmra.mxu0 %v2151
  %v3282 = vpop.f32.mrf.mxu0
  %v3283 = vadd.f32 0.0, %v3282
  %3284 = vmatmul.f32.gmra.mxu0 %v2153
  %v3285 = vpop.f32.mrf.mxu0
  %v3286 = vadd.f32 0.0, %v3285
  %3287 = vmatmul.f32.gmra.mxu0 %v2155
  %v3288 = vpop.f32.mrf.mxu0
  %v3289 = vadd.f32 0.0, %v3288
  %3290 = vmatmul.f32.gmra.mxu0 %v2157
  %v3291 = vpop.f32.mrf.mxu0
  %v3292 = vadd.f32 0.0, %v3291
  %3293 = vmatmul.f32.gmra.mxu0 %v2159
  %v3294 = vpop.f32.mrf.mxu0
  %v3295 = vadd.f32 0.0, %v3294
  %3296 = vmatmul.f32.gmra.mxu0 %v2161
  %v3297 = vpop.f32.mrf.mxu0
  %v3298 = vadd.f32 0.0, %v3297
  %3299 = vmatmul.f32.gmra.mxu0 %v2163
  %v3300 = vpop.f32.mrf.mxu0
  %v3301 = vadd.f32 0.0, %v3300
  %3302 = vmatmul.f32.gmra.mxu0 %v2165
  %v3303 = vpop.f32.mrf.mxu0
  %v3304 = vadd.f32 0.0, %v3303
  %3305 = vmatmul.f32.gmra.mxu0 %v2167
  %v3306 = vpop.f32.mrf.mxu0
  %v3307 = vadd.f32 0.0, %v3306
  %3308 = vmatmul.f32.gmra.mxu0 %v2169
  %v3309 = vpop.f32.mrf.mxu0
  %v3310 = vadd.f32 0.0, %v3309
  %3311 = vmatmul.f32.gmra.mxu0 %v2171
  %v3312 = vpop.f32.mrf.mxu0
  %v3313 = vadd.f32 0.0, %v3312
  %3314 = vmatmul.f32.gmra.mxu0 %v2173
  %v3315 = vpop.f32.mrf.mxu0
  %v3316 = vadd.f32 0.0, %v3315
  %3317 = vmatmul.f32.gmra.mxu0 %v2175
  %v3318 = vpop.f32.mrf.mxu0
  %v3319 = vadd.f32 0.0, %v3318
  %3320 = vmatmul.f32.gmra.mxu0 %v2177
  %v3321 = vpop.f32.mrf.mxu0
  %v3322 = vadd.f32 0.0, %v3321
  %3323 = vmatmul.f32.gmra.mxu0 %v2179
  %v3324 = vpop.f32.mrf.mxu0
  %v3325 = vadd.f32 0.0, %v3324
  %3326 = vmatmul.f32.gmra.mxu0 %v2181
  %v3327 = vpop.f32.mrf.mxu0
  %v3328 = vadd.f32 0.0, %v3327
  %3329 = vmatmul.f32.gmra.mxu0 %v2183
  %v3330 = vpop.f32.mrf.mxu0
  %v3331 = vadd.f32 0.0, %v3330
  %3332 = vmatmul.f32.gmra.mxu0 %v2185
  %v3333 = vpop.f32.mrf.mxu0
  %v3334 = vadd.f32 0.0, %v3333
  %3335 = vmatmul.f32.gmra.mxu0 %v2187
  %v3336 = vpop.f32.mrf.mxu0
  %v3337 = vadd.f32 0.0, %v3336
  %3338 = vmatmul.f32.gmra.mxu0 %v2189
  %v3339 = vpop.f32.mrf.mxu0
  %v3340 = vadd.f32 0.0, %v3339
  %3341 = vmatmul.f32.gmra.mxu0 %v2191
  %v3342 = vpop.f32.mrf.mxu0
  %v3343 = vadd.f32 0.0, %v3342
  %3344 = vmatmul.f32.gmra.mxu0 %v2193
  %v3345 = vpop.f32.mrf.mxu0
  %v3346 = vadd.f32 0.0, %v3345
  %3347 = vmatmul.f32.gmra.mxu0 %v2195
  %v3348 = vpop.f32.mrf.mxu0
  %v3349 = vadd.f32 0.0, %v3348
  %3350 = vmatmul.f32.gmra.mxu0 %v2197
  %v3351 = vpop.f32.mrf.mxu0
  %v3352 = vadd.f32 0.0, %v3351
  %3353 = vmatmul.f32.gmra.mxu0 %v2199
  %v3354 = vpop.f32.mrf.mxu0
  %v3355 = vadd.f32 0.0, %v3354
  %3356 = vmatmul.f32.gmra.mxu0 %v2201
  %v3357 = vpop.f32.mrf.mxu0
  %v3358 = vadd.f32 0.0, %v3357
  %3359 = vmatmul.f32.gmra.mxu0 %v2203
  %v3360 = vpop.f32.mrf.mxu0
  %v3361 = vadd.f32 0.0, %v3360
  %3362 = vmatmul.f32.gmra.mxu0 %v2205
  %v3363 = vpop.f32.mrf.mxu0
  %v3364 = vadd.f32 0.0, %v3363
  %3365 = vmatmul.f32.gmra.mxu0 %v2207
  %v3366 = vpop.f32.mrf.mxu0
  %v3367 = vadd.f32 0.0, %v3366
  %3368 = vmatmul.f32.gmra.mxu0 %v2209
  %v3369 = vpop.f32.mrf.mxu0
  %v3370 = vadd.f32 0.0, %v3369
  %3371 = vmatmul.f32.gmra.mxu0 %v2211
  %v3372 = vpop.f32.mrf.mxu0
  %v3373 = vadd.f32 0.0, %v3372
  %3374 = vmatmul.f32.gmra.mxu0 %v2213
  %v3375 = vpop.f32.mrf.mxu0
  %v3376 = vadd.f32 0.0, %v3375
  %3377 = vmatmul.f32.gmra.mxu0 %v2215
  %v3378 = vpop.f32.mrf.mxu0
  %v3379 = vadd.f32 0.0, %v3378
  %3380 = vmatmul.f32.gmra.mxu0 %v2217
  %v3381 = vpop.f32.mrf.mxu0
  %v3382 = vadd.f32 0.0, %v3381
  %3383 = vmatmul.f32.gmra.mxu0 %v2219
  %v3384 = vpop.f32.mrf.mxu0
  %v3385 = vadd.f32 0.0, %v3384
  %3386 = vmatmul.f32.gmra.mxu0 %v2221
  %v3387 = vpop.f32.mrf.mxu0
  %v3388 = vadd.f32 0.0, %v3387
  %3389 = vmatmul.f32.gmra.mxu0 %v2223
  %v3390 = vpop.f32.mrf.mxu0
  %v3391 = vadd.f32 0.0, %v3390
  %3392 = vdwg.mxu0
  %v3393 = vld [vmem:[%s3] sm:$0xff]
  %v3395 = vrot.slane %v3393, 1
  %v3396 = vrot.slane %v3393, 2
  %v3397 = vrot.slane %v3393, 3
  %v3398 = vrot.slane %v3393, 4
  %v3399 = vrot.slane %v3393, 5
  %v3400 = vrot.slane %v3393, 6
  %v3401 = vrot.slane %v3393, 7
  %v3402 = vperm.slane %v3393, 0
  %v3403 = vperm.slane %v3395, 0
  %v3404 = vperm.slane %v3396, 0
  %v3405 = vperm.slane %v3397, 0
  %v3406 = vperm.slane %v3398, 0
  %v3407 = vperm.slane %v3399, 0
  %v3408 = vperm.slane %v3400, 0
  %v3409 = vperm.slane %v3401, 0
  %v3418 = vmul.f32 %v2864, %v3402
  %v3419 = vmul.f32 %v2865, %v3402
  %v3420 = vmul.f32 %v2866, %v3402
  %v3421 = vmul.f32 %v2867, %v3402
  %v3422 = vmul.f32 %v2868, %v3402
  %v3423 = vmul.f32 %v2869, %v3402
  %v3424 = vmul.f32 %v2870, %v3402
  %v3425 = vmul.f32 %v2871, %v3402
  %v3426 = vmul.f32 %v2872, %v3402
  %v3427 = vmul.f32 %v2873, %v3402
  %v3428 = vmul.f32 %v2874, %v3402
  %v3429 = vmul.f32 %v2875, %v3402
  %v3430 = vmul.f32 %v2876, %v3402
  %v3431 = vmul.f32 %v2877, %v3402
  %v3432 = vmul.f32 %v2878, %v3402
  %v3433 = vmul.f32 %v2879, %v3402
  %v3434 = vmul.f32 %v2880, %v3403
  %v3435 = vmul.f32 %v2881, %v3403
  %v3436 = vmul.f32 %v2882, %v3403
  %v3437 = vmul.f32 %v2883, %v3403
  %v3438 = vmul.f32 %v2884, %v3403
  %v3439 = vmul.f32 %v2885, %v3403
  %v3440 = vmul.f32 %v2886, %v3403
  %v3441 = vmul.f32 %v2887, %v3403
  %v3442 = vmul.f32 %v2888, %v3403
  %v3443 = vmul.f32 %v2889, %v3403
  %v3444 = vmul.f32 %v2890, %v3403
  %v3445 = vmul.f32 %v2891, %v3403
  %v3446 = vmul.f32 %v2892, %v3403
  %v3447 = vmul.f32 %v2893, %v3403
  %v3448 = vmul.f32 %v2894, %v3403
  %v3449 = vmul.f32 %v2895, %v3403
  %v3450 = vmul.f32 %v2896, %v3404
  %v3451 = vmul.f32 %v2897, %v3404
  %v3452 = vmul.f32 %v2898, %v3404
  %v3453 = vmul.f32 %v2899, %v3404
  %v3454 = vmul.f32 %v2900, %v3404
  %v3455 = vmul.f32 %v2901, %v3404
  %v3456 = vmul.f32 %v2902, %v3404
  %v3457 = vmul.f32 %v2903, %v3404
  %v3458 = vmul.f32 %v2904, %v3404
  %v3459 = vmul.f32 %v2905, %v3404
  %v3460 = vmul.f32 %v2906, %v3404
  %v3461 = vmul.f32 %v2907, %v3404
  %v3462 = vmul.f32 %v2908, %v3404
  %v3463 = vmul.f32 %v2909, %v3404
  %v3464 = vmul.f32 %v2910, %v3404
  %v3465 = vmul.f32 %v2911, %v3404
  %v3466 = vmul.f32 %v2912, %v3405
  %v3467 = vmul.f32 %v2913, %v3405
  %v3468 = vmul.f32 %v2914, %v3405
  %v3469 = vmul.f32 %v2915, %v3405
  %v3470 = vmul.f32 %v2916, %v3405
  %v3471 = vmul.f32 %v2917, %v3405
  %v3472 = vmul.f32 %v2918, %v3405
  %v3473 = vmul.f32 %v2919, %v3405
  %v3474 = vmul.f32 %v2920, %v3405
  %v3475 = vmul.f32 %v2921, %v3405
  %v3476 = vmul.f32 %v2922, %v3405
  %v3477 = vmul.f32 %v2923, %v3405
  %v3478 = vmul.f32 %v2924, %v3405
  %v3479 = vmul.f32 %v2925, %v3405
  %v3480 = vmul.f32 %v2926, %v3405
  %v3481 = vmul.f32 %v2927, %v3405
  %v3482 = vmul.f32 %v2928, %v3406
  %v3483 = vmul.f32 %v2929, %v3406
  %v3484 = vmul.f32 %v2930, %v3406
  %v3485 = vmul.f32 %v2931, %v3406
  %v3486 = vmul.f32 %v2932, %v3406
  %v3487 = vmul.f32 %v2933, %v3406
  %v3488 = vmul.f32 %v2934, %v3406
  %v3489 = vmul.f32 %v2935, %v3406
  %v3490 = vmul.f32 %v2936, %v3406
  %v3491 = vmul.f32 %v2937, %v3406
  %v3492 = vmul.f32 %v2938, %v3406
  %v3493 = vmul.f32 %v2939, %v3406
  %v3494 = vmul.f32 %v2940, %v3406
  %v3495 = vmul.f32 %v2941, %v3406
  %v3496 = vmul.f32 %v2942, %v3406
  %v3497 = vmul.f32 %v2943, %v3406
  %v3498 = vmul.f32 %v2944, %v3407
  %v3499 = vmul.f32 %v2945, %v3407
  %v3500 = vmul.f32 %v2946, %v3407
  %v3501 = vmul.f32 %v2947, %v3407
  %v3502 = vmul.f32 %v2948, %v3407
  %v3503 = vmul.f32 %v2949, %v3407
  %v3504 = vmul.f32 %v2950, %v3407
  %v3505 = vmul.f32 %v2951, %v3407
  %v3506 = vmul.f32 %v2952, %v3407
  %v3507 = vmul.f32 %v2953, %v3407
  %v3508 = vmul.f32 %v2954, %v3407
  %v3509 = vmul.f32 %v2955, %v3407
  %v3510 = vmul.f32 %v2956, %v3407
  %v3511 = vmul.f32 %v2957, %v3407
  %v3512 = vmul.f32 %v2958, %v3407
  %v3513 = vmul.f32 %v2959, %v3407
  %v3514 = vmul.f32 %v2960, %v3408
  %v3515 = vmul.f32 %v2961, %v3408
  %v3516 = vmul.f32 %v2962, %v3408
  %v3517 = vmul.f32 %v2963, %v3408
  %v3518 = vmul.f32 %v2964, %v3408
  %v3519 = vmul.f32 %v2965, %v3408
  %v3520 = vmul.f32 %v2966, %v3408
  %v3521 = vmul.f32 %v2967, %v3408
  %v3522 = vmul.f32 %v2968, %v3408
  %v3523 = vmul.f32 %v2969, %v3408
  %v3524 = vmul.f32 %v2970, %v3408
  %v3525 = vmul.f32 %v2971, %v3408
  %v3526 = vmul.f32 %v2972, %v3408
  %v3527 = vmul.f32 %v2973, %v3408
  %v3528 = vmul.f32 %v2974, %v3408
  %v3529 = vmul.f32 %v2975, %v3408
  %v3530 = vmul.f32 %v2976, %v3409
  %v3531 = vmul.f32 %v2977, %v3409
  %v3532 = vmul.f32 %v2978, %v3409
  %v3533 = vmul.f32 %v2979, %v3409
  %v3534 = vmul.f32 %v2980, %v3409
  %v3535 = vmul.f32 %v2981, %v3409
  %v3536 = vmul.f32 %v2982, %v3409
  %v3537 = vmul.f32 %v2983, %v3409
  %v3538 = vmul.f32 %v2984, %v3409
  %v3539 = vmul.f32 %v2985, %v3409
  %v3540 = vmul.f32 %v2986, %v3409
  %v3541 = vmul.f32 %v2987, %v3409
  %v3542 = vmul.f32 %v2988, %v3409
  %v3543 = vmul.f32 %v2989, %v3409
  %v3544 = vmul.f32 %v2990, %v3409
  %v3545 = vmul.f32 %v2991, %v3409
  %v3546 = vmul.f32 %v3010, %v3418
  %v3547 = vmul.f32 %v3013, %v3419
  %v3548 = vmul.f32 %v3016, %v3420
  %v3549 = vmul.f32 %v3019, %v3421
  %v3550 = vmul.f32 %v3022, %v3422
  %v3551 = vmul.f32 %v3025, %v3423
  %v3552 = vmul.f32 %v3028, %v3424
  %v3553 = vmul.f32 %v3031, %v3425
  %v3554 = vmul.f32 %v3034, %v3426
  %v3555 = vmul.f32 %v3037, %v3427
  %v3556 = vmul.f32 %v3040, %v3428
  %v3557 = vmul.f32 %v3043, %v3429
  %v3558 = vmul.f32 %v3046, %v3430
  %v3559 = vmul.f32 %v3049, %v3431
  %v3560 = vmul.f32 %v3052, %v3432
  %v3561 = vmul.f32 %v3055, %v3433
  %v3562 = vmul.f32 %v3058, %v3434
  %v3563 = vmul.f32 %v3061, %v3435
  %v3564 = vmul.f32 %v3064, %v3436
  %v3565 = vmul.f32 %v3067, %v3437
  %v3566 = vmul.f32 %v3070, %v3438
  %v3567 = vmul.f32 %v3073, %v3439
  %v3568 = vmul.f32 %v3076, %v3440
  %v3569 = vmul.f32 %v3079, %v3441
  %v3570 = vmul.f32 %v3082, %v3442
  %v3571 = vmul.f32 %v3085, %v3443
  %v3572 = vmul.f32 %v3088, %v3444
  %v3573 = vmul.f32 %v3091, %v3445
  %v3574 = vmul.f32 %v3094, %v3446
  %v3575 = vmul.f32 %v3097, %v3447
  %v3576 = vmul.f32 %v3100, %v3448
  %v3577 = vmul.f32 %v3103, %v3449
  %v3578 = vmul.f32 %v3106, %v3450
  %v3579 = vmul.f32 %v3109, %v3451
  %v3580 = vmul.f32 %v3112, %v3452
  %v3581 = vmul.f32 %v3115, %v3453
  %v3582 = vmul.f32 %v3118, %v3454
  %v3583 = vmul.f32 %v3121, %v3455
  %v3584 = vmul.f32 %v3124, %v3456
  %v3585 = vmul.f32 %v3127, %v3457
  %v3586 = vmul.f32 %v3130, %v3458
  %v3587 = vmul.f32 %v3133, %v3459
  %v3588 = vmul.f32 %v3136, %v3460
  %v3589 = vmul.f32 %v3139, %v3461
  %v3590 = vmul.f32 %v3142, %v3462
  %v3591 = vmul.f32 %v3145, %v3463
  %v3592 = vmul.f32 %v3148, %v3464
  %v3593 = vmul.f32 %v3151, %v3465
  %v3594 = vmul.f32 %v3154, %v3466
  %v3595 = vmul.f32 %v3157, %v3467
  %v3596 = vmul.f32 %v3160, %v3468
  %v3597 = vmul.f32 %v3163, %v3469
  %v3598 = vmul.f32 %v3166, %v3470
  %v3599 = vmul.f32 %v3169, %v3471
  %v3600 = vmul.f32 %v3172, %v3472
  %v3601 = vmul.f32 %v3175, %v3473
  %v3602 = vmul.f32 %v3178, %v3474
  %v3603 = vmul.f32 %v3181, %v3475
  %v3604 = vmul.f32 %v3184, %v3476
  %v3605 = vmul.f32 %v3187, %v3477
  %v3606 = vmul.f32 %v3190, %v3478
  %v3607 = vmul.f32 %v3193, %v3479
  %v3608 = vmul.f32 %v3196, %v3480
  %v3609 = vmul.f32 %v3199, %v3481
  %v3610 = vmul.f32 %v3202, %v3482
  %v3611 = vmul.f32 %v3205, %v3483
  %v3612 = vmul.f32 %v3208, %v3484
  %v3613 = vmul.f32 %v3211, %v3485
  %v3614 = vmul.f32 %v3214, %v3486
  %v3615 = vmul.f32 %v3217, %v3487
  %v3616 = vmul.f32 %v3220, %v3488
  %v3617 = vmul.f32 %v3223, %v3489
  %v3618 = vmul.f32 %v3226, %v3490
  %v3619 = vmul.f32 %v3229, %v3491
  %v3620 = vmul.f32 %v3232, %v3492
  %v3621 = vmul.f32 %v3235, %v3493
  %v3622 = vmul.f32 %v3238, %v3494
  %v3623 = vmul.f32 %v3241, %v3495
  %v3624 = vmul.f32 %v3244, %v3496
  %v3625 = vmul.f32 %v3247, %v3497
  %v3626 = vmul.f32 %v3250, %v3498
  %v3627 = vmul.f32 %v3253, %v3499
  %v3628 = vmul.f32 %v3256, %v3500
  %v3629 = vmul.f32 %v3259, %v3501
  %v3630 = vmul.f32 %v3262, %v3502
  %v3631 = vmul.f32 %v3265, %v3503
  %v3632 = vmul.f32 %v3268, %v3504
  %v3633 = vmul.f32 %v3271, %v3505
  %v3634 = vmul.f32 %v3274, %v3506
  %v3635 = vmul.f32 %v3277, %v3507
  %v3636 = vmul.f32 %v3280, %v3508
  %v3637 = vmul.f32 %v3283, %v3509
  %v3638 = vmul.f32 %v3286, %v3510
  %v3639 = vmul.f32 %v3289, %v3511
  %v3640 = vmul.f32 %v3292, %v3512
  %v3641 = vmul.f32 %v3295, %v3513
  %v3642 = vmul.f32 %v3298, %v3514
  %v3643 = vmul.f32 %v3301, %v3515
  %v3644 = vmul.f32 %v3304, %v3516
  %v3645 = vmul.f32 %v3307, %v3517
  %v3646 = vmul.f32 %v3310, %v3518
  %v3647 = vmul.f32 %v3313, %v3519
  %v3648 = vmul.f32 %v3316, %v3520
  %v3649 = vmul.f32 %v3319, %v3521
  %v3650 = vmul.f32 %v3322, %v3522
  %v3651 = vmul.f32 %v3325, %v3523
  %v3652 = vmul.f32 %v3328, %v3524
  %v3653 = vmul.f32 %v3331, %v3525
  %v3654 = vmul.f32 %v3334, %v3526
  %v3655 = vmul.f32 %v3337, %v3527
  %v3656 = vmul.f32 %v3340, %v3528
  %v3657 = vmul.f32 %v3343, %v3529
  %v3658 = vmul.f32 %v3346, %v3530
  %v3659 = vmul.f32 %v3349, %v3531
  %v3660 = vmul.f32 %v3352, %v3532
  %v3661 = vmul.f32 %v3355, %v3533
  %v3662 = vmul.f32 %v3358, %v3534
  %v3663 = vmul.f32 %v3361, %v3535
  %v3664 = vmul.f32 %v3364, %v3536
  %v3665 = vmul.f32 %v3367, %v3537
  %v3666 = vmul.f32 %v3370, %v3538
  %v3667 = vmul.f32 %v3373, %v3539
  %v3668 = vmul.f32 %v3376, %v3540
  %v3669 = vmul.f32 %v3379, %v3541
  %v3670 = vmul.f32 %v3382, %v3542
  %v3671 = vmul.f32 %v3385, %v3543
  %v3672 = vmul.f32 %v3388, %v3544
  %v3673 = vmul.f32 %v3391, %v3545
  %vm3674 = vcmask 523264
  %v3675 = vsel %vm3674, %v3546, 0.0
  %v3676 = vsel %vm3674, %v3562, 0.0
  %v3677 = vadd.f32 %v3675, %v3676
  %v3678 = vsel %vm3674, %v3578, 0.0
  %v3679 = vadd.f32 %v3677, %v3678
  %v3680 = vsel %vm3674, %v3594, 0.0
  %v3681 = vadd.f32 %v3679, %v3680
  %v3682 = vsel %vm3674, %v3610, 0.0
  %v3683 = vadd.f32 %v3681, %v3682
  %v3684 = vsel %vm3674, %v3626, 0.0
  %v3685 = vadd.f32 %v3683, %v3684
  %v3686 = vsel %vm3674, %v3642, 0.0
  %v3687 = vadd.f32 %v3685, %v3686
  %v3688 = vsel %vm3674, %v3658, 0.0
  %v3689 = vadd.f32 %v3687, %v3688
  %v3690 = vsel %vm3674, %v3547, 0.0
  %v3691 = vsel %vm3674, %v3563, 0.0
  %v3692 = vadd.f32 %v3690, %v3691
  %v3693 = vsel %vm3674, %v3579, 0.0
  %v3694 = vadd.f32 %v3692, %v3693
  %v3695 = vsel %vm3674, %v3595, 0.0
  %v3696 = vadd.f32 %v3694, %v3695
  %v3697 = vsel %vm3674, %v3611, 0.0
  %v3698 = vadd.f32 %v3696, %v3697
  %v3699 = vsel %vm3674, %v3627, 0.0
  %v3700 = vadd.f32 %v3698, %v3699
  %v3701 = vsel %vm3674, %v3643, 0.0
  %v3702 = vadd.f32 %v3700, %v3701
  %v3703 = vsel %vm3674, %v3659, 0.0
  %v3704 = vadd.f32 %v3702, %v3703
  %v3705 = vsel %vm3674, %v3548, 0.0
  %v3706 = vsel %vm3674, %v3564, 0.0
  %v3707 = vadd.f32 %v3705, %v3706
  %v3708 = vsel %vm3674, %v3580, 0.0
  %v3709 = vadd.f32 %v3707, %v3708
  %v3710 = vsel %vm3674, %v3596, 0.0
  %v3711 = vadd.f32 %v3709, %v3710
  %v3712 = vsel %vm3674, %v3612, 0.0
  %v3713 = vadd.f32 %v3711, %v3712
  %v3714 = vsel %vm3674, %v3628, 0.0
  %v3715 = vadd.f32 %v3713, %v3714
  %v3716 = vsel %vm3674, %v3644, 0.0
  %v3717 = vadd.f32 %v3715, %v3716
  %v3718 = vsel %vm3674, %v3660, 0.0
  %v3719 = vadd.f32 %v3717, %v3718
  %v3720 = vsel %vm3674, %v3549, 0.0
  %v3721 = vsel %vm3674, %v3565, 0.0
  %v3722 = vadd.f32 %v3720, %v3721
  %v3723 = vsel %vm3674, %v3581, 0.0
  %v3724 = vadd.f32 %v3722, %v3723
  %v3725 = vsel %vm3674, %v3597, 0.0
  %v3726 = vadd.f32 %v3724, %v3725
  %v3727 = vsel %vm3674, %v3613, 0.0
  %v3728 = vadd.f32 %v3726, %v3727
  %v3729 = vsel %vm3674, %v3629, 0.0
  %v3730 = vadd.f32 %v3728, %v3729
  %v3731 = vsel %vm3674, %v3645, 0.0
  %v3732 = vadd.f32 %v3730, %v3731
  %v3733 = vsel %vm3674, %v3661, 0.0
  %v3734 = vadd.f32 %v3732, %v3733
  %v3735 = vsel %vm3674, %v3550, 0.0
  %v3736 = vsel %vm3674, %v3566, 0.0
  %v3737 = vadd.f32 %v3735, %v3736
  %v3738 = vsel %vm3674, %v3582, 0.0
  %v3739 = vadd.f32 %v3737, %v3738
  %v3740 = vsel %vm3674, %v3598, 0.0
  %v3741 = vadd.f32 %v3739, %v3740
  %v3742 = vsel %vm3674, %v3614, 0.0
  %v3743 = vadd.f32 %v3741, %v3742
  %v3744 = vsel %vm3674, %v3630, 0.0
  %v3745 = vadd.f32 %v3743, %v3744
  %v3746 = vsel %vm3674, %v3646, 0.0
  %v3747 = vadd.f32 %v3745, %v3746
  %v3748 = vsel %vm3674, %v3662, 0.0
  %v3749 = vadd.f32 %v3747, %v3748
  %v3750 = vsel %vm3674, %v3551, 0.0
  %v3751 = vsel %vm3674, %v3567, 0.0
  %v3752 = vadd.f32 %v3750, %v3751
  %v3753 = vsel %vm3674, %v3583, 0.0
  %v3754 = vadd.f32 %v3752, %v3753
  %v3755 = vsel %vm3674, %v3599, 0.0
  %v3756 = vadd.f32 %v3754, %v3755
  %v3757 = vsel %vm3674, %v3615, 0.0
  %v3758 = vadd.f32 %v3756, %v3757
  %v3759 = vsel %vm3674, %v3631, 0.0
  %v3760 = vadd.f32 %v3758, %v3759
  %v3761 = vsel %vm3674, %v3647, 0.0
  %v3762 = vadd.f32 %v3760, %v3761
  %v3763 = vsel %vm3674, %v3663, 0.0
  %v3764 = vadd.f32 %v3762, %v3763
  %v3765 = vsel %vm3674, %v3552, 0.0
  %v3766 = vsel %vm3674, %v3568, 0.0
  %v3767 = vadd.f32 %v3765, %v3766
  %v3768 = vsel %vm3674, %v3584, 0.0
  %v3769 = vadd.f32 %v3767, %v3768
  %v3770 = vsel %vm3674, %v3600, 0.0
  %v3771 = vadd.f32 %v3769, %v3770
  %v3772 = vsel %vm3674, %v3616, 0.0
  %v3773 = vadd.f32 %v3771, %v3772
  %v3774 = vsel %vm3674, %v3632, 0.0
  %v3775 = vadd.f32 %v3773, %v3774
  %v3776 = vsel %vm3674, %v3648, 0.0
  %v3777 = vadd.f32 %v3775, %v3776
  %v3778 = vsel %vm3674, %v3664, 0.0
  %v3779 = vadd.f32 %v3777, %v3778
  %v3780 = vsel %vm3674, %v3553, 0.0
  %v3781 = vsel %vm3674, %v3569, 0.0
  %v3782 = vadd.f32 %v3780, %v3781
  %v3783 = vsel %vm3674, %v3585, 0.0
  %v3784 = vadd.f32 %v3782, %v3783
  %v3785 = vsel %vm3674, %v3601, 0.0
  %v3786 = vadd.f32 %v3784, %v3785
  %v3787 = vsel %vm3674, %v3617, 0.0
  %v3788 = vadd.f32 %v3786, %v3787
  %v3789 = vsel %vm3674, %v3633, 0.0
  %v3790 = vadd.f32 %v3788, %v3789
  %v3791 = vsel %vm3674, %v3649, 0.0
  %v3792 = vadd.f32 %v3790, %v3791
  %v3793 = vsel %vm3674, %v3665, 0.0
  %v3794 = vadd.f32 %v3792, %v3793
  %v3795 = vsel %vm3674, %v3554, 0.0
  %v3796 = vsel %vm3674, %v3570, 0.0
  %v3797 = vadd.f32 %v3795, %v3796
  %v3798 = vsel %vm3674, %v3586, 0.0
  %v3799 = vadd.f32 %v3797, %v3798
  %v3800 = vsel %vm3674, %v3602, 0.0
  %v3801 = vadd.f32 %v3799, %v3800
  %v3802 = vsel %vm3674, %v3618, 0.0
  %v3803 = vadd.f32 %v3801, %v3802
  %v3804 = vsel %vm3674, %v3634, 0.0
  %v3805 = vadd.f32 %v3803, %v3804
  %v3806 = vsel %vm3674, %v3650, 0.0
  %v3807 = vadd.f32 %v3805, %v3806
  %v3808 = vsel %vm3674, %v3666, 0.0
  %v3809 = vadd.f32 %v3807, %v3808
  %v3810 = vsel %vm3674, %v3555, 0.0
  %v3811 = vsel %vm3674, %v3571, 0.0
  %v3812 = vadd.f32 %v3810, %v3811
  %v3813 = vsel %vm3674, %v3587, 0.0
  %v3814 = vadd.f32 %v3812, %v3813
  %v3815 = vsel %vm3674, %v3603, 0.0
  %v3816 = vadd.f32 %v3814, %v3815
  %v3817 = vsel %vm3674, %v3619, 0.0
  %v3818 = vadd.f32 %v3816, %v3817
  %v3819 = vsel %vm3674, %v3635, 0.0
  %v3820 = vadd.f32 %v3818, %v3819
  %v3821 = vsel %vm3674, %v3651, 0.0
  %v3822 = vadd.f32 %v3820, %v3821
  %v3823 = vsel %vm3674, %v3667, 0.0
  %v3824 = vadd.f32 %v3822, %v3823
  %v3825 = vsel %vm3674, %v3556, 0.0
  %v3826 = vsel %vm3674, %v3572, 0.0
  %v3827 = vadd.f32 %v3825, %v3826
  %v3828 = vsel %vm3674, %v3588, 0.0
  %v3829 = vadd.f32 %v3827, %v3828
  %v3830 = vsel %vm3674, %v3604, 0.0
  %v3831 = vadd.f32 %v3829, %v3830
  %v3832 = vsel %vm3674, %v3620, 0.0
  %v3833 = vadd.f32 %v3831, %v3832
  %v3834 = vsel %vm3674, %v3636, 0.0
  %v3835 = vadd.f32 %v3833, %v3834
  %v3836 = vsel %vm3674, %v3652, 0.0
  %v3837 = vadd.f32 %v3835, %v3836
  %v3838 = vsel %vm3674, %v3668, 0.0
  %v3839 = vadd.f32 %v3837, %v3838
  %v3840 = vsel %vm3674, %v3557, 0.0
  %v3841 = vsel %vm3674, %v3573, 0.0
  %v3842 = vadd.f32 %v3840, %v3841
  %v3843 = vsel %vm3674, %v3589, 0.0
  %v3844 = vadd.f32 %v3842, %v3843
  %v3845 = vsel %vm3674, %v3605, 0.0
  %v3846 = vadd.f32 %v3844, %v3845
  %v3847 = vsel %vm3674, %v3621, 0.0
  %v3848 = vadd.f32 %v3846, %v3847
  %v3849 = vsel %vm3674, %v3637, 0.0
  %v3850 = vadd.f32 %v3848, %v3849
  %v3851 = vsel %vm3674, %v3653, 0.0
  %v3852 = vadd.f32 %v3850, %v3851
  %v3853 = vsel %vm3674, %v3669, 0.0
  %v3854 = vadd.f32 %v3852, %v3853
  %v3855 = vsel %vm3674, %v3558, 0.0
  %v3856 = vsel %vm3674, %v3574, 0.0
  %v3857 = vadd.f32 %v3855, %v3856
  %v3858 = vsel %vm3674, %v3590, 0.0
  %v3859 = vadd.f32 %v3857, %v3858
  %v3860 = vsel %vm3674, %v3606, 0.0
  %v3861 = vadd.f32 %v3859, %v3860
  %v3862 = vsel %vm3674, %v3622, 0.0
  %v3863 = vadd.f32 %v3861, %v3862
  %v3864 = vsel %vm3674, %v3638, 0.0
  %v3865 = vadd.f32 %v3863, %v3864
  %v3866 = vsel %vm3674, %v3654, 0.0
  %v3867 = vadd.f32 %v3865, %v3866
  %v3868 = vsel %vm3674, %v3670, 0.0
  %v3869 = vadd.f32 %v3867, %v3868
  %v3870 = vsel %vm3674, %v3559, 0.0
  %v3871 = vsel %vm3674, %v3575, 0.0
  %v3872 = vadd.f32 %v3870, %v3871
  %v3873 = vsel %vm3674, %v3591, 0.0
  %v3874 = vadd.f32 %v3872, %v3873
  %v3875 = vsel %vm3674, %v3607, 0.0
  %v3876 = vadd.f32 %v3874, %v3875
  %v3877 = vsel %vm3674, %v3623, 0.0
  %v3878 = vadd.f32 %v3876, %v3877
  %v3879 = vsel %vm3674, %v3639, 0.0
  %v3880 = vadd.f32 %v3878, %v3879
  %v3881 = vsel %vm3674, %v3655, 0.0
  %v3882 = vadd.f32 %v3880, %v3881
  %v3883 = vsel %vm3674, %v3671, 0.0
  %v3884 = vadd.f32 %v3882, %v3883
  %v3885 = vsel %vm3674, %v3560, 0.0
  %v3886 = vsel %vm3674, %v3576, 0.0
  %v3887 = vadd.f32 %v3885, %v3886
  %v3888 = vsel %vm3674, %v3592, 0.0
  %v3889 = vadd.f32 %v3887, %v3888
  %v3890 = vsel %vm3674, %v3608, 0.0
  %v3891 = vadd.f32 %v3889, %v3890
  %v3892 = vsel %vm3674, %v3624, 0.0
  %v3893 = vadd.f32 %v3891, %v3892
  %v3894 = vsel %vm3674, %v3640, 0.0
  %v3895 = vadd.f32 %v3893, %v3894
  %v3896 = vsel %vm3674, %v3656, 0.0
  %v3897 = vadd.f32 %v3895, %v3896
  %v3898 = vsel %vm3674, %v3672, 0.0
  %v3899 = vadd.f32 %v3897, %v3898
  %v3900 = vsel %vm3674, %v3561, 0.0
  %v3901 = vsel %vm3674, %v3577, 0.0
  %v3902 = vadd.f32 %v3900, %v3901
  %v3903 = vsel %vm3674, %v3593, 0.0
  %v3904 = vadd.f32 %v3902, %v3903
  %v3905 = vsel %vm3674, %v3609, 0.0
  %v3906 = vadd.f32 %v3904, %v3905
  %v3907 = vsel %vm3674, %v3625, 0.0
  %v3908 = vadd.f32 %v3906, %v3907
  %v3909 = vsel %vm3674, %v3641, 0.0
  %v3910 = vadd.f32 %v3908, %v3909
  %v3911 = vsel %vm3674, %v3657, 0.0
  %v3912 = vadd.f32 %v3910, %v3911
  %v3913 = vsel %vm3674, %v3673, 0.0
  %v3914 = vadd.f32 %v3912, %v3913
  %v3915 = vld [vmem:[%s2] sm:$0x1]
  %v3917 = vperm.slane %v3915, 0
  %v3919 = vadd.f32 %v3689, %v3917
  %v3920 = vadd.f32 %v3704, %v3917
  %v3921 = vadd.f32 %v3719, %v3917
  %v3922 = vadd.f32 %v3734, %v3917
  %v3923 = vadd.f32 %v3749, %v3917
  %v3924 = vadd.f32 %v3764, %v3917
  %v3925 = vadd.f32 %v3779, %v3917
  %v3926 = vadd.f32 %v3794, %v3917
  %v3927 = vadd.f32 %v3809, %v3917
  %v3928 = vadd.f32 %v3824, %v3917
  %v3929 = vadd.f32 %v3839, %v3917
  %v3930 = vadd.f32 %v3854, %v3917
  %v3931 = vadd.f32 %v3869, %v3917
  %v3932 = vadd.f32 %v3884, %v3917
  %v3933 = vadd.f32 %v3899, %v3917
  %v3934 = vadd.f32 %v3914, %v3917
  %vm3935 = vcmp.gt.f32.partialorder %v3919, 0.0
  %vm3936 = vcmp.gt.f32.partialorder %v3920, 0.0
  %vm3937 = vcmp.gt.f32.partialorder %v3921, 0.0
  %vm3938 = vcmp.gt.f32.partialorder %v3922, 0.0
  %vm3939 = vcmp.gt.f32.partialorder %v3923, 0.0
  %vm3940 = vcmp.gt.f32.partialorder %v3924, 0.0
  %vm3941 = vcmp.gt.f32.partialorder %v3925, 0.0
  %vm3942 = vcmp.gt.f32.partialorder %v3926, 0.0
  %vm3943 = vcmp.gt.f32.partialorder %v3927, 0.0
  %vm3944 = vcmp.gt.f32.partialorder %v3928, 0.0
  %vm3945 = vcmp.gt.f32.partialorder %v3929, 0.0
  %vm3946 = vcmp.gt.f32.partialorder %v3930, 0.0
  %vm3947 = vcmp.gt.f32.partialorder %v3931, 0.0
  %vm3948 = vcmp.gt.f32.partialorder %v3932, 0.0
  %vm3949 = vcmp.gt.f32.partialorder %v3933, 0.0
  %vm3950 = vcmp.gt.f32.partialorder %v3934, 0.0
  %v3951 = vmin.f32 %v3919, 0.0
  %v3952 = vmin.f32 %v3920, 0.0
  %v3953 = vmin.f32 %v3921, 0.0
  %v3954 = vmin.f32 %v3922, 0.0
  %v3955 = vmin.f32 %v3923, 0.0
  %v3956 = vmin.f32 %v3924, 0.0
  %v3957 = vmin.f32 %v3925, 0.0
  %v3958 = vmin.f32 %v3926, 0.0
  %v3959 = vmin.f32 %v3927, 0.0
  %v3960 = vmin.f32 %v3928, 0.0
  %v3961 = vmin.f32 %v3929, 0.0
  %v3962 = vmin.f32 %v3930, 0.0
  %v3963 = vmin.f32 %v3931, 0.0
  %v3964 = vmin.f32 %v3932, 0.0
  %v3965 = vmin.f32 %v3933, 0.0
  %v3966 = vmin.f32 %v3934, 0.0
  %v3967 = vmul.f32 %v3951, 1.442695
  %v3968 = vpow.pop %v3967
  %v3969 = vmul.f32 %v3952, 1.442695
  %v3970 = vpow.pop %v3969
  %v3971 = vmul.f32 %v3953, 1.442695
  %v3972 = vpow.pop %v3971
  %v3973 = vmul.f32 %v3954, 1.442695
  %v3974 = vpow.pop %v3973
  %v3975 = vmul.f32 %v3955, 1.442695
  %v3976 = vpow.pop %v3975
  %v3977 = vmul.f32 %v3956, 1.442695
  %v3978 = vpow.pop %v3977
  %v3979 = vmul.f32 %v3957, 1.442695
  %v3980 = vpow.pop %v3979
  %v3981 = vmul.f32 %v3958, 1.442695
  %v3982 = vpow.pop %v3981
  %v3983 = vmul.f32 %v3959, 1.442695
  %v3984 = vpow.pop %v3983
  %v3985 = vmul.f32 %v3960, 1.442695
  %v3986 = vpow.pop %v3985
  %v3987 = vmul.f32 %v3961, 1.442695
  %v3988 = vpow.pop %v3987
  %v3989 = vmul.f32 %v3962, 1.442695
  %v3990 = vpow.pop %v3989
  %v3991 = vmul.f32 %v3963, 1.442695
  %v3992 = vpow.pop %v3991
  %v3993 = vmul.f32 %v3964, 1.442695
  %v3994 = vpow.pop %v3993
  %v3995 = vmul.f32 %v3965, 1.442695
  %v3996 = vpow.pop %v3995
  %v3997 = vmul.f32 %v3966, 1.442695
  %v3998 = vpow.pop %v3997
  %v3999 = vsub.f32 %v3968, 1.0
  %v4000 = vsub.f32 %v3970, 1.0
  %v4001 = vsub.f32 %v3972, 1.0
  %v4002 = vsub.f32 %v3974, 1.0
  %v4003 = vsub.f32 %v3976, 1.0
  %v4004 = vsub.f32 %v3978, 1.0
  %v4005 = vsub.f32 %v3980, 1.0
  %v4006 = vsub.f32 %v3982, 1.0
  %v4007 = vsub.f32 %v3984, 1.0
  %v4008 = vsub.f32 %v3986, 1.0
  %v4009 = vsub.f32 %v3988, 1.0
  %v4010 = vsub.f32 %v3990, 1.0
  %v4011 = vsub.f32 %v3992, 1.0
  %v4012 = vsub.f32 %v3994, 1.0
  %v4013 = vsub.f32 %v3996, 1.0
  %v4014 = vsub.f32 %v3998, 1.0
  %v4015 = vsel %vm3935, %v3919, %v3999
  %v4016 = vsel %vm3936, %v3920, %v4000
  %v4017 = vsel %vm3937, %v3921, %v4001
  %v4018 = vsel %vm3938, %v3922, %v4002
  %v4019 = vsel %vm3939, %v3923, %v4003
  %v4020 = vsel %vm3940, %v3924, %v4004
  %v4021 = vsel %vm3941, %v3925, %v4005
  %v4022 = vsel %vm3942, %v3926, %v4006
  %v4023 = vsel %vm3943, %v3927, %v4007
  %v4024 = vsel %vm3944, %v3928, %v4008
  %v4025 = vsel %vm3945, %v3929, %v4009
  %v4026 = vsel %vm3946, %v3930, %v4010
  %v4027 = vsel %vm3947, %v3931, %v4011
  %v4028 = vsel %vm3948, %v3932, %v4012
  %v4029 = vsel %vm3949, %v3933, %v4013
  %v4030 = vsel %vm3950, %v3934, %v4014
  %v4031 = vld [vmem:[%s4] sm:$0xff]
  %v4032 = vld [vmem:[%s4 + $0x8] sm:$0xff]
  %v4033 = vld [vmem:[%s4 + $0x10] sm:$0xff]
  %v4034 = vld [vmem:[%s4 + $0x18] sm:$0xff]
  %v4035 = vld [vmem:[%s4 + $0x20] sm:$0xff]
  %v4036 = vld [vmem:[%s4 + $0x28] sm:$0xff]
  %v4037 = vld [vmem:[%s4 + $0x30] sm:$0xff]
  %v4038 = vld [vmem:[%s4 + $0x38] sm:$0xff]
  %v4040 = vsel %vm3674, %v4015, 0
  %v4043 = vsel %vm3674, %v4016, 0
  %v4046 = vsel %vm3674, %v4017, 0
  %v4049 = vsel %vm3674, %v4018, 0
  %v4052 = vsel %vm3674, %v4019, 0
  %v4055 = vsel %vm3674, %v4020, 0
  %v4058 = vsel %vm3674, %v4021, 0
  %v4061 = vsel %vm3674, %v4022, 0
  %v4064 = vsel %vm3674, %v4023, 0
  %v4067 = vsel %vm3674, %v4024, 0
  %v4070 = vsel %vm3674, %v4025, 0
  %v4073 = vsel %vm3674, %v4026, 0
  %v4076 = vsel %vm3674, %v4027, 0
  %v4079 = vsel %vm3674, %v4028, 0
  %v4082 = vsel %vm3674, %v4029, 0
  %v4085 = vsel %vm3674, %v4030, 0
  %4087 = vmatpush.msra.mxu0 0.0
  %4088 = vmatpush.msra.mxu0 0.0
  %4089 = vmatpush.msra.mxu0 0.0
  %4090 = vmatpush.msra.mxu0 0.0
  %4091 = vmatpush.msra.mxu0 0.0
  %4092 = vmatpush.msra.mxu0 0.0
  %4093 = vmatpush.msra.mxu0 0.0
  %4094 = vmatpush.msra.mxu0 0.0
  %4095 = vmatpush.msra.mxu0 %v4038
  %4096 = vmatpush.msra.mxu0 %v4037
  %4097 = vmatpush.msra.mxu0 %v4036
  %4098 = vmatpush.msra.mxu0 %v4035
  %4099 = vmatpush.msra.mxu0 %v4034
  %4100 = vmatpush.msra.mxu0 %v4033
  %4101 = vmatpush.msra.mxu0 %v4032
  %4102 = vmatpush.msra.mxu0 %v4031
  %4103 = vmatmul.f32.gmra.mxu0 %v4040
  %v4104 = vpop.f32.mrf.mxu0
  %v4105 = vadd.f32 0.0, %v4104
  %4106 = vmatmul.f32.gmra.mxu0 %v4043
  %v4107 = vpop.f32.mrf.mxu0
  %v4108 = vadd.f32 0.0, %v4107
  %4109 = vmatmul.f32.gmra.mxu0 %v4046
  %v4110 = vpop.f32.mrf.mxu0
  %v4111 = vadd.f32 0.0, %v4110
  %4112 = vmatmul.f32.gmra.mxu0 %v4049
  %v4113 = vpop.f32.mrf.mxu0
  %v4114 = vadd.f32 0.0, %v4113
  %4115 = vmatmul.f32.gmra.mxu0 %v4052
  %v4116 = vpop.f32.mrf.mxu0
  %v4117 = vadd.f32 0.0, %v4116
  %4118 = vmatmul.f32.gmra.mxu0 %v4055
  %v4119 = vpop.f32.mrf.mxu0
  %v4120 = vadd.f32 0.0, %v4119
  %4121 = vmatmul.f32.gmra.mxu0 %v4058
  %v4122 = vpop.f32.mrf.mxu0
  %v4123 = vadd.f32 0.0, %v4122
  %4124 = vmatmul.f32.gmra.mxu0 %v4061
  %v4125 = vpop.f32.mrf.mxu0
  %v4126 = vadd.f32 0.0, %v4125
  %4127 = vmatmul.f32.gmra.mxu0 %v4064
  %v4128 = vpop.f32.mrf.mxu0
  %v4129 = vadd.f32 0.0, %v4128
  %4130 = vmatmul.f32.gmra.mxu0 %v4067
  %v4131 = vpop.f32.mrf.mxu0
  %v4132 = vadd.f32 0.0, %v4131
  %4133 = vmatmul.f32.gmra.mxu0 %v4070
  %v4134 = vpop.f32.mrf.mxu0
  %v4135 = vadd.f32 0.0, %v4134
  %4136 = vmatmul.f32.gmra.mxu0 %v4073
  %v4137 = vpop.f32.mrf.mxu0
  %v4138 = vadd.f32 0.0, %v4137
  %4139 = vmatmul.f32.gmra.mxu0 %v4076
  %v4140 = vpop.f32.mrf.mxu0
  %v4141 = vadd.f32 0.0, %v4140
  %4142 = vmatmul.f32.gmra.mxu0 %v4079
  %v4143 = vpop.f32.mrf.mxu0
  %v4144 = vadd.f32 0.0, %v4143
  %4145 = vmatmul.f32.gmra.mxu0 %v4082
  %v4146 = vpop.f32.mrf.mxu0
  %v4147 = vadd.f32 0.0, %v4146
  %4148 = vmatmul.f32.gmra.mxu0 %v4085
  %v4149 = vpop.f32.mrf.mxu0
  %v4150 = vadd.f32 0.0, %v4149
  %4151 = vdwg.mxu0
  %4168 = vrot.lane.b32.xlu0 %v4105, 120
  %v4169 = vpop.permute.xlu0 %4168
  %4170 = vrot.lane.b32.xlu0 %v4108, 120
  %v4171 = vpop.permute.xlu0 %4170
  %4172 = vrot.lane.b32.xlu0 %v4111, 120
  %v4173 = vpop.permute.xlu0 %4172
  %4174 = vrot.lane.b32.xlu0 %v4114, 120
  %v4175 = vpop.permute.xlu0 %4174
  %4176 = vrot.lane.b32.xlu0 %v4117, 120
  %v4177 = vpop.permute.xlu0 %4176
  %4178 = vrot.lane.b32.xlu0 %v4120, 120
  %v4179 = vpop.permute.xlu0 %4178
  %4180 = vrot.lane.b32.xlu0 %v4123, 120
  %v4181 = vpop.permute.xlu0 %4180
  %4182 = vrot.lane.b32.xlu0 %v4126, 120
  %v4183 = vpop.permute.xlu0 %4182
  %4184 = vrot.lane.b32.xlu0 %v4129, 120
  %v4185 = vpop.permute.xlu0 %4184
  %4186 = vrot.lane.b32.xlu0 %v4132, 120
  %v4187 = vpop.permute.xlu0 %4186
  %4188 = vrot.lane.b32.xlu0 %v4135, 120
  %v4189 = vpop.permute.xlu0 %4188
  %4190 = vrot.lane.b32.xlu0 %v4138, 120
  %v4191 = vpop.permute.xlu0 %4190
  %4192 = vrot.lane.b32.xlu0 %v4141, 120
  %v4193 = vpop.permute.xlu0 %4192
  %4194 = vrot.lane.b32.xlu0 %v4144, 120
  %v4195 = vpop.permute.xlu0 %4194
  %4196 = vrot.lane.b32.xlu0 %v4147, 120
  %v4197 = vpop.permute.xlu0 %4196
  %4198 = vrot.lane.b32.xlu0 %v4150, 120
  %v4199 = vpop.permute.xlu0 %4198
  %4216 = vxpose.xlu0.b32.start [1/16] %v4169, 128
  %4217 = vxpose.xlu0.b32.cont [2/16] %v4171, 128
  %4218 = vxpose.xlu0.b32.cont [3/16] %v4173, 128
  %4219 = vxpose.xlu0.b32.cont [4/16] %v4175, 128
  %4220 = vxpose.xlu0.b32.cont [5/16] %v4177, 128
  %4221 = vxpose.xlu0.b32.cont [6/16] %v4179, 128
  %4222 = vxpose.xlu0.b32.cont [7/16] %v4181, 128
  %4223 = vxpose.xlu0.b32.cont [8/16] %v4183, 128
  %4224 = vxpose.xlu0.b32.cont [9/16] %v4185, 128
  %4225 = vxpose.xlu0.b32.cont [10/16] %v4187, 128
  %4226 = vxpose.xlu0.b32.cont [11/16] %v4189, 128
  %4227 = vxpose.xlu0.b32.cont [12/16] %v4191, 128
  %4228 = vxpose.xlu0.b32.cont [13/16] %v4193, 128
  %4229 = vxpose.xlu0.b32.cont [14/16] %v4195, 128
  %4230 = vxpose.xlu0.b32.cont [15/16] %v4197, 128
  %4231 = vxpose.xlu0.b32.end [16/16] %v4199, 128
  %v4232 = vpop.trf.xlu0
  %v4233 = vpop.trf.xlu0
  %v4234 = vpop.trf.xlu0
  %v4235 = vpop.trf.xlu0
  %v4236 = vpop.trf.xlu0
  %v4237 = vpop.trf.xlu0
  %v4238 = vpop.trf.xlu0
  %v4239 = vpop.trf.xlu0
  %v4240 = vpop.trf.xlu0
  %v4241 = vpop.trf.xlu0
  %v4242 = vpop.trf.xlu0
  %v4243 = vpop.trf.xlu0
  %v4244 = vpop.trf.xlu0
  %v4245 = vpop.trf.xlu0
  %v4246 = vpop.trf.xlu0
  %v4247 = vpop.trf.xlu0
  %4248 = vset.pattern.permute.xlu0 8
  %4249 = vperm.xlu0 %4248, %v4105
  %v4250 = vpop.permute.xlu0 %4249
  %4252 = vset.pattern.permute.xlu0 8
  %4253 = vperm.xlu0 %4252, %v4108
  %v4254 = vpop.permute.xlu0 %4253
  %4256 = vset.pattern.permute.xlu0 8
  %4257 = vperm.xlu0 %4256, %v4111
  %v4258 = vpop.permute.xlu0 %4257
  %4260 = vset.pattern.permute.xlu0 8
  %4261 = vperm.xlu0 %4260, %v4114
  %v4262 = vpop.permute.xlu0 %4261
  %4264 = vset.pattern.permute.xlu0 8
  %4265 = vperm.xlu0 %4264, %v4117
  %v4266 = vpop.permute.xlu0 %4265
  %4268 = vset.pattern.permute.xlu0 8
  %4269 = vperm.xlu0 %4268, %v4120
  %v4270 = vpop.permute.xlu0 %4269
  %4272 = vset.pattern.permute.xlu0 8
  %4273 = vperm.xlu0 %4272, %v4123
  %v4274 = vpop.permute.xlu0 %4273
  %4276 = vset.pattern.permute.xlu0 8
  %4277 = vperm.xlu0 %4276, %v4126
  %v4278 = vpop.permute.xlu0 %4277
  %4280 = vset.pattern.permute.xlu0 8
  %4281 = vperm.xlu0 %4280, %v4129
  %v4282 = vpop.permute.xlu0 %4281
  %4284 = vset.pattern.permute.xlu0 8
  %4285 = vperm.xlu0 %4284, %v4132
  %v4286 = vpop.permute.xlu0 %4285
  %4288 = vset.pattern.permute.xlu0 8
  %4289 = vperm.xlu0 %4288, %v4135
  %v4290 = vpop.permute.xlu0 %4289
  %4292 = vset.pattern.permute.xlu0 8
  %4293 = vperm.xlu0 %4292, %v4138
  %v4294 = vpop.permute.xlu0 %4293
  %4296 = vset.pattern.permute.xlu0 8
  %4297 = vperm.xlu0 %4296, %v4141
  %v4298 = vpop.permute.xlu0 %4297
  %4300 = vset.pattern.permute.xlu0 8
  %4301 = vperm.xlu0 %4300, %v4144
  %v4302 = vpop.permute.xlu0 %4301
  %4304 = vset.pattern.permute.xlu0 8
  %4305 = vperm.xlu0 %4304, %v4147
  %v4306 = vpop.permute.xlu0 %4305
  %4308 = vset.pattern.permute.xlu0 8
  %4309 = vperm.xlu0 %4308, %v4150
  %v4310 = vpop.permute.xlu0 %4309
  %v4312 = vperm.slane %v4232, 1
  %v4313 = vadd.f32 %v4250, %v4312
  %v4314 = vadd.f32 %v4254, %v4312
  %v4315 = vadd.f32 %v4258, %v4312
  %v4316 = vadd.f32 %v4262, %v4312
  %v4317 = vadd.f32 %v4266, %v4312
  %v4318 = vadd.f32 %v4270, %v4312
  %v4319 = vadd.f32 %v4274, %v4312
  %v4320 = vadd.f32 %v4278, %v4312
  %v4321 = vadd.f32 %v4282, %v4312
  %v4322 = vadd.f32 %v4286, %v4312
  %v4323 = vadd.f32 %v4290, %v4312
  %v4324 = vadd.f32 %v4294, %v4312
  %v4325 = vadd.f32 %v4298, %v4312
  %v4326 = vadd.f32 %v4302, %v4312
  %v4327 = vadd.f32 %v4306, %v4312
  %v4328 = vadd.f32 %v4310, %v4312
  %v4329 = vmul.f32 %v4313, 0.2
  %v4330 = vmul.f32 %v4314, 0.2
  %v4331 = vmul.f32 %v4315, 0.2
  %v4332 = vmul.f32 %v4316, 0.2
  %v4333 = vmul.f32 %v4317, 0.2
  %v4334 = vmul.f32 %v4318, 0.2
  %v4335 = vmul.f32 %v4319, 0.2
  %v4336 = vmul.f32 %v4320, 0.2
  %v4337 = vmul.f32 %v4321, 0.2
  %v4338 = vmul.f32 %v4322, 0.2
  %v4339 = vmul.f32 %v4323, 0.2
  %v4340 = vmul.f32 %v4324, 0.2
  %v4341 = vmul.f32 %v4325, 0.2
  %v4342 = vmul.f32 %v4326, 0.2
  %v4343 = vmul.f32 %v4327, 0.2
  %v4344 = vmul.f32 %v4328, 0.2
  %v4345 = vmax.f32 %v4313, %v4329
  %v4346 = vmax.f32 %v4314, %v4330
  %v4347 = vmax.f32 %v4315, %v4331
  %v4348 = vmax.f32 %v4316, %v4332
  %v4349 = vmax.f32 %v4317, %v4333
  %v4350 = vmax.f32 %v4318, %v4334
  %v4351 = vmax.f32 %v4319, %v4335
  %v4352 = vmax.f32 %v4320, %v4336
  %v4353 = vmax.f32 %v4321, %v4337
  %v4354 = vmax.f32 %v4322, %v4338
  %v4355 = vmax.f32 %v4323, %v4339
  %v4356 = vmax.f32 %v4324, %v4340
  %v4357 = vmax.f32 %v4325, %v4341
  %v4358 = vmax.f32 %v4326, %v4342
  %v4359 = vmax.f32 %v4327, %v4343
  %v4360 = vmax.f32 %v4328, %v4344
  %v4361 = vadd.f32 %v4345, %v26
  %v4362 = vadd.f32 %v4346, %v27
  %v4363 = vadd.f32 %v4347, %v28
  %v4364 = vadd.f32 %v4348, %v29
  %v4365 = vadd.f32 %v4349, %v30
  %v4366 = vadd.f32 %v4350, %v31
  %v4367 = vadd.f32 %v4351, %v32
  %v4368 = vadd.f32 %v4352, %v33
  %v4369 = vadd.f32 %v4353, %v34
  %v4370 = vadd.f32 %v4354, %v35
  %v4371 = vadd.f32 %v4355, %v36
  %v4372 = vadd.f32 %v4356, %v37
  %v4373 = vadd.f32 %v4357, %v38
  %v4374 = vadd.f32 %v4358, %v39
  %v4375 = vadd.f32 %v4359, %v40
  %v4376 = vadd.f32 %v4360, %v41
  %4377 = vmax.xlane.f32.xlu0 %v4361
  %v4378 = vpop.xlane.xlu0 %4377
  %4379 = vmax.xlane.f32.xlu0 %v4362
  %v4380 = vpop.xlane.xlu0 %4379
  %4381 = vmax.xlane.f32.xlu0 %v4363
  %v4382 = vpop.xlane.xlu0 %4381
  %4383 = vmax.xlane.f32.xlu0 %v4364
  %v4384 = vpop.xlane.xlu0 %4383
  %4385 = vmax.xlane.f32.xlu0 %v4365
  %v4386 = vpop.xlane.xlu0 %4385
  %4387 = vmax.xlane.f32.xlu0 %v4366
  %v4388 = vpop.xlane.xlu0 %4387
  %4389 = vmax.xlane.f32.xlu0 %v4367
  %v4390 = vpop.xlane.xlu0 %4389
  %4391 = vmax.xlane.f32.xlu0 %v4368
  %v4392 = vpop.xlane.xlu0 %4391
  %4393 = vmax.xlane.f32.xlu0 %v4369
  %v4394 = vpop.xlane.xlu0 %4393
  %4395 = vmax.xlane.f32.xlu0 %v4370
  %v4396 = vpop.xlane.xlu0 %4395
  %4397 = vmax.xlane.f32.xlu0 %v4371
  %v4398 = vpop.xlane.xlu0 %4397
  %4399 = vmax.xlane.f32.xlu0 %v4372
  %v4400 = vpop.xlane.xlu0 %4399
  %4401 = vmax.xlane.f32.xlu0 %v4373
  %v4402 = vpop.xlane.xlu0 %4401
  %4403 = vmax.xlane.f32.xlu0 %v4374
  %v4404 = vpop.xlane.xlu0 %4403
  %4405 = vmax.xlane.f32.xlu0 %v4375
  %v4406 = vpop.xlane.xlu0 %4405
  %4407 = vmax.xlane.f32.xlu0 %v4376
  %v4408 = vpop.xlane.xlu0 %4407
  %v4409 = vsub.f32 %v4361, %v4378
  %v4410 = vsub.f32 %v4362, %v4380
  %v4411 = vsub.f32 %v4363, %v4382
  %v4412 = vsub.f32 %v4364, %v4384
  %v4413 = vsub.f32 %v4365, %v4386
  %v4414 = vsub.f32 %v4366, %v4388
  %v4415 = vsub.f32 %v4367, %v4390
  %v4416 = vsub.f32 %v4368, %v4392
  %v4417 = vsub.f32 %v4369, %v4394
  %v4418 = vsub.f32 %v4370, %v4396
  %v4419 = vsub.f32 %v4371, %v4398
  %v4420 = vsub.f32 %v4372, %v4400
  %v4421 = vsub.f32 %v4373, %v4402
  %v4422 = vsub.f32 %v4374, %v4404
  %v4423 = vsub.f32 %v4375, %v4406
  %v4424 = vsub.f32 %v4376, %v4408
  %v4425 = vmul.f32 %v4409, 1.442695
  %v4426 = vpow.pop %v4425
  %v4427 = vmul.f32 %v4410, 1.442695
  %v4428 = vpow.pop %v4427
  %v4429 = vmul.f32 %v4411, 1.442695
  %v4430 = vpow.pop %v4429
  %v4431 = vmul.f32 %v4412, 1.442695
  %v4432 = vpow.pop %v4431
  %v4433 = vmul.f32 %v4413, 1.442695
  %v4434 = vpow.pop %v4433
  %v4435 = vmul.f32 %v4414, 1.442695
  %v4436 = vpow.pop %v4435
  %v4437 = vmul.f32 %v4415, 1.442695
  %v4438 = vpow.pop %v4437
  %v4439 = vmul.f32 %v4416, 1.442695
  %v4440 = vpow.pop %v4439
  %v4441 = vmul.f32 %v4417, 1.442695
  %v4442 = vpow.pop %v4441
  %v4443 = vmul.f32 %v4418, 1.442695
  %v4444 = vpow.pop %v4443
  %v4445 = vmul.f32 %v4419, 1.442695
  %v4446 = vpow.pop %v4445
  %v4447 = vmul.f32 %v4420, 1.442695
  %v4448 = vpow.pop %v4447
  %v4449 = vmul.f32 %v4421, 1.442695
  %v4450 = vpow.pop %v4449
  %v4451 = vmul.f32 %v4422, 1.442695
  %v4452 = vpow.pop %v4451
  %v4453 = vmul.f32 %v4423, 1.442695
  %v4454 = vpow.pop %v4453
  %v4455 = vmul.f32 %v4424, 1.442695
  %v4456 = vpow.pop %v4455
  %4457 = vadd.xlane.f32.xlu0 %v4426
  %v4458 = vpop.xlane.xlu0 %4457
  %4459 = vadd.xlane.f32.xlu0 %v4428
  %v4460 = vpop.xlane.xlu0 %4459
  %4461 = vadd.xlane.f32.xlu0 %v4430
  %v4462 = vpop.xlane.xlu0 %4461
  %4463 = vadd.xlane.f32.xlu0 %v4432
  %v4464 = vpop.xlane.xlu0 %4463
  %4465 = vadd.xlane.f32.xlu0 %v4434
  %v4466 = vpop.xlane.xlu0 %4465
  %4467 = vadd.xlane.f32.xlu0 %v4436
  %v4468 = vpop.xlane.xlu0 %4467
  %4469 = vadd.xlane.f32.xlu0 %v4438
  %v4470 = vpop.xlane.xlu0 %4469
  %4471 = vadd.xlane.f32.xlu0 %v4440
  %v4472 = vpop.xlane.xlu0 %4471
  %4473 = vadd.xlane.f32.xlu0 %v4442
  %v4474 = vpop.xlane.xlu0 %4473
  %4475 = vadd.xlane.f32.xlu0 %v4444
  %v4476 = vpop.xlane.xlu0 %4475
  %4477 = vadd.xlane.f32.xlu0 %v4446
  %v4478 = vpop.xlane.xlu0 %4477
  %4479 = vadd.xlane.f32.xlu0 %v4448
  %v4480 = vpop.xlane.xlu0 %4479
  %4481 = vadd.xlane.f32.xlu0 %v4450
  %v4482 = vpop.xlane.xlu0 %4481
  %4483 = vadd.xlane.f32.xlu0 %v4452
  %v4484 = vpop.xlane.xlu0 %4483
  %4485 = vadd.xlane.f32.xlu0 %v4454
  %v4486 = vpop.xlane.xlu0 %4485
  %4487 = vadd.xlane.f32.xlu0 %v4456
  %v4488 = vpop.xlane.xlu0 %4487
  %v4489 = vrcp.pop %v4458
  %v4490 = vrcp.pop %v4460
  %v4491 = vrcp.pop %v4462
  %v4492 = vrcp.pop %v4464
  %v4493 = vrcp.pop %v4466
  %v4494 = vrcp.pop %v4468
  %v4495 = vrcp.pop %v4470
  %v4496 = vrcp.pop %v4472
  %v4497 = vrcp.pop %v4474
  %v4498 = vrcp.pop %v4476
  %v4499 = vrcp.pop %v4478
  %v4500 = vrcp.pop %v4480
  %v4501 = vrcp.pop %v4482
  %v4502 = vrcp.pop %v4484
  %v4503 = vrcp.pop %v4486
  %v4504 = vrcp.pop %v4488
  %v4505 = vmul.f32 %v4458, %v4489
  %v4506 = vmul.f32 %v4460, %v4490
  %v4507 = vmul.f32 %v4462, %v4491
  %v4508 = vmul.f32 %v4464, %v4492
  %v4509 = vmul.f32 %v4466, %v4493
  %v4510 = vmul.f32 %v4468, %v4494
  %v4511 = vmul.f32 %v4470, %v4495
  %v4512 = vmul.f32 %v4472, %v4496
  %v4513 = vmul.f32 %v4474, %v4497
  %v4514 = vmul.f32 %v4476, %v4498
  %v4515 = vmul.f32 %v4478, %v4499
  %v4516 = vmul.f32 %v4480, %v4500
  %v4517 = vmul.f32 %v4482, %v4501
  %v4518 = vmul.f32 %v4484, %v4502
  %v4519 = vmul.f32 %v4486, %v4503
  %v4520 = vmul.f32 %v4488, %v4504
  %v4521 = vsub.f32 2.0, %v4505
  %v4522 = vsub.f32 2.0, %v4506
  %v4523 = vsub.f32 2.0, %v4507
  %v4524 = vsub.f32 2.0, %v4508
  %v4525 = vsub.f32 2.0, %v4509
  %v4526 = vsub.f32 2.0, %v4510
  %v4527 = vsub.f32 2.0, %v4511
  %v4528 = vsub.f32 2.0, %v4512
  %v4529 = vsub.f32 2.0, %v4513
  %v4530 = vsub.f32 2.0, %v4514
  %v4531 = vsub.f32 2.0, %v4515
  %v4532 = vsub.f32 2.0, %v4516
  %v4533 = vsub.f32 2.0, %v4517
  %v4534 = vsub.f32 2.0, %v4518
  %v4535 = vsub.f32 2.0, %v4519
  %v4536 = vsub.f32 2.0, %v4520
  %v4537 = vmul.f32 %v4489, %v4521
  %v4538 = vmul.f32 %v4490, %v4522
  %v4539 = vmul.f32 %v4491, %v4523
  %v4540 = vmul.f32 %v4492, %v4524
  %v4541 = vmul.f32 %v4493, %v4525
  %v4542 = vmul.f32 %v4494, %v4526
  %v4543 = vmul.f32 %v4495, %v4527
  %v4544 = vmul.f32 %v4496, %v4528
  %v4545 = vmul.f32 %v4497, %v4529
  %v4546 = vmul.f32 %v4498, %v4530
  %v4547 = vmul.f32 %v4499, %v4531
  %v4548 = vmul.f32 %v4500, %v4532
  %v4549 = vmul.f32 %v4501, %v4533
  %v4550 = vmul.f32 %v4502, %v4534
  %v4551 = vmul.f32 %v4503, %v4535
  %v4552 = vmul.f32 %v4504, %v4536
  %4553 = vmatpush.msra.mxu0 %v4150
  %4554 = vmatpush.msra.mxu0 %v4147
  %4555 = vmatpush.msra.mxu0 %v4144
  %4556 = vmatpush.msra.mxu0 %v4141
  %4557 = vmatpush.msra.mxu0 %v4138
  %4558 = vmatpush.msra.mxu0 %v4135
  %4559 = vmatpush.msra.mxu0 %v4132
  %4560 = vmatpush.msra.mxu0 %v4129
  %4561 = vmatpush.msra.mxu0 %v4126
  %4562 = vmatpush.msra.mxu0 %v4123
  %4563 = vmatpush.msra.mxu0 %v4120
  %4564 = vmatpush.msra.mxu0 %v4117
  %4565 = vmatpush.msra.mxu0 %v4114
  %4566 = vmatpush.msra.mxu0 %v4111
  %4567 = vmatpush.msra.mxu0 %v4108
  %4568 = vmatpush.msra.mxu0 %v4105
  %4569 = vmatmul.f32.gmra.mxu0 %v4426
  %v4570 = vpop.f32.mrf.mxu0
  %v4571 = vadd.f32 0.0, %v4570
  %4572 = vmatmul.f32.gmra.mxu0 %v4428
  %v4573 = vpop.f32.mrf.mxu0
  %v4574 = vadd.f32 0.0, %v4573
  %4575 = vmatmul.f32.gmra.mxu0 %v4430
  %v4576 = vpop.f32.mrf.mxu0
  %v4577 = vadd.f32 0.0, %v4576
  %4578 = vmatmul.f32.gmra.mxu0 %v4432
  %v4579 = vpop.f32.mrf.mxu0
  %v4580 = vadd.f32 0.0, %v4579
  %4581 = vmatmul.f32.gmra.mxu0 %v4434
  %v4582 = vpop.f32.mrf.mxu0
  %v4583 = vadd.f32 0.0, %v4582
  %4584 = vmatmul.f32.gmra.mxu0 %v4436
  %v4585 = vpop.f32.mrf.mxu0
  %v4586 = vadd.f32 0.0, %v4585
  %4587 = vmatmul.f32.gmra.mxu0 %v4438
  %v4588 = vpop.f32.mrf.mxu0
  %v4589 = vadd.f32 0.0, %v4588
  %4590 = vmatmul.f32.gmra.mxu0 %v4440
  %v4591 = vpop.f32.mrf.mxu0
  %v4592 = vadd.f32 0.0, %v4591
  %4593 = vmatmul.f32.gmra.mxu0 %v4442
  %v4594 = vpop.f32.mrf.mxu0
  %v4595 = vadd.f32 0.0, %v4594
  %4596 = vmatmul.f32.gmra.mxu0 %v4444
  %v4597 = vpop.f32.mrf.mxu0
  %v4598 = vadd.f32 0.0, %v4597
  %4599 = vmatmul.f32.gmra.mxu0 %v4446
  %v4600 = vpop.f32.mrf.mxu0
  %v4601 = vadd.f32 0.0, %v4600
  %4602 = vmatmul.f32.gmra.mxu0 %v4448
  %v4603 = vpop.f32.mrf.mxu0
  %v4604 = vadd.f32 0.0, %v4603
  %4605 = vmatmul.f32.gmra.mxu0 %v4450
  %v4606 = vpop.f32.mrf.mxu0
  %v4607 = vadd.f32 0.0, %v4606
  %4608 = vmatmul.f32.gmra.mxu0 %v4452
  %v4609 = vpop.f32.mrf.mxu0
  %v4610 = vadd.f32 0.0, %v4609
  %4611 = vmatmul.f32.gmra.mxu0 %v4454
  %v4612 = vpop.f32.mrf.mxu0
  %v4613 = vadd.f32 0.0, %v4612
  %4614 = vmatmul.f32.gmra.mxu0 %v4456
  %v4615 = vpop.f32.mrf.mxu0
  %v4616 = vadd.f32 0.0, %v4615
  %4617 = vdwg.mxu0
  %v4618 = vmul.f32 %v4571, %v4537
  %v4619 = vmul.f32 %v4574, %v4538
  %v4620 = vmul.f32 %v4577, %v4539
  %v4621 = vmul.f32 %v4580, %v4540
  %v4622 = vmul.f32 %v4583, %v4541
  %v4623 = vmul.f32 %v4586, %v4542
  %v4624 = vmul.f32 %v4589, %v4543
  %v4625 = vmul.f32 %v4592, %v4544
  %v4626 = vmul.f32 %v4595, %v4545
  %v4627 = vmul.f32 %v4598, %v4546
  %v4628 = vmul.f32 %v4601, %v4547
  %v4629 = vmul.f32 %v4604, %v4548
  %v4630 = vmul.f32 %v4607, %v4549
  %v4631 = vmul.f32 %v4610, %v4550
  %v4632 = vmul.f32 %v4613, %v4551
  %v4633 = vmul.f32 %v4616, %v4552
  %v4634 = vld [vmem:[%s5] sm:$0x1]
  %v4636 = vperm.slane %v4634, 0
  %v4638 = vadd.f32 %v4618, %v4636
  %v4639 = vadd.f32 %v4619, %v4636
  %v4640 = vadd.f32 %v4620, %v4636
  %v4641 = vadd.f32 %v4621, %v4636
  %v4642 = vadd.f32 %v4622, %v4636
  %v4643 = vadd.f32 %v4623, %v4636
  %v4644 = vadd.f32 %v4624, %v4636
  %v4645 = vadd.f32 %v4625, %v4636
  %v4646 = vadd.f32 %v4626, %v4636
  %v4647 = vadd.f32 %v4627, %v4636
  %v4648 = vadd.f32 %v4628, %v4636
  %v4649 = vadd.f32 %v4629, %v4636
  %v4650 = vadd.f32 %v4630, %v4636
  %v4651 = vadd.f32 %v4631, %v4636
  %v4652 = vadd.f32 %v4632, %v4636
  %v4653 = vadd.f32 %v4633, %v4636
  %vm4654 = vcmask 64512
  %v4655 = vsel %vm4654, %v4638, -inf
  %4656 = vmax.xlane.f32.xlu0 %v4655
  %v4657 = vpop.xlane.xlu0 %4656
  %v4658 = vsel %vm4654, %v4639, -inf
  %4659 = vmax.xlane.f32.xlu0 %v4658
  %v4660 = vpop.xlane.xlu0 %4659
  %v4661 = vsel %vm4654, %v4640, -inf
  %4662 = vmax.xlane.f32.xlu0 %v4661
  %v4663 = vpop.xlane.xlu0 %4662
  %v4664 = vsel %vm4654, %v4641, -inf
  %4665 = vmax.xlane.f32.xlu0 %v4664
  %v4666 = vpop.xlane.xlu0 %4665
  %v4667 = vsel %vm4654, %v4642, -inf
  %4668 = vmax.xlane.f32.xlu0 %v4667
  %v4669 = vpop.xlane.xlu0 %4668
  %v4670 = vsel %vm4654, %v4643, -inf
  %4671 = vmax.xlane.f32.xlu0 %v4670
  %v4672 = vpop.xlane.xlu0 %4671
  %v4673 = vsel %vm4654, %v4644, -inf
  %4674 = vmax.xlane.f32.xlu0 %v4673
  %v4675 = vpop.xlane.xlu0 %4674
  %v4676 = vsel %vm4654, %v4645, -inf
  %4677 = vmax.xlane.f32.xlu0 %v4676
  %v4678 = vpop.xlane.xlu0 %4677
  %v4679 = vsel %vm4654, %v4646, -inf
  %4680 = vmax.xlane.f32.xlu0 %v4679
  %v4681 = vpop.xlane.xlu0 %4680
  %v4682 = vsel %vm4654, %v4647, -inf
  %4683 = vmax.xlane.f32.xlu0 %v4682
  %v4684 = vpop.xlane.xlu0 %4683
  %v4685 = vsel %vm4654, %v4648, -inf
  %4686 = vmax.xlane.f32.xlu0 %v4685
  %v4687 = vpop.xlane.xlu0 %4686
  %v4688 = vsel %vm4654, %v4649, -inf
  %4689 = vmax.xlane.f32.xlu0 %v4688
  %v4690 = vpop.xlane.xlu0 %4689
  %v4691 = vsel %vm4654, %v4650, -inf
  %4692 = vmax.xlane.f32.xlu0 %v4691
  %v4693 = vpop.xlane.xlu0 %4692
  %v4694 = vsel %vm4654, %v4651, -inf
  %4695 = vmax.xlane.f32.xlu0 %v4694
  %v4696 = vpop.xlane.xlu0 %4695
  %v4697 = vsel %vm4654, %v4652, -inf
  %4698 = vmax.xlane.f32.xlu0 %v4697
  %v4699 = vpop.xlane.xlu0 %4698
  %v4700 = vsel %vm4654, %v4653, -inf
  %4701 = vmax.xlane.f32.xlu0 %v4700
  %v4702 = vpop.xlane.xlu0 %4701
  %v4703 = vsub.f32 %v4638, %v4657
  %v4704 = vsub.f32 %v4639, %v4660
  %v4705 = vsub.f32 %v4640, %v4663
  %v4706 = vsub.f32 %v4641, %v4666
  %v4707 = vsub.f32 %v4642, %v4669
  %v4708 = vsub.f32 %v4643, %v4672
  %v4709 = vsub.f32 %v4644, %v4675
  %v4710 = vsub.f32 %v4645, %v4678
  %v4711 = vsub.f32 %v4646, %v4681
  %v4712 = vsub.f32 %v4647, %v4684
  %v4713 = vsub.f32 %v4648, %v4687
  %v4714 = vsub.f32 %v4649, %v4690
  %v4715 = vsub.f32 %v4650, %v4693
  %v4716 = vsub.f32 %v4651, %v4696
  %v4717 = vsub.f32 %v4652, %v4699
  %v4718 = vsub.f32 %v4653, %v4702
  %v4719 = vmul.f32 %v4703, 1.442695
  %v4720 = vpow.pop %v4719
  %v4721 = vmul.f32 %v4704, 1.442695
  %v4722 = vpow.pop %v4721
  %v4723 = vmul.f32 %v4705, 1.442695
  %v4724 = vpow.pop %v4723
  %v4725 = vmul.f32 %v4706, 1.442695
  %v4726 = vpow.pop %v4725
  %v4727 = vmul.f32 %v4707, 1.442695
  %v4728 = vpow.pop %v4727
  %v4729 = vmul.f32 %v4708, 1.442695
  %v4730 = vpow.pop %v4729
  %v4731 = vmul.f32 %v4709, 1.442695
  %v4732 = vpow.pop %v4731
  %v4733 = vmul.f32 %v4710, 1.442695
  %v4734 = vpow.pop %v4733
  %v4735 = vmul.f32 %v4711, 1.442695
  %v4736 = vpow.pop %v4735
  %v4737 = vmul.f32 %v4712, 1.442695
  %v4738 = vpow.pop %v4737
  %v4739 = vmul.f32 %v4713, 1.442695
  %v4740 = vpow.pop %v4739
  %v4741 = vmul.f32 %v4714, 1.442695
  %v4742 = vpow.pop %v4741
  %v4743 = vmul.f32 %v4715, 1.442695
  %v4744 = vpow.pop %v4743
  %v4745 = vmul.f32 %v4716, 1.442695
  %v4746 = vpow.pop %v4745
  %v4747 = vmul.f32 %v4717, 1.442695
  %v4748 = vpow.pop %v4747
  %v4749 = vmul.f32 %v4718, 1.442695
  %v4750 = vpow.pop %v4749
  %v4751 = vsel %vm4654, %v4720, 0.0
  %4752 = vadd.xlane.f32.xlu0 %v4751
  %v4753 = vpop.xlane.xlu0 %4752
  %v4754 = vsel %vm4654, %v4722, 0.0
  %4755 = vadd.xlane.f32.xlu0 %v4754
  %v4756 = vpop.xlane.xlu0 %4755
  %v4757 = vsel %vm4654, %v4724, 0.0
  %4758 = vadd.xlane.f32.xlu0 %v4757
  %v4759 = vpop.xlane.xlu0 %4758
  %v4760 = vsel %vm4654, %v4726, 0.0
  %4761 = vadd.xlane.f32.xlu0 %v4760
  %v4762 = vpop.xlane.xlu0 %4761
  %v4763 = vsel %vm4654, %v4728, 0.0
  %4764 = vadd.xlane.f32.xlu0 %v4763
  %v4765 = vpop.xlane.xlu0 %4764
  %v4766 = vsel %vm4654, %v4730, 0.0
  %4767 = vadd.xlane.f32.xlu0 %v4766
  %v4768 = vpop.xlane.xlu0 %4767
  %v4769 = vsel %vm4654, %v4732, 0.0
  %4770 = vadd.xlane.f32.xlu0 %v4769
  %v4771 = vpop.xlane.xlu0 %4770
  %v4772 = vsel %vm4654, %v4734, 0.0
  %4773 = vadd.xlane.f32.xlu0 %v4772
  %v4774 = vpop.xlane.xlu0 %4773
  %v4775 = vsel %vm4654, %v4736, 0.0
  %4776 = vadd.xlane.f32.xlu0 %v4775
  %v4777 = vpop.xlane.xlu0 %4776
  %v4778 = vsel %vm4654, %v4738, 0.0
  %4779 = vadd.xlane.f32.xlu0 %v4778
  %v4780 = vpop.xlane.xlu0 %4779
  %v4781 = vsel %vm4654, %v4740, 0.0
  %4782 = vadd.xlane.f32.xlu0 %v4781
  %v4783 = vpop.xlane.xlu0 %4782
  %v4784 = vsel %vm4654, %v4742, 0.0
  %4785 = vadd.xlane.f32.xlu0 %v4784
  %v4786 = vpop.xlane.xlu0 %4785
  %v4787 = vsel %vm4654, %v4744, 0.0
  %4788 = vadd.xlane.f32.xlu0 %v4787
  %v4789 = vpop.xlane.xlu0 %4788
  %v4790 = vsel %vm4654, %v4746, 0.0
  %4791 = vadd.xlane.f32.xlu0 %v4790
  %v4792 = vpop.xlane.xlu0 %4791
  %v4793 = vsel %vm4654, %v4748, 0.0
  %4794 = vadd.xlane.f32.xlu0 %v4793
  %v4795 = vpop.xlane.xlu0 %4794
  %v4796 = vsel %vm4654, %v4750, 0.0
  %4797 = vadd.xlane.f32.xlu0 %v4796
  %v4798 = vpop.xlane.xlu0 %4797
  %v4799 = vlog2.pop %v4753
  %v4800 = vmul.f32 %v4799, 0.6931472
  %v4801 = vlog2.pop %v4756
  %v4802 = vmul.f32 %v4801, 0.6931472
  %v4803 = vlog2.pop %v4759
  %v4804 = vmul.f32 %v4803, 0.6931472
  %v4805 = vlog2.pop %v4762
  %v4806 = vmul.f32 %v4805, 0.6931472
  %v4807 = vlog2.pop %v4765
  %v4808 = vmul.f32 %v4807, 0.6931472
  %v4809 = vlog2.pop %v4768
  %v4810 = vmul.f32 %v4809, 0.6931472
  %v4811 = vlog2.pop %v4771
  %v4812 = vmul.f32 %v4811, 0.6931472
  %v4813 = vlog2.pop %v4774
  %v4814 = vmul.f32 %v4813, 0.6931472
  %v4815 = vlog2.pop %v4777
  %v4816 = vmul.f32 %v4815, 0.6931472
  %v4817 = vlog2.pop %v4780
  %v4818 = vmul.f32 %v4817, 0.6931472
  %v4819 = vlog2.pop %v4783
  %v4820 = vmul.f32 %v4819, 0.6931472
  %v4821 = vlog2.pop %v4786
  %v4822 = vmul.f32 %v4821, 0.6931472
  %v4823 = vlog2.pop %v4789
  %v4824 = vmul.f32 %v4823, 0.6931472
  %v4825 = vlog2.pop %v4792
  %v4826 = vmul.f32 %v4825, 0.6931472
  %v4827 = vlog2.pop %v4795
  %v4828 = vmul.f32 %v4827, 0.6931472
  %v4829 = vlog2.pop %v4798
  %v4830 = vmul.f32 %v4829, 0.6931472
  %v4831 = vadd.f32 %v4800, %v4657
  %v4832 = vadd.f32 %v4802, %v4660
  %v4833 = vadd.f32 %v4804, %v4663
  %v4834 = vadd.f32 %v4806, %v4666
  %v4835 = vadd.f32 %v4808, %v4669
  %v4836 = vadd.f32 %v4810, %v4672
  %v4837 = vadd.f32 %v4812, %v4675
  %v4838 = vadd.f32 %v4814, %v4678
  %v4839 = vadd.f32 %v4816, %v4681
  %v4840 = vadd.f32 %v4818, %v4684
  %v4841 = vadd.f32 %v4820, %v4687
  %v4842 = vadd.f32 %v4822, %v4690
  %v4843 = vadd.f32 %v4824, %v4693
  %v4844 = vadd.f32 %v4826, %v4696
  %v4845 = vadd.f32 %v4828, %v4699
  %v4846 = vadd.f32 %v4830, %v4702
  %v4847 = vsub.f32 %v4638, %v4831
  %v4848 = vsub.f32 %v4639, %v4832
  %v4849 = vsub.f32 %v4640, %v4833
  %v4850 = vsub.f32 %v4641, %v4834
  %v4851 = vsub.f32 %v4642, %v4835
  %v4852 = vsub.f32 %v4643, %v4836
  %v4853 = vsub.f32 %v4644, %v4837
  %v4854 = vsub.f32 %v4645, %v4838
  %v4855 = vsub.f32 %v4646, %v4839
  %v4856 = vsub.f32 %v4647, %v4840
  %v4857 = vsub.f32 %v4648, %v4841
  %v4858 = vsub.f32 %v4649, %v4842
  %v4859 = vsub.f32 %v4650, %v4843
  %v4860 = vsub.f32 %v4651, %v4844
  %v4861 = vsub.f32 %v4652, %v4845
  %v4862 = vsub.f32 %v4653, %v4846
  %4863 = vst.msk [vmem:[%s7] sm:$0xff] %vm4654, %v4847
  %4864 = vst.msk [vmem:[%s7 + $0x8] sm:$0xff] %vm4654, %v4848
  %4865 = vst.msk [vmem:[%s7 + $0x10] sm:$0xff] %vm4654, %v4849
  %4866 = vst.msk [vmem:[%s7 + $0x18] sm:$0xff] %vm4654, %v4850
  %4867 = vst.msk [vmem:[%s7 + $0x20] sm:$0xff] %vm4654, %v4851
  %4868 = vst.msk [vmem:[%s7 + $0x28] sm:$0xff] %vm4654, %v4852
  %4869 = vst.msk [vmem:[%s7 + $0x30] sm:$0xff] %vm4654, %v4853
  %4870 = vst.msk [vmem:[%s7 + $0x38] sm:$0xff] %vm4654, %v4854
  %4871 = vst.msk [vmem:[%s7 + $0x40] sm:$0xff] %vm4654, %v4855
  %4872 = vst.msk [vmem:[%s7 + $0x48] sm:$0xff] %vm4654, %v4856
  %4873 = vst.msk [vmem:[%s7 + $0x50] sm:$0xff] %vm4654, %v4857
  %4874 = vst.msk [vmem:[%s7 + $0x58] sm:$0xff] %vm4654, %v4858
  %4875 = vst.msk [vmem:[%s7 + $0x60] sm:$0xff] %vm4654, %v4859
  %4876 = vst.msk [vmem:[%s7 + $0x68] sm:$0xff] %vm4654, %v4860
  %4877 = vst.msk [vmem:[%s7 + $0x70] sm:$0xff] %vm4654, %v4861
  %4878 = vst.msk [vmem:[%s7 + $0x78] sm:$0xff] %vm4654, %v4862
  // Predicated region
  $region30: #{gat_forward.1} parent=0 // pred_check
    _
  $region31: #{gat_forward.1} parent=0 // pred_check_branch
    %4880 = sbr.rel (0) target = $region33
  $region32: #{gat_forward.1} parent=0 // pred_region
    _
  $region33: #{gat_forward.1} parent=0 // pred_fallthru
    _
  // Predicated region
  $region34: #{gat_forward.1} parent=0 // pred_check
    _
  $region35: #{gat_forward.1} parent=0 // pred_check_branch
    %4882 = sbr.rel (0) target = $region37
  $region36: #{gat_forward.1} parent=0 // pred_region
    _
  $region37: #{gat_forward.1} parent=0 // pred_fallthru
    _

</llo_original>
